<compile_context>
chip_gen: v7x
topology: tpu7x:2x2x1
jax: 0.10.0
libtpu: 0.0.40
codegen_flags: <defaults>
</compile_context>

<pallas_src>
import functools

import jax
import jax.numpy as jnp
from jax import lax
from jax.experimental import pallas as pl
from jax.experimental.pallas import tpu as pltpu


# Conservative VMEM budgeting: fits v5e/v6e (128 MiB physical) and v7x (64 MiB).
_VMEM_LIMIT = 48 * 1024 * 1024      # requested scoped VMEM per pallas_call
_BLOCK_BUDGET = 36 * 1024 * 1024    # what tiles (incl. double buffers) may use


# ---------------------------------------------------------------------------
# Kernels
# ---------------------------------------------------------------------------

def _mm_bias_kernel(x_ref, w_ref, b_ref, o_ref):
    """o = x @ w + b.  MXU operands bf16, f32 accumulate."""
    o_ref[...] = (
        jnp.dot(x_ref[...].astype(jnp.bfloat16), w_ref[...],
                preferred_element_type=jnp.float32)
        + b_ref[...]
    )


def _in_proj_kernel(x_ref, w_ref, b_ref, o_ref):
    """One gate of gi = x @ W_ih + b_ih, written to per-gate output layout.

    x: (tm, E) bf16, w: (1, E, H) bf16, b: (1, 1, H) f32, o: (1, tm, H) f32.
    """
    o_ref[0] = (
        jnp.dot(x_ref[...], w_ref[0], preferred_element_type=jnp.float32)
        + b_ref[0]
    )


def _gru_kernel(gi_ref,    # (3, chunk, B, H) f32  precomputed x@W_ih + b_ih
                whh_ref,   # (3, H, H) bf16
                bhh_ref,   # (3, 1, H) f32
                wc_ref,    # (H, E) bf16
                bc_ref,    # (1, E) f32
                o_ref,     # (chunk, B, E) f32   final = tanh(W_c h + b_c)
                h_carry,   # (B, H) f32 VMEM scratch, persists across grid steps
                *, chunk):
    c = pl.program_id(0)

    @pl.when(c == 0)
    def _():
        # h_0 = None  =>  zeros
        h_carry[...] = jnp.zeros_like(h_carry)

    # Per-gate hh weights: avoids lane-slicing a (B, 3H) tensor on the serial
    # critical path when H is not a multiple of 128.
    whh_r, whh_z, whh_n = whh_ref[0], whh_ref[1], whh_ref[2]
    bhh_r, bhh_z, bhh_n = bhh_ref[0], bhh_ref[1], bhh_ref[2]
    wc = wc_ref[...]
    bc = bc_ref[...]

    def step(i, h):
        hb = h.astype(jnp.bfloat16)
        gh_r = jnp.dot(hb, whh_r, preferred_element_type=jnp.float32) + bhh_r
        gh_z = jnp.dot(hb, whh_z, preferred_element_type=jnp.float32) + bhh_z
        gh_n = jnp.dot(hb, whh_n, preferred_element_type=jnp.float32) + bhh_n
        # PyTorch gate ordering: r, z, n; b_hn stays inside the r * (.) term.
        r = jax.nn.sigmoid(gi_ref[0, i] + gh_r)
        z = jax.nn.sigmoid(gi_ref[1, i] + gh_z)
        n = jnp.tanh(gi_ref[2, i] + r * gh_n)
        h_new = (1.0 - z) * n + z * h
        # Fused W_c + tanh epilogue: computed exactly once per timestep,
        # so the vocab-projection kernel never recomputes it per V tile.
        o_ref[i] = jnp.tanh(
            jnp.dot(h_new.astype(jnp.bfloat16), wc,
                    preferred_element_type=jnp.float32) + bc)
        return h_new

    h_carry[...] = lax.fori_loop(0, chunk, step, h_carry[...], unroll=True)


# ---------------------------------------------------------------------------
# Tiling helpers (static, VMEM-budget driven)
# ---------------------------------------------------------------------------

def _pick_lane_tile(N, cap=512):
    """Full N when small, else a lane-dense multiple of 128."""
    if N <= cap:
        return int(N)
    return int((cap // 128) * 128)


def _pick_row_tile(M, K, tn, x_bytes, w_bytes, cap):
    """Largest row tile (multiple of 16) whose double-buffered blocks fit."""
    fixed = 2 * K * tn * w_bytes + 2 * tn * 4
    per_row = 2 * K * x_bytes + 2 * tn * 4
    tm_fit = max(16, int((_BLOCK_BUDGET - fixed) // per_row))
    tm = min(int(M), int(cap), tm_fit)
    if tm < M:
        tm = max(16, (tm // 16) * 16)
    return int(tm)


# ---------------------------------------------------------------------------
# pallas_call wrappers
# ---------------------------------------------------------------------------

def _in_proj(x, w_ih, b_ih):
    """gi = x @ W_ih + b_ih for all timesteps; output layout (3, M, H).

    x: (M, E) bf16; w_ih: (3, E, H) bf16; b_ih: (3, 1, H) f32.
    Grid is (M tiles, gate) so the x tile is reused across the 3 gates and
    both axes are fully parallel (shardable across v7x's 2 TensorCores).
    """
    M, E = x.shape
    H = w_ih.shape[-1]
    tm = _pick_row_tile(M, E, H, x.dtype.itemsize, w_ih.dtype.itemsize, 1024)
    gm = -(-M // tm)
    cost = pl.CostEstimate(
        flops=2 * M * E * 3 * H,
        transcendentals=0,
        bytes_accessed=M * E * x.dtype.itemsize
        + gm * 3 * E * H * w_ih.dtype.itemsize
        + 3 * M * H * 4,
    )
    return pl.pallas_call(
        _in_proj_kernel,
        out_shape=jax.ShapeDtypeStruct((3, M, H), jnp.float32),
        grid_spec=pltpu.PrefetchScalarGridSpec(
            num_scalar_prefetch=0,
            grid=(gm, 3),
            in_specs=[
                pl.BlockSpec((tm, E), lambda i, g: (i, 0)),
                pl.BlockSpec((1, E, H), lambda i, g: (g, 0, 0)),
                pl.BlockSpec((1, 1, H), lambda i, g: (g, 0, 0)),
            ],
            out_specs=pl.BlockSpec((1, tm, H), lambda i, g: (g, i, 0)),
        ),
        compiler_params=pltpu.CompilerParams(
            dimension_semantics=("parallel", "parallel"),
            vmem_limit_bytes=_VMEM_LIMIT,
        ),
        cost_estimate=cost,
    )(x, w_ih, b_ih)


def _matmul_bias(x, w, b, *, tm_cap=1024, tn_cap=512):
    """o = x @ w + b, tiled over (M, N), both grid axes parallel."""
    M, K = x.shape
    N = w.shape[1]
    tn = _pick_lane_tile(N, tn_cap)
    tm = _pick_row_tile(M, K, tn, x.dtype.itemsize, w.dtype.itemsize, tm_cap)
    gm = -(-M // tm)
    gn = -(-N // tn)
    cost = pl.CostEstimate(
        flops=2 * M * K * N,
        transcendentals=0,
        bytes_accessed=M * K * x.dtype.itemsize
        + gm * K * N * w.dtype.itemsize
        + M * N * 4,
    )
    return pl.pallas_call(
        _mm_bias_kernel,
        out_shape=jax.ShapeDtypeStruct((M, N), jnp.float32),
        grid_spec=pltpu.PrefetchScalarGridSpec(
            num_scalar_prefetch=0,
            grid=(gm, gn),
            in_specs=[
                pl.BlockSpec((tm, K), lambda i, j: (i, 0)),
                pl.BlockSpec((K, tn), lambda i, j: (0, j)),
                pl.BlockSpec((1, tn), lambda i, j: (0, j)),
            ],
            out_specs=pl.BlockSpec((tm, tn), lambda i, j: (i, j)),
        ),
        compiler_params=pltpu.CompilerParams(
            dimension_semantics=("parallel", "parallel"),
            vmem_limit_bytes=_VMEM_LIMIT,
        ),
        cost_estimate=cost,
    )(x, w, b)


def _gru_scan(gi, w_hh, b_hh, w_c, b_c, *, chunk, B, H, E):
    """Sequential GRU recurrence over T (chunked), fused tanh(W_c h) epilogue."""
    T_pad = gi.shape[1]
    n_chunks = T_pad // chunk
    kernel = functools.partial(_gru_kernel, chunk=chunk)
    return pl.pallas_call(
        kernel,
        out_shape=jax.ShapeDtypeStruct((T_pad, B, E), jnp.float32),
        grid_spec=pltpu.PrefetchScalarGridSpec(
            num_scalar_prefetch=0,
            grid=(n_chunks,),
            in_specs=[
                pl.BlockSpec((3, chunk, B, H), lambda c: (0, c, 0, 0)),
                pl.BlockSpec((3, H, H), lambda c: (0, 0, 0)),
                pl.BlockSpec((3, 1, H), lambda c: (0, 0, 0)),
                pl.BlockSpec((H, E), lambda c: (0, 0)),
                pl.BlockSpec((1, E), lambda c: (0, 0)),
            ],
            out_specs=pl.BlockSpec((chunk, B, E), lambda c: (c, 0, 0)),
            scratch_shapes=[pltpu.VMEM((B, H), jnp.float32)],
        ),
        compiler_params=pltpu.CompilerParams(
            # Hidden state is carried in h_carry: this axis must stay sequential.
            dimension_semantics=("arbitrary",),
            vmem_limit_bytes=_VMEM_LIMIT,
        ),
    )(gi, w_hh, b_hh, w_c, b_c)


# ---------------------------------------------------------------------------
# Full forward
# ---------------------------------------------------------------------------

@functools.partial(jax.jit, static_argnames=("chunk_t",))
def decoder_forward(helper, emb_table, params, *, chunk_t=32):
    """helper: (B, T) int32 tokens -> logits (B, T, V) float32."""
    B, T = helper.shape
    E = emb_table.shape[1]
    H = params["w_hh"].shape[-1]
    V = params["w_v"].shape[1]
    bf = jnp.bfloat16

    # bf16 MXU operands everywhere; biases and gate math stay f32.
    w_ih = params["w_ih"].astype(bf)
    w_hh = params["w_hh"].astype(bf)
    w_c = params["w_c"].astype(bf)
    w_v = params["w_v"].astype(bf)

    # 1) Embedding gather directly in time-major order (no separate transpose op).
    x_tb = jnp.take(emb_table, helper.T, axis=0).astype(bf)          # (T, B, E)

    # 2) Batched input-gate projection for all timesteps, per-gate layout.
    gi = _in_proj(x_tb.reshape(T * B, E), w_ih, params["b_ih"])       # (3, T*B, H)
    gi = gi.reshape(3, T, B, H)

    # 3) Chunk size for the recurrence, derived from the VMEM budget
    #    (keeps the double-buffered gi + final blocks v7x-safe).
    fixed = 3 * H * H * 2 + H * E * 2 + (6 * H + E) * 4 + B * H * 4
    per_t = 2 * 3 * B * H * 4 + 2 * B * E * 4
    chunk_fit = max(8, int((_BLOCK_BUDGET - fixed) // per_t))
    chunk = min(int(chunk_t), chunk_fit)
    if chunk >= T:
        chunk, T_pad = T, T
    else:
        chunk = max(8, (chunk // 8) * 8)
        T_pad = -(-T // chunk) * chunk
    if T_pad != T:
        gi = jnp.pad(gi, ((0, 0), (0, T_pad - T), (0, 0), (0, 0)))

    # 4) Sequential GRU recurrence fused with the tanh(W_c h + b_c) epilogue.
    final_tbe = _gru_scan(gi, w_hh, params["b_hh"], w_c, params["b_c"],
                          chunk=chunk, B=B, H=H, E=E)                 # (T_pad, B, E)
    final_tbe = final_tbe[:T]

    # 5) Vocab projection: plain (B*T, E) x (E, V) matmul, lane-dense V tiles,
    #    written batch-major directly.  Only the small E-sized tensor is
    #    transposed in plain JAX (scales with E, not V).
    final_bte = jnp.transpose(final_tbe, (1, 0, 2)).reshape(B * T, E)
    logits = _matmul_bias(final_bte, w_v, params["b_v"])              # (B*T, V)
    return logits.reshape(B, T, V)


# ---------------------------------------------------------------------------
# Pure-JAX reference (mirrors the kernels' bf16-MXU / f32-accumulate numerics)
# ---------------------------------------------------------------------------

def _reference_forward(helper, emb_table, params):
    bf = jnp.bfloat16
    H = params["w_hh"].shape[-1]
    x = jnp.take(emb_table, helper.T, axis=0).astype(bf)              # (T, B, E)
    w_ih = params["w_ih"].astype(bf)
    w_hh = params["w_hh"].astype(bf)
    w_c = params["w_c"].astype(bf)
    w_v = params["w_v"].astype(bf)

    def step(h, x_t):
        hb = h.astype(bf)

        def gate(g):
            gi = jnp.dot(x_t, w_ih[g],
                         preferred_element_type=jnp.float32) + params["b_ih"][g]
            gh = jnp.dot(hb, w_hh[g],
                         preferred_element_type=jnp.float32) + params["b_hh"][g]
            return gi, gh

        gi_r, gh_r = gate(0)
        gi_z, gh_z = gate(1)
        gi_n, gh_n = gate(2)
        r = jax.nn.sigmoid(gi_r + gh_r)
        z = jax.nn.sigmoid(gi_z + gh_z)
        n = jnp.tanh(gi_n + r * gh_n)
        h_new = (1.0 - z) * n + z * h
        final = jnp.tanh(jnp.dot(h_new.astype(bf), w_c,
                                 preferred_element_type=jnp.float32) + params["b_c"])
        logit = jnp.dot(final.astype(bf), w_v,
                        preferred_element_type=jnp.float32) + params["b_v"]
        return h_new, logit

    h0 = jnp.zeros((helper.shape[0], H), jnp.float32)
    _, out = lax.scan(step, h0, x)                                    # (T, B, V)
    return jnp.transpose(out, (1, 0, 2))


if __name__ == "__main__":
    # Small, deterministic config consistent with the module's __init__.
    VOC_SIZE, EMB_DIM, HID_DIM = 32, 16, 32
    B, T = 2, 8

    key = jax.random.PRNGKey(0)
    ks = jax.random.split(key, 10)

    def u(k, shape, scale=0.1):
        return jax.random.uniform(k, shape, jnp.float32, -scale, scale)

    emb_table = u(ks[0], (VOC_SIZE, EMB_DIM))
    params = {
        # GRU weights in per-gate layout [r, z, n]:
        #   PyTorch weight_ih_l0 (3H, E) -> w_ih (3, E, H) (split + transposed)
        #   PyTorch weight_hh_l0 (3H, H) -> w_hh (3, H, H)
        "w_ih": u(ks[1], (3, EMB_DIM, HID_DIM)),
        "b_ih": u(ks[2], (3, 1, HID_DIM)),
        "w_hh": u(ks[3], (3, HID_DIM, HID_DIM)),
        "b_hh": u(ks[4], (3, 1, HID_DIM)),
        # W_c: Linear(hid_dim -> emb_dim), pre-transposed.
        "w_c": u(ks[5], (HID_DIM, EMB_DIM)),
        "b_c": u(ks[6], (1, EMB_DIM)),
        # ToVocab: Linear(emb_dim -> voc_size), pre-transposed (WEAtt_type='none').
        "w_v": u(ks[7], (EMB_DIM, VOC_SIZE)),
        "b_v": u(ks[8], (1, VOC_SIZE)),
    }
    # TODO(synk): beam-search / greedy decode branches (data-dependent Python
    # control flow, topk over python lists) are not expressed as Pallas kernels;
    # only the training / test_lm teacher-forced path is implemented.  toInit /
    # latent_vector / init_states are unused on this path (h_0=None, dropout=0).

    helper = jax.random.randint(ks[9], (B, T), 0, VOC_SIZE, dtype=jnp.int32)

    logits = decoder_forward(helper, emb_table, params)
    jax.block_until_ready(logits)

    ref = _reference_forward(helper, emb_table, params)
    assert logits.shape == (B, T, VOC_SIZE), logits.shape
    assert jnp.allclose(logits, ref, atol=2e-3, rtol=2e-2), (
        "mismatch vs reference, max abs err = %e"
        % float(jnp.max(jnp.abs(logits - ref))))

    print("KERNEL_OK")
</pallas_src>

<mosaic_0001>
module attributes {stable_mosaic.version = 11 : i64} {
  func.func @_mm_bias_kernel(%arg0: i32, %arg1: i32, %arg2: memref<16x16xf32, #tpu.memory_space<vmem>>, %arg3: memref<16x32xbf16, #tpu.memory_space<vmem>>, %arg4: memref<1x32xf32, #tpu.memory_space<vmem>>, %arg5: memref<16x32xf32, #tpu.memory_space<vmem>>) attributes {dimension_semantics = [#tpu.dimension_semantics<parallel>, #tpu.dimension_semantics<parallel>], iteration_bounds = array<i64: 1, 1>, scalar_prefetch = 0 : i64, scratch_operands = 0 : i64, tpu.core_type = #tpu.core_type<tc>, window_params = [{transform_indices = @transform_0, window_bounds = array<i64: 16, 16>}, {transform_indices = @transform_1, window_bounds = array<i64: 16, 32>}, {transform_indices = @transform_2, window_bounds = array<i64: 1, 32>}, {transform_indices = @transform_3, window_bounds = array<i64: 16, 32>}]} {
    %c0 = arith.constant 0 : index
    %c0_0 = arith.constant 0 : index
    %0 = vector.load %arg2[%c0, %c0_0] : memref<16x16xf32, #tpu.memory_space<vmem>>, vector<16x16xf32>
    %1 = arith.truncf %0 : vector<16x16xf32> to vector<16x16xbf16>
    %c0_1 = arith.constant 0 : index
    %c0_2 = arith.constant 0 : index
    %2 = vector.load %arg3[%c0_1, %c0_2] : memref<16x32xbf16, #tpu.memory_space<vmem>>, vector<16x32xbf16>
    %cst = arith.constant dense<0.000000e+00> : vector<16x32xf32>
    %3 = tpu.matmul %1, %2, %cst {dimension_numbers = #tpu.dot_dimension_numbers<[1], [0], [0], [1], [0, 0, 1, 1], [], []>} : vector<16x16xbf16>, vector<16x32xbf16>, vector<16x32xf32> -> vector<16x32xf32>
    %c0_3 = arith.constant 0 : index
    %c0_4 = arith.constant 0 : index
    %4 = vector.load %arg4[%c0_3, %c0_4] : memref<1x32xf32, #tpu.memory_space<vmem>>, vector<1x32xf32>
    %5 = vector.broadcast %4 : vector<1x32xf32> to vector<16x32xf32>
    %6 = arith.addf %3, %5 : vector<16x32xf32>
    %c0_5 = arith.constant 0 : index
    %c0_6 = arith.constant 0 : index
    %7 = vector.load %arg5[%c0_5, %c0_6] : memref<16x32xf32, #tpu.memory_space<vmem>>, vector<16x32xf32>
    tpu.vector_store %arg5[%c0_5, %c0_6], %6 {strides = array<i32>} : memref<16x32xf32, #tpu.memory_space<vmem>>, vector<16x32xf32>,
    return
  }
  func.func @transform_0(%arg0: i32, %arg1: i32) -> (i32, i32) {
    %c0_i32 = arith.constant 0 : i32
    %c0_i32_0 = arith.constant 0 : i32
    return %arg0, %c0_i32 : i32, i32
  }
  func.func @transform_1(%arg0: i32, %arg1: i32) -> (i32, i32) {
    %c0_i32 = arith.constant 0 : i32
    %c0_i32_0 = arith.constant 0 : i32
    return %c0_i32, %arg1 : i32, i32
  }
  func.func @transform_2(%arg0: i32, %arg1: i32) -> (i32, i32) {
    %c0_i32 = arith.constant 0 : i32
    %c0_i32_0 = arith.constant 0 : i32
    return %c0_i32, %arg1 : i32, i32
  }
  func.func @transform_3(%arg0: i32, %arg1: i32) -> (i32, i32) {
    %c0_i32 = arith.constant 0 : i32
    return %arg0, %arg1 : i32, i32
  }
}

module attributes {stable_mosaic.version = 11 : i64} {
  func.func @_in_proj_kernel(%arg0: i32, %arg1: i32, %arg2: memref<16x16xbf16, #tpu.memory_space<vmem>>, %arg3: memref<1x16x32xbf16, #tpu.memory_space<vmem>>, %arg4: memref<1x1x32xf32, #tpu.memory_space<vmem>>, %arg5: memref<1x16x32xf32, #tpu.memory_space<vmem>>) attributes {dimension_semantics = [#tpu.dimension_semantics<parallel>, #tpu.dimension_semantics<parallel>], iteration_bounds = array<i64: 1, 3>, scalar_prefetch = 0 : i64, scratch_operands = 0 : i64, tpu.core_type = #tpu.core_type<tc>, window_params = [{transform_indices = @transform_0, window_bounds = array<i64: 16, 16>}, {transform_indices = @transform_1, window_bounds = array<i64: 1, 16, 32>}, {transform_indices = @transform_2, window_bounds = array<i64: 1, 1, 32>}, {transform_indices = @transform_3, window_bounds = array<i64: 1, 16, 32>}]} {
    %c0 = arith.constant 0 : index
    %c0_0 = arith.constant 0 : index
    %0 = vector.load %arg2[%c0, %c0_0] : memref<16x16xbf16, #tpu.memory_space<vmem>>, vector<16x16xbf16>
    %c0_1 = arith.constant 0 : index
    %c0_2 = arith.constant 0 : index
    %c0_3 = arith.constant 0 : index
    %1 = vector.load %arg3[%c0_1, %c0_2, %c0_3] : memref<1x16x32xbf16, #tpu.memory_space<vmem>>, vector<1x16x32xbf16>
    %2 = vector.shape_cast %1 : vector<1x16x32xbf16> to vector<16x32xbf16>
    %cst = arith.constant dense<0.000000e+00> : vector<16x32xf32>
    %3 = tpu.matmul %0, %2, %cst {dimension_numbers = #tpu.dot_dimension_numbers<[1], [0], [0], [1], [0, 0, 1, 1], [], []>} : vector<16x16xbf16>, vector<16x32xbf16>, vector<16x32xf32> -> vector<16x32xf32>
    %c0_4 = arith.constant 0 : index
    %c0_5 = arith.constant 0 : index
    %c0_6 = arith.constant 0 : index
    %4 = vector.load %arg4[%c0_4, %c0_5, %c0_6] : memref<1x1x32xf32, #tpu.memory_space<vmem>>, vector<1x1x32xf32>
    %5 = vector.shape_cast %4 : vector<1x1x32xf32> to vector<1x32xf32>
    %6 = vector.broadcast %5 : vector<1x32xf32> to vector<16x32xf32>
    %7 = arith.addf %3, %6 : vector<16x32xf32>
    %c0_7 = arith.constant 0 : index
    %c0_8 = arith.constant 0 : index
    %c0_9 = arith.constant 0 : index
    %8 = vector.load %arg5[%c0_7, %c0_8, %c0_9] : memref<1x16x32xf32, #tpu.memory_space<vmem>>, vector<1x16x32xf32>
    %9 = vector.shape_cast %8 : vector<1x16x32xf32> to vector<16x32xf32>
    %10 = vector.shape_cast %7 : vector<16x32xf32> to vector<1x16x32xf32>
    tpu.vector_store %arg5[%c0_7, %c0_8, %c0_9], %10 {strides = array<i32>} : memref<1x16x32xf32, #tpu.memory_space<vmem>>, vector<1x16x32xf32>,
    return
  }
  func.func @transform_0(%arg0: i32, %arg1: i32) -> (i32, i32) {
    %c0_i32 = arith.constant 0 : i32
    %c0_i32_0 = arith.constant 0 : i32
    return %arg0, %c0_i32 : i32, i32
  }
  func.func @transform_1(%arg0: i32, %arg1: i32) -> (i32, i32, i32) {
    %c0_i32 = arith.constant 0 : i32
    %c0_i32_0 = arith.constant 0 : i32
    %c0_i32_1 = arith.constant 0 : i32
    return %arg1, %c0_i32, %c0_i32_0 : i32, i32, i32
  }
  func.func @transform_2(%arg0: i32, %arg1: i32) -> (i32, i32, i32) {
    %c0_i32 = arith.constant 0 : i32
    %c0_i32_0 = arith.constant 0 : i32
    %c0_i32_1 = arith.constant 0 : i32
    return %arg1, %c0_i32, %c0_i32_0 : i32, i32, i32
  }
  func.func @transform_3(%arg0: i32, %arg1: i32) -> (i32, i32, i32) {
    %c0_i32 = arith.constant 0 : i32
    %c0_i32_0 = arith.constant 0 : i32
    return %arg1, %arg0, %c0_i32 : i32, i32, i32
  }
}

module attributes {stable_mosaic.version = 11 : i64} {
  func.func @_gru_kernel(%arg0: i32, %arg1: memref<3x8x2x32xf32, #tpu.memory_space<vmem>>, %arg2: memref<3x32x32xbf16, #tpu.memory_space<vmem>>, %arg3: memref<3x1x32xf32, #tpu.memory_space<vmem>>, %arg4: memref<32x16xbf16, #tpu.memory_space<vmem>>, %arg5: memref<1x16xf32, #tpu.memory_space<vmem>>, %arg6: memref<8x2x16xf32, #tpu.memory_space<vmem>>, %arg7: memref<2x32xf32, #tpu.memory_space<vmem>>) attributes {dimension_semantics = [#tpu.dimension_semantics<arbitrary>], iteration_bounds = array<i64: 1>, scalar_prefetch = 0 : i64, scratch_operands = 1 : i64, tpu.core_type = #tpu.core_type<tc>, window_params = [{transform_indices = @transform_0, window_bounds = array<i64: 3, 8, 2, 32>}, {pipeline_mode = #tpu.pipeline_mode<synchronous>, transform_indices = @transform_1, window_bounds = array<i64: 3, 32, 32>}, {pipeline_mode = #tpu.pipeline_mode<synchronous>, transform_indices = @transform_2, window_bounds = array<i64: 3, 1, 32>}, {pipeline_mode = #tpu.pipeline_mode<synchronous>, transform_indices = @transform_3, window_bounds = array<i64: 32, 16>}, {pipeline_mode = #tpu.pipeline_mode<synchronous>, transform_indices = @transform_4, window_bounds = array<i64: 1, 16>}, {transform_indices = @transform_5, window_bounds = array<i64: 8, 2, 16>}]} {
    %c0_i32 = arith.constant 0 : i32
    %0 = arith.cmpi eq, %arg0, %c0_i32 : i32
    %1 = arith.extui %0 : i1 to i32
    %c0_i32_0 = arith.constant 0 : i32
    %2 = arith.cmpi ne, %1, %c0_i32_0 : i32
    scf.if %2 {
      %cst_168 = arith.constant 0.000000e+00 : f32
      %403 = vector.broadcast %cst_168 : f32 to vector<2x32xf32>
      %c0_169 = arith.constant 0 : index
      %c0_170 = arith.constant 0 : index
      %404 = vector.load %arg7[%c0_169, %c0_170] : memref<2x32xf32, #tpu.memory_space<vmem>>, vector<2x32xf32>
      tpu.vector_store %arg7[%c0_169, %c0_170], %403 {strides = array<i32>} : memref<2x32xf32, #tpu.memory_space<vmem>>, vector<2x32xf32>,
    } else {
    }
    %c0 = arith.constant 0 : index
    %c0_1 = arith.constant 0 : index
    %c0_2 = arith.constant 0 : index
    %3 = vector.load %arg2[%c0, %c0_1, %c0_2] : memref<3x32x32xbf16, #tpu.memory_space<vmem>>, vector<1x32x32xbf16>
    %4 = vector.shape_cast %3 : vector<1x32x32xbf16> to vector<32x32xbf16>
    %c1 = arith.constant 1 : index
    %c0_3 = arith.constant 0 : index
    %c0_4 = arith.constant 0 : index
    %5 = vector.load %arg2[%c1, %c0_3, %c0_4] : memref<3x32x32xbf16, #tpu.memory_space<vmem>>, vector<1x32x32xbf16>
    %6 = vector.shape_cast %5 : vector<1x32x32xbf16> to vector<32x32xbf16>
    %c2 = arith.constant 2 : index
    %c0_5 = arith.constant 0 : index
    %c0_6 = arith.constant 0 : index
    %7 = vector.load %arg2[%c2, %c0_5, %c0_6] : memref<3x32x32xbf16, #tpu.memory_space<vmem>>, vector<1x32x32xbf16>
    %8 = vector.shape_cast %7 : vector<1x32x32xbf16> to vector<32x32xbf16>
    %c0_7 = arith.constant 0 : index
    %c0_8 = arith.constant 0 : index
    %c0_9 = arith.constant 0 : index
    %9 = vector.load %arg3[%c0_7, %c0_8, %c0_9] : memref<3x1x32xf32, #tpu.memory_space<vmem>>, vector<1x1x32xf32>
    %10 = vector.shape_cast %9 : vector<1x1x32xf32> to vector<1x32xf32>
    %c1_10 = arith.constant 1 : index
    %c0_11 = arith.constant 0 : index
    %c0_12 = arith.constant 0 : index
    %11 = vector.load %arg3[%c1_10, %c0_11, %c0_12] : memref<3x1x32xf32, #tpu.memory_space<vmem>>, vector<1x1x32xf32>
    %12 = vector.shape_cast %11 : vector<1x1x32xf32> to vector<1x32xf32>
    %c2_13 = arith.constant 2 : index
    %c0_14 = arith.constant 0 : index
    %c0_15 = arith.constant 0 : index
    %13 = vector.load %arg3[%c2_13, %c0_14, %c0_15] : memref<3x1x32xf32, #tpu.memory_space<vmem>>, vector<1x1x32xf32>
    %14 = vector.shape_cast %13 : vector<1x1x32xf32> to vector<1x32xf32>
    %c0_16 = arith.constant 0 : index
    %c0_17 = arith.constant 0 : index
    %15 = vector.load %arg4[%c0_16, %c0_17] : memref<32x16xbf16, #tpu.memory_space<vmem>>, vector<32x16xbf16>
    %c0_18 = arith.constant 0 : index
    %c0_19 = arith.constant 0 : index
    %16 = vector.load %arg5[%c0_18, %c0_19] : memref<1x16xf32, #tpu.memory_space<vmem>>, vector<1x16xf32>
    %c0_20 = arith.constant 0 : index
    %c0_21 = arith.constant 0 : index
    %17 = vector.load %arg7[%c0_20, %c0_21] : memref<2x32xf32, #tpu.memory_space<vmem>>, vector<2x32xf32>
    %c0_i32_22 = arith.constant 0 : i32
    %18 = arith.truncf %17 : vector<2x32xf32> to vector<2x32xbf16>
    %cst = arith.constant dense<0.000000e+00> : vector<2x32xf32>
    %19 = tpu.matmul %18, %4, %cst {dimension_numbers = #tpu.dot_dimension_numbers<[1], [0], [0], [1], [0, 0, 1, 1], [], []>} : vector<2x32xbf16>, vector<32x32xbf16>, vector<2x32xf32> -> vector<2x32xf32>
    %20 = vector.broadcast %10 : vector<1x32xf32> to vector<2x32xf32>
    %21 = arith.addf %19, %20 : vector<2x32xf32>
    %cst_23 = arith.constant dense<0.000000e+00> : vector<2x32xf32>
    %22 = tpu.matmul %18, %6, %cst_23 {dimension_numbers = #tpu.dot_dimension_numbers<[1], [0], [0], [1], [0, 0, 1, 1], [], []>} : vector<2x32xbf16>, vector<32x32xbf16>, vector<2x32xf32> -> vector<2x32xf32>
    %23 = vector.broadcast %12 : vector<1x32xf32> to vector<2x32xf32>
    %24 = arith.addf %22, %23 : vector<2x32xf32>
    %cst_24 = arith.constant dense<0.000000e+00> : vector<2x32xf32>
    %25 = tpu.matmul %18, %8, %cst_24 {dimension_numbers = #tpu.dot_dimension_numbers<[1], [0], [0], [1], [0, 0, 1, 1], [], []>} : vector<2x32xbf16>, vector<32x32xbf16>, vector<2x32xf32> -> vector<2x32xf32>
    %26 = vector.broadcast %14 : vector<1x32xf32> to vector<2x32xf32>
    %27 = arith.addf %25, %26 : vector<2x32xf32>
    %c0_25 = arith.constant 0 : index
    %28 = arith.index_cast %c0_i32_22 : i32 to index
    %c0_26 = arith.constant 0 : index
    %c0_27 = arith.constant 0 : index
    %29 = vector.load %arg1[%c0_25, %28, %c0_26, %c0_27] : memref<3x8x2x32xf32, #tpu.memory_space<vmem>>, vector<1x1x2x32xf32>
    %30 = vector.shape_cast %29 : vector<1x1x2x32xf32> to vector<2x32xf32>
    %31 = arith.addf %30, %21 : vector<2x32xf32>
    %32 = arith.negf %31 : vector<2x32xf32>
    %33 = math.exp %32 : vector<2x32xf32>
    %cst_28 = arith.constant 1.000000e+00 : f32
    %34 = vector.broadcast %cst_28 : f32 to vector<2x32xf32>
    %35 = arith.addf %34, %33 : vector<2x32xf32>
    %36 = arith.divf %34, %35 : vector<2x32xf32>
    %c1_29 = arith.constant 1 : index
    %37 = arith.index_cast %c0_i32_22 : i32 to index
    %c0_30 = arith.constant 0 : index
    %c0_31 = arith.constant 0 : index
    %38 = vector.load %arg1[%c1_29, %37, %c0_30, %c0_31] : memref<3x8x2x32xf32, #tpu.memory_space<vmem>>, vector<1x1x2x32xf32>
    %39 = vector.shape_cast %38 : vector<1x1x2x32xf32> to vector<2x32xf32>
    %40 = arith.addf %39, %24 : vector<2x32xf32>
    %41 = arith.negf %40 : vector<2x32xf32>
    %42 = math.exp %41 : vector<2x32xf32>
    %cst_32 = arith.constant 1.000000e+00 : f32
    %43 = vector.broadcast %cst_32 : f32 to vector<2x32xf32>
    %44 = arith.addf %43, %42 : vector<2x32xf32>
    %45 = arith.divf %43, %44 : vector<2x32xf32>
    %c2_33 = arith.constant 2 : index
    %46 = arith.index_cast %c0_i32_22 : i32 to index
    %c0_34 = arith.constant 0 : index
    %c0_35 = arith.constant 0 : index
    %47 = vector.load %arg1[%c2_33, %46, %c0_34, %c0_35] : memref<3x8x2x32xf32, #tpu.memory_space<vmem>>, vector<1x1x2x32xf32>
    %48 = vector.shape_cast %47 : vector<1x1x2x32xf32> to vector<2x32xf32>
    %49 = arith.mulf %36, %27 : vector<2x32xf32>
    %50 = arith.addf %48, %49 : vector<2x32xf32>
    %51 = math.tanh %50 : vector<2x32xf32>
    %cst_36 = arith.constant 1.000000e+00 : f32
    %52 = vector.broadcast %cst_36 : f32 to vector<2x32xf32>
    %53 = arith.subf %52, %45 : vector<2x32xf32>
    %54 = arith.mulf %53, %51 : vector<2x32xf32>
    %55 = arith.mulf %45, %17 : vector<2x32xf32>
    %56 = arith.addf %54, %55 : vector<2x32xf32>
    %57 = arith.truncf %56 : vector<2x32xf32> to vector<2x32xbf16>
    %cst_37 = arith.constant dense<0.000000e+00> : vector<2x16xf32>
    %58 = tpu.matmul %57, %15, %cst_37 {dimension_numbers = #tpu.dot_dimension_numbers<[1], [0], [0], [1], [0, 0, 1, 1], [], []>} : vector<2x32xbf16>, vector<32x16xbf16>, vector<2x16xf32> -> vector<2x16xf32>
    %59 = vector.broadcast %16 : vector<1x16xf32> to vector<2x16xf32>
    %60 = arith.addf %58, %59 : vector<2x16xf32>
    %61 = math.tanh %60 : vector<2x16xf32>
    %62 = arith.index_cast %c0_i32_22 : i32 to index
    %c0_38 = arith.constant 0 : index
    %c0_39 = arith.constant 0 : index
    %63 = vector.load %arg6[%62, %c0_38, %c0_39] : memref<8x2x16xf32, #tpu.memory_space<vmem>>, vector<1x2x16xf32>
    %64 = vector.shape_cast %63 : vector<1x2x16xf32> to vector<2x16xf32>
    %65 = vector.shape_cast %61 : vector<2x16xf32> to vector<1x2x16xf32>
    tpu.vector_store %arg6[%62, %c0_38, %c0_39], %65 {strides = array<i32>} : memref<8x2x16xf32, #tpu.memory_space<vmem>>, vector<1x2x16xf32>,
    %c1_i32 = arith.constant 1 : i32
    %66 = arith.truncf %56 : vector<2x32xf32> to vector<2x32xbf16>
    %cst_40 = arith.constant dense<0.000000e+00> : vector<2x32xf32>
    %67 = tpu.matmul %66, %4, %cst_40 {dimension_numbers = #tpu.dot_dimension_numbers<[1], [0], [0], [1], [0, 0, 1, 1], [], []>} : vector<2x32xbf16>, vector<32x32xbf16>, vector<2x32xf32> -> vector<2x32xf32>
    %68 = vector.broadcast %10 : vector<1x32xf32> to vector<2x32xf32>
    %69 = arith.addf %67, %68 : vector<2x32xf32>
    %cst_41 = arith.constant dense<0.000000e+00> : vector<2x32xf32>
    %70 = tpu.matmul %66, %6, %cst_41 {dimension_numbers = #tpu.dot_dimension_numbers<[1], [0], [0], [1], [0, 0, 1, 1], [], []>} : vector<2x32xbf16>, vector<32x32xbf16>, vector<2x32xf32> -> vector<2x32xf32>
    %71 = vector.broadcast %12 : vector<1x32xf32> to vector<2x32xf32>
    %72 = arith.addf %70, %71 : vector<2x32xf32>
    %cst_42 = arith.constant dense<0.000000e+00> : vector<2x32xf32>
    %73 = tpu.matmul %66, %8, %cst_42 {dimension_numbers = #tpu.dot_dimension_numbers<[1], [0], [0], [1], [0, 0, 1, 1], [], []>} : vector<2x32xbf16>, vector<32x32xbf16>, vector<2x32xf32> -> vector<2x32xf32>
    %74 = vector.broadcast %14 : vector<1x32xf32> to vector<2x32xf32>
    %75 = arith.addf %73, %74 : vector<2x32xf32>
    %c0_43 = arith.constant 0 : index
    %76 = arith.index_cast %c1_i32 : i32 to index
    %c0_44 = arith.constant 0 : index
    %c0_45 = arith.constant 0 : index
    %77 = vector.load %arg1[%c0_43, %76, %c0_44, %c0_45] : memref<3x8x2x32xf32, #tpu.memory_space<vmem>>, vector<1x1x2x32xf32>
    %78 = vector.shape_cast %77 : vector<1x1x2x32xf32> to vector<2x32xf32>
    %79 = arith.addf %78, %69 : vector<2x32xf32>
    %80 = arith.negf %79 : vector<2x32xf32>
    %81 = math.exp %80 : vector<2x32xf32>
    %cst_46 = arith.constant 1.000000e+00 : f32
    %82 = vector.broadcast %cst_46 : f32 to vector<2x32xf32>
    %83 = arith.addf %82, %81 : vector<2x32xf32>
    %84 = arith.divf %82, %83 : vector<2x32xf32>
    %c1_47 = arith.constant 1 : index
    %85 = arith.index_cast %c1_i32 : i32 to index
    %c0_48 = arith.constant 0 : index
    %c0_49 = arith.constant 0 : index
    %86 = vector.load %arg1[%c1_47, %85, %c0_48, %c0_49] : memref<3x8x2x32xf32, #tpu.memory_space<vmem>>, vector<1x1x2x32xf32>
    %87 = vector.shape_cast %86 : vector<1x1x2x32xf32> to vector<2x32xf32>
    %88 = arith.addf %87, %72 : vector<2x32xf32>
    %89 = arith.negf %88 : vector<2x32xf32>
    %90 = math.exp %89 : vector<2x32xf32>
    %cst_50 = arith.constant 1.000000e+00 : f32
    %91 = vector.broadcast %cst_50 : f32 to vector<2x32xf32>
    %92 = arith.addf %91, %90 : vector<2x32xf32>
    %93 = arith.divf %91, %92 : vector<2x32xf32>
    %c2_51 = arith.constant 2 : index
    %94 = arith.index_cast %c1_i32 : i32 to index
    %c0_52 = arith.constant 0 : index
    %c0_53 = arith.constant 0 : index
    %95 = vector.load %arg1[%c2_51, %94, %c0_52, %c0_53] : memref<3x8x2x32xf32, #tpu.memory_space<vmem>>, vector<1x1x2x32xf32>
    %96 = vector.shape_cast %95 : vector<1x1x2x32xf32> to vector<2x32xf32>
    %97 = arith.mulf %84, %75 : vector<2x32xf32>
    %98 = arith.addf %96, %97 : vector<2x32xf32>
    %99 = math.tanh %98 : vector<2x32xf32>
    %cst_54 = arith.constant 1.000000e+00 : f32
    %100 = vector.broadcast %cst_54 : f32 to vector<2x32xf32>
    %101 = arith.subf %100, %93 : vector<2x32xf32>
    %102 = arith.mulf %101, %99 : vector<2x32xf32>
    %103 = arith.mulf %93, %56 : vector<2x32xf32>
    %104 = arith.addf %102, %103 : vector<2x32xf32>
    %105 = arith.truncf %104 : vector<2x32xf32> to vector<2x32xbf16>
    %cst_55 = arith.constant dense<0.000000e+00> : vector<2x16xf32>
    %106 = tpu.matmul %105, %15, %cst_55 {dimension_numbers = #tpu.dot_dimension_numbers<[1], [0], [0], [1], [0, 0, 1, 1], [], []>} : vector<2x32xbf16>, vector<32x16xbf16>, vector<2x16xf32> -> vector<2x16xf32>
    %107 = vector.broadcast %16 : vector<1x16xf32> to vector<2x16xf32>
    %108 = arith.addf %106, %107 : vector<2x16xf32>
    %109 = math.tanh %108 : vector<2x16xf32>
    %110 = arith.index_cast %c1_i32 : i32 to index
    %c0_56 = arith.constant 0 : index
    %c0_57 = arith.constant 0 : index
    %111 = vector.load %arg6[%110, %c0_56, %c0_57] : memref<8x2x16xf32, #tpu.memory_space<vmem>>, vector<1x2x16xf32>
    %112 = vector.shape_cast %111 : vector<1x2x16xf32> to vector<2x16xf32>
    %113 = vector.shape_cast %109 : vector<2x16xf32> to vector<1x2x16xf32>
    tpu.vector_store %arg6[%110, %c0_56, %c0_57], %113 {strides = array<i32>} : memref<8x2x16xf32, #tpu.memory_space<vmem>>, vector<1x2x16xf32>,
    %c2_i32 = arith.constant 2 : i32
    %114 = arith.truncf %104 : vector<2x32xf32> to vector<2x32xbf16>
    %cst_58 = arith.constant dense<0.000000e+00> : vector<2x32xf32>
    %115 = tpu.matmul %114, %4, %cst_58 {dimension_numbers = #tpu.dot_dimension_numbers<[1], [0], [0], [1], [0, 0, 1, 1], [], []>} : vector<2x32xbf16>, vector<32x32xbf16>, vector<2x32xf32> -> vector<2x32xf32>
    %116 = vector.broadcast %10 : vector<1x32xf32> to vector<2x32xf32>
    %117 = arith.addf %115, %116 : vector<2x32xf32>
    %cst_59 = arith.constant dense<0.000000e+00> : vector<2x32xf32>
    %118 = tpu.matmul %114, %6, %cst_59 {dimension_numbers = #tpu.dot_dimension_numbers<[1], [0], [0], [1], [0, 0, 1, 1], [], []>} : vector<2x32xbf16>, vector<32x32xbf16>, vector<2x32xf32> -> vector<2x32xf32>
    %119 = vector.broadcast %12 : vector<1x32xf32> to vector<2x32xf32>
    %120 = arith.addf %118, %119 : vector<2x32xf32>
    %cst_60 = arith.constant dense<0.000000e+00> : vector<2x32xf32>
    %121 = tpu.matmul %114, %8, %cst_60 {dimension_numbers = #tpu.dot_dimension_numbers<[1], [0], [0], [1], [0, 0, 1, 1], [], []>} : vector<2x32xbf16>, vector<32x32xbf16>, vector<2x32xf32> -> vector<2x32xf32>
    %122 = vector.broadcast %14 : vector<1x32xf32> to vector<2x32xf32>
    %123 = arith.addf %121, %122 : vector<2x32xf32>
    %c0_61 = arith.constant 0 : index
    %124 = arith.index_cast %c2_i32 : i32 to index
    %c0_62 = arith.constant 0 : index
    %c0_63 = arith.constant 0 : index
    %125 = vector.load %arg1[%c0_61, %124, %c0_62, %c0_63] : memref<3x8x2x32xf32, #tpu.memory_space<vmem>>, vector<1x1x2x32xf32>
    %126 = vector.shape_cast %125 : vector<1x1x2x32xf32> to vector<2x32xf32>
    %127 = arith.addf %126, %117 : vector<2x32xf32>
    %128 = arith.negf %127 : vector<2x32xf32>
    %129 = math.exp %128 : vector<2x32xf32>
    %cst_64 = arith.constant 1.000000e+00 : f32
    %130 = vector.broadcast %cst_64 : f32 to vector<2x32xf32>
    %131 = arith.addf %130, %129 : vector<2x32xf32>
    %132 = arith.divf %130, %131 : vector<2x32xf32>
    %c1_65 = arith.constant 1 : index
    %133 = arith.index_cast %c2_i32 : i32 to index
    %c0_66 = arith.constant 0 : index
    %c0_67 = arith.constant 0 : index
    %134 = vector.load %arg1[%c1_65, %133, %c0_66, %c0_67] : memref<3x8x2x32xf32, #tpu.memory_space<vmem>>, vector<1x1x2x32xf32>
    %135 = vector.shape_cast %134 : vector<1x1x2x32xf32> to vector<2x32xf32>
    %136 = arith.addf %135, %120 : vector<2x32xf32>
    %137 = arith.negf %136 : vector<2x32xf32>
    %138 = math.exp %137 : vector<2x32xf32>
    %cst_68 = arith.constant 1.000000e+00 : f32
    %139 = vector.broadcast %cst_68 : f32 to vector<2x32xf32>
    %140 = arith.addf %139, %138 : vector<2x32xf32>
    %141 = arith.divf %139, %140 : vector<2x32xf32>
    %c2_69 = arith.constant 2 : index
    %142 = arith.index_cast %c2_i32 : i32 to index
    %c0_70 = arith.constant 0 : index
    %c0_71 = arith.constant 0 : index
    %143 = vector.load %arg1[%c2_69, %142, %c0_70, %c0_71] : memref<3x8x2x32xf32, #tpu.memory_space<vmem>>, vector<1x1x2x32xf32>
    %144 = vector.shape_cast %143 : vector<1x1x2x32xf32> to vector<2x32xf32>
    %145 = arith.mulf %132, %123 : vector<2x32xf32>
    %146 = arith.addf %144, %145 : vector<2x32xf32>
    %147 = math.tanh %146 : vector<2x32xf32>
    %cst_72 = arith.constant 1.000000e+00 : f32
    %148 = vector.broadcast %cst_72 : f32 to vector<2x32xf32>
    %149 = arith.subf %148, %141 : vector<2x32xf32>
    %150 = arith.mulf %149, %147 : vector<2x32xf32>
    %151 = arith.mulf %141, %104 : vector<2x32xf32>
    %152 = arith.addf %150, %151 : vector<2x32xf32>
    %153 = arith.truncf %152 : vector<2x32xf32> to vector<2x32xbf16>
    %cst_73 = arith.constant dense<0.000000e+00> : vector<2x16xf32>
    %154 = tpu.matmul %153, %15, %cst_73 {dimension_numbers = #tpu.dot_dimension_numbers<[1], [0], [0], [1], [0, 0, 1, 1], [], []>} : vector<2x32xbf16>, vector<32x16xbf16>, vector<2x16xf32> -> vector<2x16xf32>
    %155 = vector.broadcast %16 : vector<1x16xf32> to vector<2x16xf32>
    %156 = arith.addf %154, %155 : vector<2x16xf32>
    %157 = math.tanh %156 : vector<2x16xf32>
    %158 = arith.index_cast %c2_i32 : i32 to index
    %c0_74 = arith.constant 0 : index
    %c0_75 = arith.constant 0 : index
    %159 = vector.load %arg6[%158, %c0_74, %c0_75] : memref<8x2x16xf32, #tpu.memory_space<vmem>>, vector<1x2x16xf32>
    %160 = vector.shape_cast %159 : vector<1x2x16xf32> to vector<2x16xf32>
    %161 = vector.shape_cast %157 : vector<2x16xf32> to vector<1x2x16xf32>
    tpu.vector_store %arg6[%158, %c0_74, %c0_75], %161 {strides = array<i32>} : memref<8x2x16xf32, #tpu.memory_space<vmem>>, vector<1x2x16xf32>,
    %c3_i32 = arith.constant 3 : i32
    %162 = arith.truncf %152 : vector<2x32xf32> to vector<2x32xbf16>
    %cst_76 = arith.constant dense<0.000000e+00> : vector<2x32xf32>
    %163 = tpu.matmul %162, %4, %cst_76 {dimension_numbers = #tpu.dot_dimension_numbers<[1], [0], [0], [1], [0, 0, 1, 1], [], []>} : vector<2x32xbf16>, vector<32x32xbf16>, vector<2x32xf32> -> vector<2x32xf32>
    %164 = vector.broadcast %10 : vector<1x32xf32> to vector<2x32xf32>
    %165 = arith.addf %163, %164 : vector<2x32xf32>
    %cst_77 = arith.constant dense<0.000000e+00> : vector<2x32xf32>
    %166 = tpu.matmul %162, %6, %cst_77 {dimension_numbers = #tpu.dot_dimension_numbers<[1], [0], [0], [1], [0, 0, 1, 1], [], []>} : vector<2x32xbf16>, vector<32x32xbf16>, vector<2x32xf32> -> vector<2x32xf32>
    %167 = vector.broadcast %12 : vector<1x32xf32> to vector<2x32xf32>
    %168 = arith.addf %166, %167 : vector<2x32xf32>
    %cst_78 = arith.constant dense<0.000000e+00> : vector<2x32xf32>
    %169 = tpu.matmul %162, %8, %cst_78 {dimension_numbers = #tpu.dot_dimension_numbers<[1], [0], [0], [1], [0, 0, 1, 1], [], []>} : vector<2x32xbf16>, vector<32x32xbf16>, vector<2x32xf32> -> vector<2x32xf32>
    %170 = vector.broadcast %14 : vector<1x32xf32> to vector<2x32xf32>
    %171 = arith.addf %169, %170 : vector<2x32xf32>
    %c0_79 = arith.constant 0 : index
    %172 = arith.index_cast %c3_i32 : i32 to index
    %c0_80 = arith.constant 0 : index
    %c0_81 = arith.constant 0 : index
    %173 = vector.load %arg1[%c0_79, %172, %c0_80, %c0_81] : memref<3x8x2x32xf32, #tpu.memory_space<vmem>>, vector<1x1x2x32xf32>
    %174 = vector.shape_cast %173 : vector<1x1x2x32xf32> to vector<2x32xf32>
    %175 = arith.addf %174, %165 : vector<2x32xf32>
    %176 = arith.negf %175 : vector<2x32xf32>
    %177 = math.exp %176 : vector<2x32xf32>
    %cst_82 = arith.constant 1.000000e+00 : f32
    %178 = vector.broadcast %cst_82 : f32 to vector<2x32xf32>
    %179 = arith.addf %178, %177 : vector<2x32xf32>
    %180 = arith.divf %178, %179 : vector<2x32xf32>
    %c1_83 = arith.constant 1 : index
    %181 = arith.index_cast %c3_i32 : i32 to index
    %c0_84 = arith.constant 0 : index
    %c0_85 = arith.constant 0 : index
    %182 = vector.load %arg1[%c1_83, %181, %c0_84, %c0_85] : memref<3x8x2x32xf32, #tpu.memory_space<vmem>>, vector<1x1x2x32xf32>
    %183 = vector.shape_cast %182 : vector<1x1x2x32xf32> to vector<2x32xf32>
    %184 = arith.addf %183, %168 : vector<2x32xf32>
    %185 = arith.negf %184 : vector<2x32xf32>
    %186 = math.exp %185 : vector<2x32xf32>
    %cst_86 = arith.constant 1.000000e+00 : f32
    %187 = vector.broadcast %cst_86 : f32 to vector<2x32xf32>
    %188 = arith.addf %187, %186 : vector<2x32xf32>
    %189 = arith.divf %187, %188 : vector<2x32xf32>
    %c2_87 = arith.constant 2 : index
    %190 = arith.index_cast %c3_i32 : i32 to index
    %c0_88 = arith.constant 0 : index
    %c0_89 = arith.constant 0 : index
    %191 = vector.load %arg1[%c2_87, %190, %c0_88, %c0_89] : memref<3x8x2x32xf32, #tpu.memory_space<vmem>>, vector<1x1x2x32xf32>
    %192 = vector.shape_cast %191 : vector<1x1x2x32xf32> to vector<2x32xf32>
    %193 = arith.mulf %180, %171 : vector<2x32xf32>
    %194 = arith.addf %192, %193 : vector<2x32xf32>
    %195 = math.tanh %194 : vector<2x32xf32>
    %cst_90 = arith.constant 1.000000e+00 : f32
    %196 = vector.broadcast %cst_90 : f32 to vector<2x32xf32>
    %197 = arith.subf %196, %189 : vector<2x32xf32>
    %198 = arith.mulf %197, %195 : vector<2x32xf32>
    %199 = arith.mulf %189, %152 : vector<2x32xf32>
    %200 = arith.addf %198, %199 : vector<2x32xf32>
    %201 = arith.truncf %200 : vector<2x32xf32> to vector<2x32xbf16>
    %cst_91 = arith.constant dense<0.000000e+00> : vector<2x16xf32>
    %202 = tpu.matmul %201, %15, %cst_91 {dimension_numbers = #tpu.dot_dimension_numbers<[1], [0], [0], [1], [0, 0, 1, 1], [], []>} : vector<2x32xbf16>, vector<32x16xbf16>, vector<2x16xf32> -> vector<2x16xf32>
    %203 = vector.broadcast %16 : vector<1x16xf32> to vector<2x16xf32>
    %204 = arith.addf %202, %203 : vector<2x16xf32>
    %205 = math.tanh %204 : vector<2x16xf32>
    %206 = arith.index_cast %c3_i32 : i32 to index
    %c0_92 = arith.constant 0 : index
    %c0_93 = arith.constant 0 : index
    %207 = vector.load %arg6[%206, %c0_92, %c0_93] : memref<8x2x16xf32, #tpu.memory_space<vmem>>, vector<1x2x16xf32>
    %208 = vector.shape_cast %207 : vector<1x2x16xf32> to vector<2x16xf32>
    %209 = vector.shape_cast %205 : vector<2x16xf32> to vector<1x2x16xf32>
    tpu.vector_store %arg6[%206, %c0_92, %c0_93], %209 {strides = array<i32>} : memref<8x2x16xf32, #tpu.memory_space<vmem>>, vector<1x2x16xf32>,
    %c4_i32 = arith.constant 4 : i32
    %210 = arith.truncf %200 : vector<2x32xf32> to vector<2x32xbf16>
    %cst_94 = arith.constant dense<0.000000e+00> : vector<2x32xf32>
    %211 = tpu.matmul %210, %4, %cst_94 {dimension_numbers = #tpu.dot_dimension_numbers<[1], [0], [0], [1], [0, 0, 1, 1], [], []>} : vector<2x32xbf16>, vector<32x32xbf16>, vector<2x32xf32> -> vector<2x32xf32>
    %212 = vector.broadcast %10 : vector<1x32xf32> to vector<2x32xf32>
    %213 = arith.addf %211, %212 : vector<2x32xf32>
    %cst_95 = arith.constant dense<0.000000e+00> : vector<2x32xf32>
    %214 = tpu.matmul %210, %6, %cst_95 {dimension_numbers = #tpu.dot_dimension_numbers<[1], [0], [0], [1], [0, 0, 1, 1], [], []>} : vector<2x32xbf16>, vector<32x32xbf16>, vector<2x32xf32> -> vector<2x32xf32>
    %215 = vector.broadcast %12 : vector<1x32xf32> to vector<2x32xf32>
    %216 = arith.addf %214, %215 : vector<2x32xf32>
    %cst_96 = arith.constant dense<0.000000e+00> : vector<2x32xf32>
    %217 = tpu.matmul %210, %8, %cst_96 {dimension_numbers = #tpu.dot_dimension_numbers<[1], [0], [0], [1], [0, 0, 1, 1], [], []>} : vector<2x32xbf16>, vector<32x32xbf16>, vector<2x32xf32> -> vector<2x32xf32>
    %218 = vector.broadcast %14 : vector<1x32xf32> to vector<2x32xf32>
    %219 = arith.addf %217, %218 : vector<2x32xf32>
    %c0_97 = arith.constant 0 : index
    %220 = arith.index_cast %c4_i32 : i32 to index
    %c0_98 = arith.constant 0 : index
    %c0_99 = arith.constant 0 : index
    %221 = vector.load %arg1[%c0_97, %220, %c0_98, %c0_99] : memref<3x8x2x32xf32, #tpu.memory_space<vmem>>, vector<1x1x2x32xf32>
    %222 = vector.shape_cast %221 : vector<1x1x2x32xf32> to vector<2x32xf32>
    %223 = arith.addf %222, %213 : vector<2x32xf32>
    %224 = arith.negf %223 : vector<2x32xf32>
    %225 = math.exp %224 : vector<2x32xf32>
    %cst_100 = arith.constant 1.000000e+00 : f32
    %226 = vector.broadcast %cst_100 : f32 to vector<2x32xf32>
    %227 = arith.addf %226, %225 : vector<2x32xf32>
    %228 = arith.divf %226, %227 : vector<2x32xf32>
    %c1_101 = arith.constant 1 : index
    %229 = arith.index_cast %c4_i32 : i32 to index
    %c0_102 = arith.constant 0 : index
    %c0_103 = arith.constant 0 : index
    %230 = vector.load %arg1[%c1_101, %229, %c0_102, %c0_103] : memref<3x8x2x32xf32, #tpu.memory_space<vmem>>, vector<1x1x2x32xf32>
    %231 = vector.shape_cast %230 : vector<1x1x2x32xf32> to vector<2x32xf32>
    %232 = arith.addf %231, %216 : vector<2x32xf32>
    %233 = arith.negf %232 : vector<2x32xf32>
    %234 = math.exp %233 : vector<2x32xf32>
    %cst_104 = arith.constant 1.000000e+00 : f32
    %235 = vector.broadcast %cst_104 : f32 to vector<2x32xf32>
    %236 = arith.addf %235, %234 : vector<2x32xf32>
    %237 = arith.divf %235, %236 : vector<2x32xf32>
    %c2_105 = arith.constant 2 : index
    %238 = arith.index_cast %c4_i32 : i32 to index
    %c0_106 = arith.constant 0 : index
    %c0_107 = arith.constant 0 : index
    %239 = vector.load %arg1[%c2_105, %238, %c0_106, %c0_107] : memref<3x8x2x32xf32, #tpu.memory_space<vmem>>, vector<1x1x2x32xf32>
    %240 = vector.shape_cast %239 : vector<1x1x2x32xf32> to vector<2x32xf32>
    %241 = arith.mulf %228, %219 : vector<2x32xf32>
    %242 = arith.addf %240, %241 : vector<2x32xf32>
    %243 = math.tanh %242 : vector<2x32xf32>
    %cst_108 = arith.constant 1.000000e+00 : f32
    %244 = vector.broadcast %cst_108 : f32 to vector<2x32xf32>
    %245 = arith.subf %244, %237 : vector<2x32xf32>
    %246 = arith.mulf %245, %243 : vector<2x32xf32>
    %247 = arith.mulf %237, %200 : vector<2x32xf32>
    %248 = arith.addf %246, %247 : vector<2x32xf32>
    %249 = arith.truncf %248 : vector<2x32xf32> to vector<2x32xbf16>
    %cst_109 = arith.constant dense<0.000000e+00> : vector<2x16xf32>
    %250 = tpu.matmul %249, %15, %cst_109 {dimension_numbers = #tpu.dot_dimension_numbers<[1], [0], [0], [1], [0, 0, 1, 1], [], []>} : vector<2x32xbf16>, vector<32x16xbf16>, vector<2x16xf32> -> vector<2x16xf32>
    %251 = vector.broadcast %16 : vector<1x16xf32> to vector<2x16xf32>
    %252 = arith.addf %250, %251 : vector<2x16xf32>
    %253 = math.tanh %252 : vector<2x16xf32>
    %254 = arith.index_cast %c4_i32 : i32 to index
    %c0_110 = arith.constant 0 : index
    %c0_111 = arith.constant 0 : index
    %255 = vector.load %arg6[%254, %c0_110, %c0_111] : memref<8x2x16xf32, #tpu.memory_space<vmem>>, vector<1x2x16xf32>
    %256 = vector.shape_cast %255 : vector<1x2x16xf32> to vector<2x16xf32>
    %257 = vector.shape_cast %253 : vector<2x16xf32> to vector<1x2x16xf32>
    tpu.vector_store %arg6[%254, %c0_110, %c0_111], %257 {strides = array<i32>} : memref<8x2x16xf32, #tpu.memory_space<vmem>>, vector<1x2x16xf32>,
    %c5_i32 = arith.constant 5 : i32
    %258 = arith.truncf %248 : vector<2x32xf32> to vector<2x32xbf16>
    %cst_112 = arith.constant dense<0.000000e+00> : vector<2x32xf32>
    %259 = tpu.matmul %258, %4, %cst_112 {dimension_numbers = #tpu.dot_dimension_numbers<[1], [0], [0], [1], [0, 0, 1, 1], [], []>} : vector<2x32xbf16>, vector<32x32xbf16>, vector<2x32xf32> -> vector<2x32xf32>
    %260 = vector.broadcast %10 : vector<1x32xf32> to vector<2x32xf32>
    %261 = arith.addf %259, %260 : vector<2x32xf32>
    %cst_113 = arith.constant dense<0.000000e+00> : vector<2x32xf32>
    %262 = tpu.matmul %258, %6, %cst_113 {dimension_numbers = #tpu.dot_dimension_numbers<[1], [0], [0], [1], [0, 0, 1, 1], [], []>} : vector<2x32xbf16>, vector<32x32xbf16>, vector<2x32xf32> -> vector<2x32xf32>
    %263 = vector.broadcast %12 : vector<1x32xf32> to vector<2x32xf32>
    %264 = arith.addf %262, %263 : vector<2x32xf32>
    %cst_114 = arith.constant dense<0.000000e+00> : vector<2x32xf32>
    %265 = tpu.matmul %258, %8, %cst_114 {dimension_numbers = #tpu.dot_dimension_numbers<[1], [0], [0], [1], [0, 0, 1, 1], [], []>} : vector<2x32xbf16>, vector<32x32xbf16>, vector<2x32xf32> -> vector<2x32xf32>
    %266 = vector.broadcast %14 : vector<1x32xf32> to vector<2x32xf32>
    %267 = arith.addf %265, %266 : vector<2x32xf32>
    %c0_115 = arith.constant 0 : index
    %268 = arith.index_cast %c5_i32 : i32 to index
    %c0_116 = arith.constant 0 : index
    %c0_117 = arith.constant 0 : index
    %269 = vector.load %arg1[%c0_115, %268, %c0_116, %c0_117] : memref<3x8x2x32xf32, #tpu.memory_space<vmem>>, vector<1x1x2x32xf32>
    %270 = vector.shape_cast %269 : vector<1x1x2x32xf32> to vector<2x32xf32>
    %271 = arith.addf %270, %261 : vector<2x32xf32>
    %272 = arith.negf %271 : vector<2x32xf32>
    %273 = math.exp %272 : vector<2x32xf32>
    %cst_118 = arith.constant 1.000000e+00 : f32
    %274 = vector.broadcast %cst_118 : f32 to vector<2x32xf32>
    %275 = arith.addf %274, %273 : vector<2x32xf32>
    %276 = arith.divf %274, %275 : vector<2x32xf32>
    %c1_119 = arith.constant 1 : index
    %277 = arith.index_cast %c5_i32 : i32 to index
    %c0_120 = arith.constant 0 : index
    %c0_121 = arith.constant 0 : index
    %278 = vector.load %arg1[%c1_119, %277, %c0_120, %c0_121] : memref<3x8x2x32xf32, #tpu.memory_space<vmem>>, vector<1x1x2x32xf32>
    %279 = vector.shape_cast %278 : vector<1x1x2x32xf32> to vector<2x32xf32>
    %280 = arith.addf %279, %264 : vector<2x32xf32>
    %281 = arith.negf %280 : vector<2x32xf32>
    %282 = math.exp %281 : vector<2x32xf32>
    %cst_122 = arith.constant 1.000000e+00 : f32
    %283 = vector.broadcast %cst_122 : f32 to vector<2x32xf32>
    %284 = arith.addf %283, %282 : vector<2x32xf32>
    %285 = arith.divf %283, %284 : vector<2x32xf32>
    %c2_123 = arith.constant 2 : index
    %286 = arith.index_cast %c5_i32 : i32 to index
    %c0_124 = arith.constant 0 : index
    %c0_125 = arith.constant 0 : index
    %287 = vector.load %arg1[%c2_123, %286, %c0_124, %c0_125] : memref<3x8x2x32xf32, #tpu.memory_space<vmem>>, vector<1x1x2x32xf32>
    %288 = vector.shape_cast %287 : vector<1x1x2x32xf32> to vector<2x32xf32>
    %289 = arith.mulf %276, %267 : vector<2x32xf32>
    %290 = arith.addf %288, %289 : vector<2x32xf32>
    %291 = math.tanh %290 : vector<2x32xf32>
    %cst_126 = arith.constant 1.000000e+00 : f32
    %292 = vector.broadcast %cst_126 : f32 to vector<2x32xf32>
    %293 = arith.subf %292, %285 : vector<2x32xf32>
    %294 = arith.mulf %293, %291 : vector<2x32xf32>
    %295 = arith.mulf %285, %248 : vector<2x32xf32>
    %296 = arith.addf %294, %295 : vector<2x32xf32>
    %297 = arith.truncf %296 : vector<2x32xf32> to vector<2x32xbf16>
    %cst_127 = arith.constant dense<0.000000e+00> : vector<2x16xf32>
    %298 = tpu.matmul %297, %15, %cst_127 {dimension_numbers = #tpu.dot_dimension_numbers<[1], [0], [0], [1], [0, 0, 1, 1], [], []>} : vector<2x32xbf16>, vector<32x16xbf16>, vector<2x16xf32> -> vector<2x16xf32>
    %299 = vector.broadcast %16 : vector<1x16xf32> to vector<2x16xf32>
    %300 = arith.addf %298, %299 : vector<2x16xf32>
    %301 = math.tanh %300 : vector<2x16xf32>
    %302 = arith.index_cast %c5_i32 : i32 to index
    %c0_128 = arith.constant 0 : index
    %c0_129 = arith.constant 0 : index
    %303 = vector.load %arg6[%302, %c0_128, %c0_129] : memref<8x2x16xf32, #tpu.memory_space<vmem>>, vector<1x2x16xf32>
    %304 = vector.shape_cast %303 : vector<1x2x16xf32> to vector<2x16xf32>
    %305 = vector.shape_cast %301 : vector<2x16xf32> to vector<1x2x16xf32>
    tpu.vector_store %arg6[%302, %c0_128, %c0_129], %305 {strides = array<i32>} : memref<8x2x16xf32, #tpu.memory_space<vmem>>, vector<1x2x16xf32>,
    %c6_i32 = arith.constant 6 : i32
    %306 = arith.truncf %296 : vector<2x32xf32> to vector<2x32xbf16>
    %cst_130 = arith.constant dense<0.000000e+00> : vector<2x32xf32>
    %307 = tpu.matmul %306, %4, %cst_130 {dimension_numbers = #tpu.dot_dimension_numbers<[1], [0], [0], [1], [0, 0, 1, 1], [], []>} : vector<2x32xbf16>, vector<32x32xbf16>, vector<2x32xf32> -> vector<2x32xf32>
    %308 = vector.broadcast %10 : vector<1x32xf32> to vector<2x32xf32>
    %309 = arith.addf %307, %308 : vector<2x32xf32>
    %cst_131 = arith.constant dense<0.000000e+00> : vector<2x32xf32>
    %310 = tpu.matmul %306, %6, %cst_131 {dimension_numbers = #tpu.dot_dimension_numbers<[1], [0], [0], [1], [0, 0, 1, 1], [], []>} : vector<2x32xbf16>, vector<32x32xbf16>, vector<2x32xf32> -> vector<2x32xf32>
    %311 = vector.broadcast %12 : vector<1x32xf32> to vector<2x32xf32>
    %312 = arith.addf %310, %311 : vector<2x32xf32>
    %cst_132 = arith.constant dense<0.000000e+00> : vector<2x32xf32>
    %313 = tpu.matmul %306, %8, %cst_132 {dimension_numbers = #tpu.dot_dimension_numbers<[1], [0], [0], [1], [0, 0, 1, 1], [], []>} : vector<2x32xbf16>, vector<32x32xbf16>, vector<2x32xf32> -> vector<2x32xf32>
    %314 = vector.broadcast %14 : vector<1x32xf32> to vector<2x32xf32>
    %315 = arith.addf %313, %314 : vector<2x32xf32>
    %c0_133 = arith.constant 0 : index
    %316 = arith.index_cast %c6_i32 : i32 to index
    %c0_134 = arith.constant 0 : index
    %c0_135 = arith.constant 0 : index
    %317 = vector.load %arg1[%c0_133, %316, %c0_134, %c0_135] : memref<3x8x2x32xf32, #tpu.memory_space<vmem>>, vector<1x1x2x32xf32>
    %318 = vector.shape_cast %317 : vector<1x1x2x32xf32> to vector<2x32xf32>
    %319 = arith.addf %318, %309 : vector<2x32xf32>
    %320 = arith.negf %319 : vector<2x32xf32>
    %321 = math.exp %320 : vector<2x32xf32>
    %cst_136 = arith.constant 1.000000e+00 : f32
    %322 = vector.broadcast %cst_136 : f32 to vector<2x32xf32>
    %323 = arith.addf %322, %321 : vector<2x32xf32>
    %324 = arith.divf %322, %323 : vector<2x32xf32>
    %c1_137 = arith.constant 1 : index
    %325 = arith.index_cast %c6_i32 : i32 to index
    %c0_138 = arith.constant 0 : index
    %c0_139 = arith.constant 0 : index
    %326 = vector.load %arg1[%c1_137, %325, %c0_138, %c0_139] : memref<3x8x2x32xf32, #tpu.memory_space<vmem>>, vector<1x1x2x32xf32>
    %327 = vector.shape_cast %326 : vector<1x1x2x32xf32> to vector<2x32xf32>
    %328 = arith.addf %327, %312 : vector<2x32xf32>
    %329 = arith.negf %328 : vector<2x32xf32>
    %330 = math.exp %329 : vector<2x32xf32>
    %cst_140 = arith.constant 1.000000e+00 : f32
    %331 = vector.broadcast %cst_140 : f32 to vector<2x32xf32>
    %332 = arith.addf %331, %330 : vector<2x32xf32>
    %333 = arith.divf %331, %332 : vector<2x32xf32>
    %c2_141 = arith.constant 2 : index
    %334 = arith.index_cast %c6_i32 : i32 to index
    %c0_142 = arith.constant 0 : index
    %c0_143 = arith.constant 0 : index
    %335 = vector.load %arg1[%c2_141, %334, %c0_142, %c0_143] : memref<3x8x2x32xf32, #tpu.memory_space<vmem>>, vector<1x1x2x32xf32>
    %336 = vector.shape_cast %335 : vector<1x1x2x32xf32> to vector<2x32xf32>
    %337 = arith.mulf %324, %315 : vector<2x32xf32>
    %338 = arith.addf %336, %337 : vector<2x32xf32>
    %339 = math.tanh %338 : vector<2x32xf32>
    %cst_144 = arith.constant 1.000000e+00 : f32
    %340 = vector.broadcast %cst_144 : f32 to vector<2x32xf32>
    %341 = arith.subf %340, %333 : vector<2x32xf32>
    %342 = arith.mulf %341, %339 : vector<2x32xf32>
    %343 = arith.mulf %333, %296 : vector<2x32xf32>
    %344 = arith.addf %342, %343 : vector<2x32xf32>
    %345 = arith.truncf %344 : vector<2x32xf32> to vector<2x32xbf16>
    %cst_145 = arith.constant dense<0.000000e+00> : vector<2x16xf32>
    %346 = tpu.matmul %345, %15, %cst_145 {dimension_numbers = #tpu.dot_dimension_numbers<[1], [0], [0], [1], [0, 0, 1, 1], [], []>} : vector<2x32xbf16>, vector<32x16xbf16>, vector<2x16xf32> -> vector<2x16xf32>
    %347 = vector.broadcast %16 : vector<1x16xf32> to vector<2x16xf32>
    %348 = arith.addf %346, %347 : vector<2x16xf32>
    %349 = math.tanh %348 : vector<2x16xf32>
    %350 = arith.index_cast %c6_i32 : i32 to index
    %c0_146 = arith.constant 0 : index
    %c0_147 = arith.constant 0 : index
    %351 = vector.load %arg6[%350, %c0_146, %c0_147] : memref<8x2x16xf32, #tpu.memory_space<vmem>>, vector<1x2x16xf32>
    %352 = vector.shape_cast %351 : vector<1x2x16xf32> to vector<2x16xf32>
    %353 = vector.shape_cast %349 : vector<2x16xf32> to vector<1x2x16xf32>
    tpu.vector_store %arg6[%350, %c0_146, %c0_147], %353 {strides = array<i32>} : memref<8x2x16xf32, #tpu.memory_space<vmem>>, vector<1x2x16xf32>,
    %c7_i32 = arith.constant 7 : i32
    %354 = arith.truncf %344 : vector<2x32xf32> to vector<2x32xbf16>
    %cst_148 = arith.constant dense<0.000000e+00> : vector<2x32xf32>
    %355 = tpu.matmul %354, %4, %cst_148 {dimension_numbers = #tpu.dot_dimension_numbers<[1], [0], [0], [1], [0, 0, 1, 1], [], []>} : vector<2x32xbf16>, vector<32x32xbf16>, vector<2x32xf32> -> vector<2x32xf32>
    %356 = vector.broadcast %10 : vector<1x32xf32> to vector<2x32xf32>
    %357 = arith.addf %355, %356 : vector<2x32xf32>
    %cst_149 = arith.constant dense<0.000000e+00> : vector<2x32xf32>
    %358 = tpu.matmul %354, %6, %cst_149 {dimension_numbers = #tpu.dot_dimension_numbers<[1], [0], [0], [1], [0, 0, 1, 1], [], []>} : vector<2x32xbf16>, vector<32x32xbf16>, vector<2x32xf32> -> vector<2x32xf32>
    %359 = vector.broadcast %12 : vector<1x32xf32> to vector<2x32xf32>
    %360 = arith.addf %358, %359 : vector<2x32xf32>
    %cst_150 = arith.constant dense<0.000000e+00> : vector<2x32xf32>
    %361 = tpu.matmul %354, %8, %cst_150 {dimension_numbers = #tpu.dot_dimension_numbers<[1], [0], [0], [1], [0, 0, 1, 1], [], []>} : vector<2x32xbf16>, vector<32x32xbf16>, vector<2x32xf32> -> vector<2x32xf32>
    %362 = vector.broadcast %14 : vector<1x32xf32> to vector<2x32xf32>
    %363 = arith.addf %361, %362 : vector<2x32xf32>
    %c0_151 = arith.constant 0 : index
    %364 = arith.index_cast %c7_i32 : i32 to index
    %c0_152 = arith.constant 0 : index
    %c0_153 = arith.constant 0 : index
    %365 = vector.load %arg1[%c0_151, %364, %c0_152, %c0_153] : memref<3x8x2x32xf32, #tpu.memory_space<vmem>>, vector<1x1x2x32xf32>
    %366 = vector.shape_cast %365 : vector<1x1x2x32xf32> to vector<2x32xf32>
    %367 = arith.addf %366, %357 : vector<2x32xf32>
    %368 = arith.negf %367 : vector<2x32xf32>
    %369 = math.exp %368 : vector<2x32xf32>
    %cst_154 = arith.constant 1.000000e+00 : f32
    %370 = vector.broadcast %cst_154 : f32 to vector<2x32xf32>
    %371 = arith.addf %370, %369 : vector<2x32xf32>
    %372 = arith.divf %370, %371 : vector<2x32xf32>
    %c1_155 = arith.constant 1 : index
    %373 = arith.index_cast %c7_i32 : i32 to index
    %c0_156 = arith.constant 0 : index
    %c0_157 = arith.constant 0 : index
    %374 = vector.load %arg1[%c1_155, %373, %c0_156, %c0_157] : memref<3x8x2x32xf32, #tpu.memory_space<vmem>>, vector<1x1x2x32xf32>
    %375 = vector.shape_cast %374 : vector<1x1x2x32xf32> to vector<2x32xf32>
    %376 = arith.addf %375, %360 : vector<2x32xf32>
    %377 = arith.negf %376 : vector<2x32xf32>
    %378 = math.exp %377 : vector<2x32xf32>
    %cst_158 = arith.constant 1.000000e+00 : f32
    %379 = vector.broadcast %cst_158 : f32 to vector<2x32xf32>
    %380 = arith.addf %379, %378 : vector<2x32xf32>
    %381 = arith.divf %379, %380 : vector<2x32xf32>
    %c2_159 = arith.constant 2 : index
    %382 = arith.index_cast %c7_i32 : i32 to index
    %c0_160 = arith.constant 0 : index
    %c0_161 = arith.constant 0 : index
    %383 = vector.load %arg1[%c2_159, %382, %c0_160, %c0_161] : memref<3x8x2x32xf32, #tpu.memory_space<vmem>>, vector<1x1x2x32xf32>
    %384 = vector.shape_cast %383 : vector<1x1x2x32xf32> to vector<2x32xf32>
    %385 = arith.mulf %372, %363 : vector<2x32xf32>
    %386 = arith.addf %384, %385 : vector<2x32xf32>
    %387 = math.tanh %386 : vector<2x32xf32>
    %cst_162 = arith.constant 1.000000e+00 : f32
    %388 = vector.broadcast %cst_162 : f32 to vector<2x32xf32>
    %389 = arith.subf %388, %381 : vector<2x32xf32>
    %390 = arith.mulf %389, %387 : vector<2x32xf32>
    %391 = arith.mulf %381, %344 : vector<2x32xf32>
    %392 = arith.addf %390, %391 : vector<2x32xf32>
    %393 = arith.truncf %392 : vector<2x32xf32> to vector<2x32xbf16>
    %cst_163 = arith.constant dense<0.000000e+00> : vector<2x16xf32>
    %394 = tpu.matmul %393, %15, %cst_163 {dimension_numbers = #tpu.dot_dimension_numbers<[1], [0], [0], [1], [0, 0, 1, 1], [], []>} : vector<2x32xbf16>, vector<32x16xbf16>, vector<2x16xf32> -> vector<2x16xf32>
    %395 = vector.broadcast %16 : vector<1x16xf32> to vector<2x16xf32>
    %396 = arith.addf %394, %395 : vector<2x16xf32>
    %397 = math.tanh %396 : vector<2x16xf32>
    %398 = arith.index_cast %c7_i32 : i32 to index
    %c0_164 = arith.constant 0 : index
    %c0_165 = arith.constant 0 : index
    %399 = vector.load %arg6[%398, %c0_164, %c0_165] : memref<8x2x16xf32, #tpu.memory_space<vmem>>, vector<1x2x16xf32>
    %400 = vector.shape_cast %399 : vector<1x2x16xf32> to vector<2x16xf32>
    %401 = vector.shape_cast %397 : vector<2x16xf32> to vector<1x2x16xf32>
    tpu.vector_store %arg6[%398, %c0_164, %c0_165], %401 {strides = array<i32>} : memref<8x2x16xf32, #tpu.memory_space<vmem>>, vector<1x2x16xf32>,
    %c8_i32 = arith.constant 8 : i32
    %c0_166 = arith.constant 0 : index
    %c0_167 = arith.constant 0 : index
    %402 = vector.load %arg7[%c0_166, %c0_167] : memref<2x32xf32, #tpu.memory_space<vmem>>, vector<2x32xf32>
    tpu.vector_store %arg7[%c0_166, %c0_167], %392 {strides = array<i32>} : memref<2x32xf32, #tpu.memory_space<vmem>>, vector<2x32xf32>,
    return
  }
  func.func @transform_0(%arg0: i32) -> (i32, i32, i32, i32) {
    %c0_i32 = arith.constant 0 : i32
    %c0_i32_0 = arith.constant 0 : i32
    %c0_i32_1 = arith.constant 0 : i32
    %c0_i32_2 = arith.constant 0 : i32
    return %c0_i32, %arg0, %c0_i32_0, %c0_i32_1 : i32, i32, i32, i32
  }
  func.func @transform_1(%arg0: i32) -> (i32, i32, i32) {
    %c0_i32 = arith.constant 0 : i32
    %c0_i32_0 = arith.constant 0 : i32
    %c0_i32_1 = arith.constant 0 : i32
    %c0_i32_2 = arith.constant 0 : i32
    return %c0_i32, %c0_i32_0, %c0_i32_1 : i32, i32, i32
  }
  func.func @transform_2(%arg0: i32) -> (i32, i32, i32) {
    %c0_i32 = arith.constant 0 : i32
    %c0_i32_0 = arith.constant 0 : i32
    %c0_i32_1 = arith.constant 0 : i32
    %c0_i32_2 = arith.constant 0 : i32
    return %c0_i32, %c0_i32_0, %c0_i32_1 : i32, i32, i32
  }
  func.func @transform_3(%arg0: i32) -> (i32, i32) {
    %c0_i32 = arith.constant 0 : i32
    %c0_i32_0 = arith.constant 0 : i32
    %c0_i32_1 = arith.constant 0 : i32
    return %c0_i32, %c0_i32_0 : i32, i32
  }
  func.func @transform_4(%arg0: i32) -> (i32, i32) {
    %c0_i32 = arith.constant 0 : i32
    %c0_i32_0 = arith.constant 0 : i32
    %c0_i32_1 = arith.constant 0 : i32
    return %c0_i32, %c0_i32_0 : i32, i32
  }
  func.func @transform_5(%arg0: i32) -> (i32, i32, i32) {
    %c0_i32 = arith.constant 0 : i32
    %c0_i32_0 = arith.constant 0 : i32
    %c0_i32_1 = arith.constant 0 : i32
    return %arg0, %c0_i32, %c0_i32_0 : i32, i32, i32
  }
}

</mosaic_0001>

<llo_original>
// kernel: decoder_forward.5
$region0: #{decoder_forward.5}
  #allocation0 [shape = 'u32[]', space=smem, size = 0x4, offset = 0x4, fixed_abs, tag = 'smem constant byte address 0x4 - core index']
  #allocation1 [shape = 'u32[144,128]{1,0:T(1,128)}', space=vmem, size = 0x12000, scoped, tag = 'internal scratch']
  %s0 = inlined_call_operand.vmem [shape: f32[16,16], index: 0, kind: input, shape index: {}]
  %s1 = inlined_call_operand.vmem [shape: bf16[16,32], index: 1, kind: input, shape index: {}]
  %s2 = inlined_call_operand.vmem [shape: f32[1,32], index: 2, kind: input, shape index: {}]
  %s3 = inlined_call_operand.hbm [shape: f32[16,32], index: 3, kind: output, shape index: {}]
  %s4 = sld [smem:[#allocation0]]
  $region22: #{decoder_forward.5} parent=0
    _
  %s6 = ssub.s32 1, %s4
  %s7 = scalar_select 0, %s6, %s4
  $region1: #{decoder_forward.5} parent=0
    #allocation2 [shape = 'u8[8192]{0}', space=vmem, size = 0x2000, scoped, tag = 'output window, operand 0, single buffered']
    #allocation3 [shape = 's32[1]{0}', space=sflag, size = 0x4, scoped, tag = 'scoped memory for decoder_forward.5']
    %8 = vsyncpa [#allocation3], 0
    // Predicated region
    $region2: #{decoder_forward.5} parent=1 // pred_check
      _
    $region3: #{decoder_forward.5} parent=1 // pred_check_branch
      %10 = sbr.rel (0) target = $region5
    $region4: #{decoder_forward.5} parent=1 // pred_region
      _
    $region5: #{decoder_forward.5} parent=1 // pred_fallthru
      _
    // Predicated region
    $region6: #{decoder_forward.5} parent=1 // pred_check
      _
    $region7: #{decoder_forward.5} parent=1 // pred_check_branch
      %12 = sbr.rel (0) target = $region9
    $region8: #{decoder_forward.5} parent=1 // pred_region
      _
    $region9: #{decoder_forward.5} parent=1 // pred_fallthru
      _
    // Predicated region
    $region10: #{decoder_forward.5} parent=1 // pred_check
      _
    $region11: #{decoder_forward.5} parent=1 // pred_check_branch
      %14 = sbr.rel (0) target = $region13
    $region12: #{decoder_forward.5} parent=1 // pred_region
      _
    $region13: #{decoder_forward.5} parent=1 // pred_fallthru
      _
    %v16 = vld [vmem:[%s0] sm:$0xff]
    %v17 = vld [vmem:[%s0 + $0x8] sm:$0xff]
    %v18 = vpack.c.bf16 %v17, %v16
    %v19 = vld [vmem:[%s1] sm:$0xf]
    %v20 = vld [vmem:[%s1 + $0x4] sm:$0xf]
    %v21 = vld [vmem:[%s2] sm:$0x1]
    %v23 = vlaneseq
    %v24 = vshrl.u32 %v23, 7
    %v25 = vsub.s32 0, %v24
    %v26 = vrot.slane %v21, %v25
    %v30 = vunpack.c.l.b16 %v19
    %v31 = vunpack.c.l.b16 %v20
    %v32 = vpack.c.b16 %v31, %v30
    %vm34 = vcmask 130048
    %v36 = vsel %vm34, %v18, 0
    %38 = vmatprep.subr.bf16.mxu0 0
    %39 = vmatpush1.bf16.msra.mxu0 %v32
    %40 = vmatprep.subr.bf16.mxu0 0
    %41 = vmatpush1.bf16.msra.mxu0 0
    %42 = vmatprep.subr.bf16.mxu0 0
    %43 = vmatpush1.bf16.msra.mxu0 0
    %44 = vmatprep.subr.bf16.mxu0 0
    %45 = vmatpush1.bf16.msra.mxu0 0
    %46 = vmatprep.subr.bf16.mxu0 0
    %47 = vmatpush1.bf16.msra.mxu0 0
    %48 = vmatprep.subr.bf16.mxu0 0
    %49 = vmatpush1.bf16.msra.mxu0 0
    %50 = vmatprep.subr.bf16.mxu0 0
    %51 = vmatpush1.bf16.msra.mxu0 0
    %52 = vmatprep.subr.bf16.mxu0 0
    %53 = vmatpush1.bf16.msra.mxu0 0
    %54 = vmatprep.subr.bf16.mxu0 0
    %55 = vmatpush1.bf16.msra.mxu0 0
    %56 = vmatprep.subr.bf16.mxu0 0
    %57 = vmatpush1.bf16.msra.mxu0 0
    %58 = vmatprep.subr.bf16.mxu0 0
    %59 = vmatpush1.bf16.msra.mxu0 0
    %60 = vmatprep.subr.bf16.mxu0 0
    %61 = vmatpush1.bf16.msra.mxu0 0
    %62 = vmatprep.subr.bf16.mxu0 0
    %63 = vmatpush1.bf16.msra.mxu0 0
    %64 = vmatprep.subr.bf16.mxu0 0
    %65 = vmatpush1.bf16.msra.mxu0 0
    %66 = vmatprep.subr.bf16.mxu0 0
    %67 = vmatpush1.bf16.msra.mxu0 0
    %68 = vmatprep.subr.bf16.mxu0 0
    %69 = vmatpush1.bf16.msra.mxu0 0
    %70 = vmatprep.mubr.bf16.mxu0 0
    %71 = vmatmul.mubr.bf16.gmra.mrb[0].mxu0 %v36
    %v72 = vpop.f32.mrb[0].mxu0
    %v73 = vadd.f32 %v26, %v72
    %v74 = vpop.f32.mrb[0].mxu0
    %v75 = vpop.f32.mrb[0].mxu0
    %v76 = vadd.f32 %v26, %v75
    %v77 = vpop.f32.mrb[0].mxu0
    %78 = vdwg.mxu0
    %vm79 = vcmask 261120
    %80 = vst.msk [vmem:[#allocation2] sm:$0xff] %vm79, %v73
    %81 = vst.msk [vmem:[#allocation2 + $0x8] sm:$0xff] %vm79, %v76
    // Predicated region
    $region14: #{decoder_forward.5} parent=1 // pred_check
      _
    $region15: #{decoder_forward.5} parent=1 // pred_check_branch
      %83 = sbr.rel (0) target = $region17
    $region16: #{decoder_forward.5} parent=1 // pred_region
      %s85 = ssub.s32 256, 256
      %86 = vsyncadd [#allocation3], %s85
      %s87 = sshll.u32 [#allocation2], 4
      %s88 = int_to_ptr.vmem [resolvable:$true] %s87
      %93 = dma.vmem_to_hbm [thread:$0]  %s88, 256, %s3, [#allocation3], 128, 128, 8
    $region17: #{decoder_forward.5} parent=1 // pred_fallthru
      _
    // Predicated region
    $region18: #{decoder_forward.5} parent=1 // pred_check
      _
    $region19: #{decoder_forward.5} parent=1 // pred_check_branch
      %95 = sbr.rel (0) target = $region21
    $region20: #{decoder_forward.5} parent=1 // pred_region
      %96 = dma.done [#allocation3], 256
    $region21: #{decoder_forward.5} parent=1 // pred_fallthru
      _
    %97 = vsyncpa [#allocation3], 1

// kernel: decoder_forward.3
$region0: #{decoder_forward.3}
  #allocation0 [shape = 'u32[]', space=smem, size = 0x4, offset = 0x4, fixed_abs, tag = 'smem constant byte address 0x4 - core index']
  #allocation1 [shape = 'u32[144,128]{1,0:T(1,128)}', space=vmem, size = 0x12000, scoped, tag = 'internal scratch']
  %s0 = inlined_call_operand.vmem [shape: bf16[16,16], index: 0, kind: input, shape index: {}]
  %s1 = inlined_call_operand.vmem [shape: bf16[3,16,32], index: 1, kind: input, shape index: {}]
  %s2 = inlined_call_operand.vmem [shape: f32[3,1,32], index: 2, kind: input, shape index: {}]
  %s3 = inlined_call_operand.vmem [shape: f32[3,16,32], index: 3, kind: output, shape index: {}]
  %s4 = sld [smem:[#allocation0]]
  $region45: #{decoder_forward.3} parent=0
    _
  %s6 = ssub.s32 1, %s4
  %s7 = scalar_select 0, %s6, %s4
  loop: start=0, step=1, limit=5
  $region2: #{decoder_forward.3} parent=0 // loop_pre_header
    _
  $region3: #{decoder_forward.3} parent=0 // loop_header
    %s9 = sphi 0, %s13
    %p10 = scmp.ge.s32.totalorder %s9, 5
    %s16 = sphi 0, %s28
    %s17 = sphi 0, %s24
    %s18 = sphi 0, %s16
    %s19 = sphi 0, %s17
    %s20 = sphi 0, %s18
    %s21 = sphi 0, %s19
    %s31 = sphi 0, %s33
    %s34 = sphi 0, %s31
    %s35 = sphi 0, %s34
    %s51 = sphi 0, %s35
    %s57 = sphi 0, %s59
    %s60 = sphi 0, %s57
    %s61 = sphi 0, %s60
    %s77 = sphi 0, %s61
    %s83 = sphi 0, %s85
    %s86 = sphi 0, %s83
    %s87 = sphi 0, %s86
    %s103 = sphi 0, %s87
    %s111 = sphi 0, %s113
    %s114 = sphi 0, %s111
    %s115 = sphi 0, %s114
    %s131 = sphi 0, %s115
  $region4: #{decoder_forward.3} parent=0 // loop_header_branch
    %12 = sbr.rel (%p10) target = $region8
  $region5: #{decoder_forward.3} parent=0 // loop_body
    %s14 = ssub.s32 %s9, 1
    %s15 = ssub.s32 %s9, 2
    %s22 = sadd.s32 1, %s17
    %p23 = scmp.ge.s32.totalorder %s22, 3
    %s24 = scalar_select %p23, 0, %s22
    %s25 = sadd.s32 1, %s16
    %s26 = scalar_select %p23, %s25, %s16
    %p27 = scmp.ge.s32.totalorder %s26, 1
    %s28 = scalar_select %p27, 0, %s26
    %s29 = ssub.s32 %s16, %s28
    %p30 = scmp.eq.s32.totalorder %s29, 0
    %s32 = sadd.s32 %s31, 1
    %s33 = scalar_select %p30, %s31, %s32
    %p36 = pneg %p30
    %p37 = scmp.eq.s32.totalorder %s9, 2
    %p38 = por %p36, %p37
    %p39 = scmp.ne.s32.totalorder %s31, %s34
    %p40 = scmp.eq.s32.totalorder %s9, 0
    %p41 = por %p39, %p40
    %p42 = scmp.ne.s32.totalorder %s31, %s34
    %p43 = scmp.eq.s32.totalorder %s14, 2
    %p44 = por %p42, %p43
    %p45 = scmp.ne.s32.totalorder %s34, %s35
    %p46 = scmp.eq.s32.totalorder %s14, 0
    %p47 = por %p45, %p46
    %p48 = scmp.ne.s32.totalorder %s34, %s35
    %p49 = scmp.eq.s32.totalorder %s15, 2
    %p50 = por %p48, %p49
    %p52 = scmp.ne.s32.totalorder %s35, %s51
    %p53 = scmp.eq.s32.totalorder %s15, 0
    %p54 = por %p52, %p53
    %s55 = ssub.s32 %s17, %s24
    %p56 = scmp.eq.s32.totalorder %s55, 0
    %s58 = sadd.s32 %s57, 1
    %s59 = scalar_select %p56, %s57, %s58
    %p62 = pneg %p56
    %p63 = scmp.eq.s32.totalorder %s9, 2
    %p64 = por %p62, %p63
    %p65 = scmp.ne.s32.totalorder %s57, %s60
    %p66 = scmp.eq.s32.totalorder %s9, 0
    %p67 = por %p65, %p66
    %p68 = scmp.ne.s32.totalorder %s57, %s60
    %p69 = scmp.eq.s32.totalorder %s14, 2
    %p70 = por %p68, %p69
    %p71 = scmp.ne.s32.totalorder %s60, %s61
    %p72 = scmp.eq.s32.totalorder %s14, 0
    %p73 = por %p71, %p72
    %p74 = scmp.ne.s32.totalorder %s60, %s61
    %p75 = scmp.eq.s32.totalorder %s15, 2
    %p76 = por %p74, %p75
    %p78 = scmp.ne.s32.totalorder %s61, %s77
    %p79 = scmp.eq.s32.totalorder %s15, 0
    %p80 = por %p78, %p79
    %s81 = ssub.s32 %s17, %s24
    %p82 = scmp.eq.s32.totalorder %s81, 0
    %s84 = sadd.s32 %s83, 1
    %s85 = scalar_select %p82, %s83, %s84
    %p88 = pneg %p82
    %p89 = scmp.eq.s32.totalorder %s9, 2
    %p90 = por %p88, %p89
    %p91 = scmp.ne.s32.totalorder %s83, %s86
    %p92 = scmp.eq.s32.totalorder %s9, 0
    %p93 = por %p91, %p92
    %p94 = scmp.ne.s32.totalorder %s83, %s86
    %p95 = scmp.eq.s32.totalorder %s14, 2
    %p96 = por %p94, %p95
    %p97 = scmp.ne.s32.totalorder %s86, %s87
    %p98 = scmp.eq.s32.totalorder %s14, 0
    %p99 = por %p97, %p98
    %p100 = scmp.ne.s32.totalorder %s86, %s87
    %p101 = scmp.eq.s32.totalorder %s15, 2
    %p102 = por %p100, %p101
    %p104 = scmp.ne.s32.totalorder %s87, %s103
    %p105 = scmp.eq.s32.totalorder %s15, 0
    %p106 = por %p104, %p105
    %s107 = ssub.s32 %s17, %s24
    %s108 = ssub.s32 %s16, %s28
    %s109 = sor.u32 %s107, %s108
    %p110 = scmp.eq.s32.totalorder %s109, 0
    %s112 = sadd.s32 %s111, 1
    %s113 = scalar_select %p110, %s111, %s112
    %p116 = pneg %p110
    %p117 = scmp.eq.s32.totalorder %s9, 2
    %p118 = por %p116, %p117
    %p119 = scmp.ne.s32.totalorder %s111, %s114
    %p120 = scmp.eq.s32.totalorder %s9, 0
    %p121 = por %p119, %p120
    %p122 = scmp.ne.s32.totalorder %s111, %s114
    %p123 = scmp.eq.s32.totalorder %s14, 2
    %p124 = por %p122, %p123
    %p125 = scmp.ne.s32.totalorder %s114, %s115
    %p126 = scmp.eq.s32.totalorder %s14, 0
    %p127 = por %p125, %p126
    %p128 = scmp.ne.s32.totalorder %s114, %s115
    %p129 = scmp.eq.s32.totalorder %s15, 2
    %p130 = por %p128, %p129
    %p132 = scmp.ne.s32.totalorder %s115, %s131
    %p133 = scmp.eq.s32.totalorder %s15, 0
    %p134 = por %p132, %p133
    %p135 = scmp.le.s32.totalorder 1, %s9
    %p136 = scmp.lt.s32.totalorder %s9, 4
    %p137 = pnand %p135, %p136
    %p138 = pneg %p137
    // Predicated region
    $region9: #{decoder_forward.3} parent=5 // pred_check
      _
    $region10: #{decoder_forward.3} parent=5 // pred_check_branch
      %140 = sbr.rel (%p137) target = $region12
    $region11: #{decoder_forward.3} parent=5 // pred_region
      %s141 = ssub.s32 %s9, 1
      // Predicated region
      $region13: #{decoder_forward.3} parent=11 // pred_check
        %p142 = pneg %p47
      $region14: #{decoder_forward.3} parent=11 // pred_check_branch
        %144 = sbr.rel (%p142) target = $region16
      $region15: #{decoder_forward.3} parent=11 // pred_region
        %s145 = smul.u32 2, %s18
        %p146 = scmp.lt.s32.totalorder %s145, 1
        %s147 = scalar_select %p146, %s145, 1
        %s148 = smul.addr %s147, 4
        %s149 = scalar_lea.vmem %s0, %s148
        %s150 = smul.u32 2, %s18
      $region16: #{decoder_forward.3} parent=11 // pred_fallthru
        _
    $region12: #{decoder_forward.3} parent=5 // pred_fallthru
      _
    %p151 = scmp.lt.s32.totalorder %s9, 3
    // Predicated region
    $region17: #{decoder_forward.3} parent=5 // pred_check
      %p152 = pneg %p151
    $region18: #{decoder_forward.3} parent=5 // pred_check_branch
      %154 = sbr.rel (%p152) target = $region20
    $region19: #{decoder_forward.3} parent=5 // pred_region
      // Predicated region
      $region21: #{decoder_forward.3} parent=19 // pred_check
        %p155 = pneg %p67
      $region22: #{decoder_forward.3} parent=19 // pred_check_branch
        %157 = sbr.rel (%p155) target = $region24
      $region23: #{decoder_forward.3} parent=19 // pred_region
        %p158 = scmp.lt.s32.totalorder %s17, 2
        %s159 = scalar_select %p158, %s17, 2
        %s160 = smul.addr %s159, 2
        %s161 = smul.addr %s160, 4
        %s162 = scalar_lea.vmem %s1, %s161
      $region24: #{decoder_forward.3} parent=19 // pred_fallthru
        _
      // Predicated region
      $region25: #{decoder_forward.3} parent=19 // pred_check
        %p163 = pneg %p93
      $region26: #{decoder_forward.3} parent=19 // pred_check_branch
        %165 = sbr.rel (%p163) target = $region28
      $region27: #{decoder_forward.3} parent=19 // pred_region
        %p166 = scmp.lt.s32.totalorder %s17, 2
        %s167 = scalar_select %p166, %s17, 2
        %s168 = scalar_lea.vmem %s2, %s167
      $region28: #{decoder_forward.3} parent=19 // pred_fallthru
        _
    $region20: #{decoder_forward.3} parent=5 // pred_fallthru
      _
    %p169 = scmp.le.s32.totalorder 1, %s9
    %p170 = scmp.lt.s32.totalorder %s9, 4
    %p171 = pnand %p169, %p170
    %p172 = pneg %p171
    // Predicated region
    $region29: #{decoder_forward.3} parent=5 // pred_check
      _
    $region30: #{decoder_forward.3} parent=5 // pred_check_branch
      %174 = sbr.rel (%p171) target = $region32
    $region31: #{decoder_forward.3} parent=5 // pred_region
      %s175 = ssub.s32 %s9, 1
      %s176 = smul.u32 2, %s18
      %p177 = scmp.lt.s32.totalorder %s176, 1
      %s178 = scalar_select %p177, %s176, 1
      %s179 = smul.addr %s178, 4
      %s180 = scalar_lea.vmem %s0, %s179
      %p181 = pneg %p47
      %p182 = pneg %p44
      %p183 = scmp.lt.s32.totalorder %s19, 2
      %s184 = scalar_select %p183, %s19, 2
      %s185 = smul.addr %s184, 2
      %s186 = smul.addr %s185, 4
      %s187 = scalar_lea.vmem %s1, %s186
      %p188 = pneg %p73
      %p189 = pneg %p70
      %p190 = scmp.lt.s32.totalorder %s19, 2
      %s191 = scalar_select %p190, %s19, 2
      %s192 = scalar_lea.vmem %s2, %s191
      %p193 = pneg %p99
      %p194 = pneg %p96
      %p195 = pneg %p127
      %p196 = pneg %p124
      %s197 = smul.u32 2, %s18
      %p198 = scmp.lt.s32.totalorder %s19, 2
      %s199 = scalar_select %p198, %s19, 2
      %p200 = scmp.lt.s32.totalorder %s197, 1
      %s201 = scalar_select %p200, %s197, 1
      %s202 = smul.addr %s199, 2
      %s203 = sadd.s32 %s201, %s202
      %s204 = smul.addr %s203, 8
      %s205 = scalar_lea.vmem %s3, %s204
      %s206 = smul.u32 2, %s18
      %p207 = scmp.lt.s32.totalorder %s206, 1
      %s208 = scalar_select %p207, %s206, 1
      %s209 = smul.addr %s208, 4
      %s210 = scalar_lea.vmem %s0, %s209
      %s211 = smul.u32 2, %s18
      %p212 = scmp.lt.s32.totalorder %s19, 2
      %s213 = scalar_select %p212, %s19, 2
      %s214 = smul.addr %s213, 2
      %s215 = smul.addr %s214, 4
      %s216 = scalar_lea.vmem %s1, %s215
      %p217 = scmp.lt.s32.totalorder %s19, 2
      %s218 = scalar_select %p217, %s19, 2
      %s219 = scalar_lea.vmem %s2, %s218
      %s220 = smul.u32 2, %s18
      %p221 = scmp.lt.s32.totalorder %s19, 2
      %s222 = scalar_select %p221, %s19, 2
      %p223 = scmp.lt.s32.totalorder %s220, 1
      %s224 = scalar_select %p223, %s220, 1
      %s225 = smul.addr %s222, 2
      %s226 = sadd.s32 %s224, %s225
      %s227 = smul.addr %s226, 8
      %s228 = scalar_lea.vmem %s3, %s227
      %s229 = smul.u32 2, %s18
      %v231 = vld [vmem:[%s210] sm:$0xf]
      %v232 = vld [vmem:[%s210 + $0x4] sm:$0xf]
      %v233 = vld [vmem:[%s216] sm:$0xf]
      %v234 = vld [vmem:[%s216 + $0x4] sm:$0xf]
      %v235 = vld [vmem:[%s219] sm:$0x1]
      %v237 = vlaneseq
      %v238 = vshrl.u32 %v237, 7
      %v239 = vsub.s32 0, %v238
      %v240 = vrot.slane %v235, %v239
      %v244 = vunpack.c.l.b16 %v231
      %v245 = vunpack.c.l.b16 %v232
      %v246 = vpack.c.b16 %v245, %v244
      %v249 = vunpack.c.l.b16 %v233
      %v250 = vunpack.c.l.b16 %v234
      %v251 = vpack.c.b16 %v250, %v249
      %vm253 = vcmask 130048
      %v255 = vsel %vm253, %v246, 0
      %257 = vmatprep.subr.bf16.mxu0 0
      %258 = vmatpush1.bf16.msra.mxu0 %v251
      %259 = vmatprep.subr.bf16.mxu0 0
      %260 = vmatpush1.bf16.msra.mxu0 0
      %261 = vmatprep.subr.bf16.mxu0 0
      %262 = vmatpush1.bf16.msra.mxu0 0
      %263 = vmatprep.subr.bf16.mxu0 0
      %264 = vmatpush1.bf16.msra.mxu0 0
      %265 = vmatprep.subr.bf16.mxu0 0
      %266 = vmatpush1.bf16.msra.mxu0 0
      %267 = vmatprep.subr.bf16.mxu0 0
      %268 = vmatpush1.bf16.msra.mxu0 0
      %269 = vmatprep.subr.bf16.mxu0 0
      %270 = vmatpush1.bf16.msra.mxu0 0
      %271 = vmatprep.subr.bf16.mxu0 0
      %272 = vmatpush1.bf16.msra.mxu0 0
      %273 = vmatprep.subr.bf16.mxu0 0
      %274 = vmatpush1.bf16.msra.mxu0 0
      %275 = vmatprep.subr.bf16.mxu0 0
      %276 = vmatpush1.bf16.msra.mxu0 0
      %277 = vmatprep.subr.bf16.mxu0 0
      %278 = vmatpush1.bf16.msra.mxu0 0
      %279 = vmatprep.subr.bf16.mxu0 0
      %280 = vmatpush1.bf16.msra.mxu0 0
      %281 = vmatprep.subr.bf16.mxu0 0
      %282 = vmatpush1.bf16.msra.mxu0 0
      %283 = vmatprep.subr.bf16.mxu0 0
      %284 = vmatpush1.bf16.msra.mxu0 0
      %285 = vmatprep.subr.bf16.mxu0 0
      %286 = vmatpush1.bf16.msra.mxu0 0
      %287 = vmatprep.subr.bf16.mxu0 0
      %288 = vmatpush1.bf16.msra.mxu0 0
      %289 = vmatprep.mubr.bf16.mxu0 0
      %290 = vmatmul.mubr.bf16.gmra.mrb[0].mxu0 %v255
      %v291 = vpop.f32.mrb[0].mxu0
      %v292 = vadd.f32 %v240, %v291
      %v293 = vpop.f32.mrb[0].mxu0
      %v294 = vpop.f32.mrb[0].mxu0
      %v295 = vadd.f32 %v240, %v294
      %v296 = vpop.f32.mrb[0].mxu0
      %297 = vdwg.mxu0
      %vm298 = vcmask 261120
      %299 = vst.msk [vmem:[%s228] sm:$0xff] %vm298, %v292
      %300 = vst.msk [vmem:[%s228 + $0x8] sm:$0xff] %vm298, %v295
      %s301 = smul.u32 2, %s18
      %p302 = scmp.lt.s32.totalorder %s19, 2
      %s303 = scalar_select %p302, %s19, 2
      %p304 = scmp.lt.s32.totalorder %s301, 1
      %s305 = scalar_select %p304, %s301, 1
      %s306 = smul.addr %s303, 2
      %s307 = sadd.s32 %s305, %s306
      %s308 = smul.addr %s307, 8
      %s309 = scalar_lea.vmem %s3, %s308
      // Predicated region
      $region33: #{decoder_forward.3} parent=31 // pred_check
        %p310 = pneg %p124
      $region34: #{decoder_forward.3} parent=31 // pred_check_branch
        %312 = sbr.rel (%p310) target = $region36
      $region35: #{decoder_forward.3} parent=31 // pred_region
        %s313 = smul.u32 2, %s18
      $region36: #{decoder_forward.3} parent=31 // pred_fallthru
        _
    $region32: #{decoder_forward.3} parent=5 // pred_fallthru
      _
    %p314 = scmp.le.s32.totalorder 2, %s9
    // Predicated region
    $region37: #{decoder_forward.3} parent=5 // pred_check
      %p315 = pneg %p314
    $region38: #{decoder_forward.3} parent=5 // pred_check_branch
      %317 = sbr.rel (%p315) target = $region40
    $region39: #{decoder_forward.3} parent=5 // pred_region
      %s318 = ssub.s32 %s9, 2
      // Predicated region
      $region41: #{decoder_forward.3} parent=39 // pred_check
        %p319 = pneg %p130
      $region42: #{decoder_forward.3} parent=39 // pred_check_branch
        %321 = sbr.rel (%p319) target = $region44
      $region43: #{decoder_forward.3} parent=39 // pred_region
        %s322 = smul.u32 2, %s20
        %p323 = scmp.lt.s32.totalorder %s21, 2
        %s324 = scalar_select %p323, %s21, 2
        %p325 = scmp.lt.s32.totalorder %s322, 1
        %s326 = scalar_select %p325, %s322, 1
        %s327 = smul.addr %s324, 2
        %s328 = sadd.s32 %s326, %s327
        %s329 = smul.addr %s328, 8
        %s330 = scalar_lea.vmem %s3, %s329
      $region44: #{decoder_forward.3} parent=39 // pred_fallthru
        _
    $region40: #{decoder_forward.3} parent=5 // pred_fallthru
      _
  $region6: #{decoder_forward.3} parent=0 // loop_footer
    %s13 = sadd.s32 1, %s9
  $region7: #{decoder_forward.3} parent=0 // loop_footer_branch
    %8 = sbr.rel target = $region3
  $region8: #{decoder_forward.3} parent=0 // loop_exit
    _

// kernel: decoder_forward.4
$region0: #{decoder_forward.4}
  #allocation0 [shape = 'u32[]', space=smem, size = 0x4, offset = 0x4, fixed_abs, tag = 'smem constant byte address 0x4 - core index']
  #allocation1 [shape = 'u32[144,128]{1,0:T(1,128)}', space=vmem, size = 0x12000, scoped, tag = 'internal scratch']
  #allocation2 [shape = 'f32[2,32]{1,0:T(2,128)}', space=vmem, size = 0x400, scoped, tag = 'scratch operand']
  %s0 = inlined_call_operand.vmem [shape: f32[3,8,2,32], index: 0, kind: input, shape index: {}]
  %s1 = inlined_call_operand.vmem [shape: bf16[3,32,32], index: 1, kind: input, shape index: {}]
  %s2 = inlined_call_operand.vmem [shape: f32[3,1,32], index: 2, kind: input, shape index: {}]
  %s3 = inlined_call_operand.vmem [shape: bf16[32,16], index: 3, kind: input, shape index: {}]
  %s4 = inlined_call_operand.vmem [shape: f32[1,16], index: 4, kind: input, shape index: {}]
  %s5 = inlined_call_operand.vmem [shape: f32[8,2,16], index: 5, kind: output, shape index: {}]
  %s6 = sld [smem:[#allocation0]]
  $region34: #{decoder_forward.4} parent=0
    _
  %s8 = ssub.s32 1, %s6
  %s9 = scalar_select 0, %s8, %s6
  // Predicated region
  $region2: #{decoder_forward.4} parent=0 // pred_check
    _
  $region3: #{decoder_forward.4} parent=0 // pred_check_branch
    %11 = sbr.rel (0) target = $region5
  $region4: #{decoder_forward.4} parent=0 // pred_region
    _
  $region5: #{decoder_forward.4} parent=0 // pred_fallthru
    _
  // Predicated region
  $region6: #{decoder_forward.4} parent=0 // pred_check
    _
  $region7: #{decoder_forward.4} parent=0 // pred_check_branch
    %13 = sbr.rel (0) target = $region9
  $region8: #{decoder_forward.4} parent=0 // pred_region
    _
  $region9: #{decoder_forward.4} parent=0 // pred_fallthru
    _
  // Predicated region
  $region10: #{decoder_forward.4} parent=0 // pred_check
    _
  $region11: #{decoder_forward.4} parent=0 // pred_check_branch
    %15 = sbr.rel (0) target = $region13
  $region12: #{decoder_forward.4} parent=0 // pred_region
    _
  $region13: #{decoder_forward.4} parent=0 // pred_fallthru
    _
  // Predicated region
  $region14: #{decoder_forward.4} parent=0 // pred_check
    _
  $region15: #{decoder_forward.4} parent=0 // pred_check_branch
    %17 = sbr.rel (0) target = $region17
  $region16: #{decoder_forward.4} parent=0 // pred_region
    _
  $region17: #{decoder_forward.4} parent=0 // pred_fallthru
    _
  // Predicated region
  $region18: #{decoder_forward.4} parent=0 // pred_check
    _
  $region19: #{decoder_forward.4} parent=0 // pred_check_branch
    %19 = sbr.rel (0) target = $region21
  $region20: #{decoder_forward.4} parent=0 // pred_region
    _
  $region21: #{decoder_forward.4} parent=0 // pred_fallthru
    _
  %p21 = scmp.eq.s32.totalorder 0, 0
  // Predicated region
  $region22: #{decoder_forward.4} parent=0 // pred_check
    %p22 = pneg %p21
  $region23: #{decoder_forward.4} parent=0 // pred_check_branch
    %24 = sbr.rel (%p22) target = $region25
  $region24: #{decoder_forward.4} parent=0 // pred_region
    %vm25 = vcmask 254976
    %26 = vst.msk [vmem:[#allocation2] sm:$0x3] %vm25, 0.0
  $region25: #{decoder_forward.4} parent=0 // pred_fallthru
    _
  %v27 = vld [vmem:[%s1] sm:$0xf]
  %v28 = vld [vmem:[%s1 + $0x4] sm:$0xf]
  %v29 = vld [vmem:[%s1 + $0x8] sm:$0xf]
  %v30 = vld [vmem:[%s1 + $0xc] sm:$0xf]
  %s31 = scalar_lea.vmem %s1, 16
  %v32 = vld [vmem:[%s31] sm:$0xf]
  %v33 = vld [vmem:[%s31 + $0x4] sm:$0xf]
  %v34 = vld [vmem:[%s31 + $0x8] sm:$0xf]
  %v35 = vld [vmem:[%s31 + $0xc] sm:$0xf]
  %s36 = scalar_lea.vmem %s1, 32
  %v37 = vld [vmem:[%s36] sm:$0xf]
  %v38 = vld [vmem:[%s36 + $0x4] sm:$0xf]
  %v39 = vld [vmem:[%s36 + $0x8] sm:$0xf]
  %v40 = vld [vmem:[%s36 + $0xc] sm:$0xf]
  %v41 = vld [vmem:[%s2] sm:$0x1]
  %s42 = scalar_lea.vmem %s2, 1
  %v43 = vld [vmem:[%s42] sm:$0x1]
  %s44 = scalar_lea.vmem %s2, 2
  %v45 = vld [vmem:[%s44] sm:$0x1]
  %v46 = vld [vmem:[%s3] sm:$0xf]
  %v47 = vld [vmem:[%s3 + $0x4] sm:$0xf]
  %v48 = vld [vmem:[%s3 + $0x8] sm:$0xf]
  %v49 = vld [vmem:[%s3 + $0xc] sm:$0xf]
  %v50 = vld [vmem:[%s4] sm:$0x1]
  %v51 = vld [vmem:[#allocation2] sm:$0x3]
  %v52 = vpack.c.bf16 %v51, %v51
  %v54 = vlaneseq
  %v55 = vshrl.u32 %v54, 7
  %v56 = vsub.s32 0, %v55
  %v57 = vrot.slane %v41, %v56
  %v63 = vunpack.c.l.b16 %v27
  %v64 = vunpack.c.l.b16 %v28
  %v65 = vunpack.c.l.b16 %v29
  %v66 = vunpack.c.l.b16 %v30
  %v67 = vpack.c.b16 %v64, %v63
  %v68 = vpack.c.b16 %v66, %v65
  %vm71 = vcmask 261120
  %v73 = vsel %vm71, %v52, 0
  %75 = vmatprep.subr.bf16.mxu0 0
  %76 = vmatpush1.bf16.msra.mxu0 %v67
  %77 = vmatprep.subr.bf16.mxu0 0
  %78 = vmatpush1.bf16.msra.mxu0 %v68
  %79 = vmatprep.subr.bf16.mxu0 0
  %80 = vmatpush1.bf16.msra.mxu0 0
  %81 = vmatprep.subr.bf16.mxu0 0
  %82 = vmatpush1.bf16.msra.mxu0 0
  %83 = vmatprep.subr.bf16.mxu0 0
  %84 = vmatpush1.bf16.msra.mxu0 0
  %85 = vmatprep.subr.bf16.mxu0 0
  %86 = vmatpush1.bf16.msra.mxu0 0
  %87 = vmatprep.subr.bf16.mxu0 0
  %88 = vmatpush1.bf16.msra.mxu0 0
  %89 = vmatprep.subr.bf16.mxu0 0
  %90 = vmatpush1.bf16.msra.mxu0 0
  %91 = vmatprep.subr.bf16.mxu0 0
  %92 = vmatpush1.bf16.msra.mxu0 0
  %93 = vmatprep.subr.bf16.mxu0 0
  %94 = vmatpush1.bf16.msra.mxu0 0
  %95 = vmatprep.subr.bf16.mxu0 0
  %96 = vmatpush1.bf16.msra.mxu0 0
  %97 = vmatprep.subr.bf16.mxu0 0
  %98 = vmatpush1.bf16.msra.mxu0 0
  %99 = vmatprep.subr.bf16.mxu0 0
  %100 = vmatpush1.bf16.msra.mxu0 0
  %101 = vmatprep.subr.bf16.mxu0 0
  %102 = vmatpush1.bf16.msra.mxu0 0
  %103 = vmatprep.subr.bf16.mxu0 0
  %104 = vmatpush1.bf16.msra.mxu0 0
  %105 = vmatprep.subr.bf16.mxu0 0
  %106 = vmatpush1.bf16.msra.mxu0 0
  %107 = vmatprep.mubr.bf16.mxu0 0
  %108 = vmatmul.mubr.bf16.gmra.mrb[0].mxu0 %v73
  %v109 = vpop.f32.mrb[0].mxu0
  %v110 = vadd.f32 %v57, %v109
  %v111 = vpop.f32.mrb[0].mxu0
  %v112 = vpop.f32.mrb[0].mxu0
  %v113 = vpop.f32.mrb[0].mxu0
  %114 = vdwg.mxu0
  %v116 = vlaneseq
  %v117 = vshrl.u32 %v116, 7
  %v118 = vsub.s32 0, %v117
  %v119 = vrot.slane %v43, %v118
  %v125 = vunpack.c.l.b16 %v32
  %v126 = vunpack.c.l.b16 %v33
  %v127 = vunpack.c.l.b16 %v34
  %v128 = vunpack.c.l.b16 %v35
  %v129 = vpack.c.b16 %v126, %v125
  %v130 = vpack.c.b16 %v128, %v127
  %133 = vmatprep.subr.bf16.mxu0 0
  %134 = vmatpush1.bf16.msra.mxu0 %v129
  %135 = vmatprep.subr.bf16.mxu0 0
  %136 = vmatpush1.bf16.msra.mxu0 %v130
  %137 = vmatprep.subr.bf16.mxu0 0
  %138 = vmatpush1.bf16.msra.mxu0 0
  %139 = vmatprep.subr.bf16.mxu0 0
  %140 = vmatpush1.bf16.msra.mxu0 0
  %141 = vmatprep.subr.bf16.mxu0 0
  %142 = vmatpush1.bf16.msra.mxu0 0
  %143 = vmatprep.subr.bf16.mxu0 0
  %144 = vmatpush1.bf16.msra.mxu0 0
  %145 = vmatprep.subr.bf16.mxu0 0
  %146 = vmatpush1.bf16.msra.mxu0 0
  %147 = vmatprep.subr.bf16.mxu0 0
  %148 = vmatpush1.bf16.msra.mxu0 0
  %149 = vmatprep.subr.bf16.mxu0 0
  %150 = vmatpush1.bf16.msra.mxu0 0
  %151 = vmatprep.subr.bf16.mxu0 0
  %152 = vmatpush1.bf16.msra.mxu0 0
  %153 = vmatprep.subr.bf16.mxu0 0
  %154 = vmatpush1.bf16.msra.mxu0 0
  %155 = vmatprep.subr.bf16.mxu0 0
  %156 = vmatpush1.bf16.msra.mxu0 0
  %157 = vmatprep.subr.bf16.mxu0 0
  %158 = vmatpush1.bf16.msra.mxu0 0
  %159 = vmatprep.subr.bf16.mxu0 0
  %160 = vmatpush1.bf16.msra.mxu0 0
  %161 = vmatprep.subr.bf16.mxu0 0
  %162 = vmatpush1.bf16.msra.mxu0 0
  %163 = vmatprep.subr.bf16.mxu0 0
  %164 = vmatpush1.bf16.msra.mxu0 0
  %165 = vmatprep.mubr.bf16.mxu0 0
  %166 = vmatmul.mubr.bf16.gmra.mrb[0].mxu0 %v73
  %v167 = vpop.f32.mrb[0].mxu0
  %v168 = vadd.f32 %v119, %v167
  %v169 = vpop.f32.mrb[0].mxu0
  %v170 = vpop.f32.mrb[0].mxu0
  %v171 = vpop.f32.mrb[0].mxu0
  %172 = vdwg.mxu0
  %v174 = vlaneseq
  %v175 = vshrl.u32 %v174, 7
  %v176 = vsub.s32 0, %v175
  %v177 = vrot.slane %v45, %v176
  %v183 = vunpack.c.l.b16 %v37
  %v184 = vunpack.c.l.b16 %v38
  %v185 = vunpack.c.l.b16 %v39
  %v186 = vunpack.c.l.b16 %v40
  %v187 = vpack.c.b16 %v184, %v183
  %v188 = vpack.c.b16 %v186, %v185
  %191 = vmatprep.subr.bf16.mxu0 0
  %192 = vmatpush1.bf16.msra.mxu0 %v187
  %193 = vmatprep.subr.bf16.mxu0 0
  %194 = vmatpush1.bf16.msra.mxu0 %v188
  %195 = vmatprep.subr.bf16.mxu0 0
  %196 = vmatpush1.bf16.msra.mxu0 0
  %197 = vmatprep.subr.bf16.mxu0 0
  %198 = vmatpush1.bf16.msra.mxu0 0
  %199 = vmatprep.subr.bf16.mxu0 0
  %200 = vmatpush1.bf16.msra.mxu0 0
  %201 = vmatprep.subr.bf16.mxu0 0
  %202 = vmatpush1.bf16.msra.mxu0 0
  %203 = vmatprep.subr.bf16.mxu0 0
  %204 = vmatpush1.bf16.msra.mxu0 0
  %205 = vmatprep.subr.bf16.mxu0 0
  %206 = vmatpush1.bf16.msra.mxu0 0
  %207 = vmatprep.subr.bf16.mxu0 0
  %208 = vmatpush1.bf16.msra.mxu0 0
  %209 = vmatprep.subr.bf16.mxu0 0
  %210 = vmatpush1.bf16.msra.mxu0 0
  %211 = vmatprep.subr.bf16.mxu0 0
  %212 = vmatpush1.bf16.msra.mxu0 0
  %213 = vmatprep.subr.bf16.mxu0 0
  %214 = vmatpush1.bf16.msra.mxu0 0
  %215 = vmatprep.subr.bf16.mxu0 0
  %216 = vmatpush1.bf16.msra.mxu0 0
  %217 = vmatprep.subr.bf16.mxu0 0
  %218 = vmatpush1.bf16.msra.mxu0 0
  %219 = vmatprep.subr.bf16.mxu0 0
  %220 = vmatpush1.bf16.msra.mxu0 0
  %221 = vmatprep.subr.bf16.mxu0 0
  %222 = vmatpush1.bf16.msra.mxu0 0
  %223 = vmatprep.mubr.bf16.mxu0 0
  %224 = vmatmul.mubr.bf16.gmra.mrb[0].mxu0 %v73
  %v225 = vpop.f32.mrb[0].mxu0
  %v226 = vadd.f32 %v177, %v225
  %v227 = vpop.f32.mrb[0].mxu0
  %v228 = vpop.f32.mrb[0].mxu0
  %v229 = vpop.f32.mrb[0].mxu0
  %230 = vdwg.mxu0
  %v231 = vld [vmem:[%s0] sm:$0x3]
  %v232 = vadd.f32 %v231, %v110
  %v233 = vxor.u32 %v232, 2147483648
  %v234 = vmul.f32 %v233, 1.442695
  %v235 = vpow.pop %v234
  %v236 = vadd.f32 %v235, 1.0
  %v237 = vrcp.pop %v236
  %v238 = vmul.f32 1.0, %v237
  %s239 = scalar_lea.vmem %s0, 16
  %v240 = vld [vmem:[%s239] sm:$0x3]
  %v241 = vadd.f32 %v240, %v168
  %v242 = vxor.u32 %v241, 2147483648
  %v243 = vmul.f32 %v242, 1.442695
  %v244 = vpow.pop %v243
  %v245 = vadd.f32 %v244, 1.0
  %v246 = vrcp.pop %v245
  %v247 = vmul.f32 1.0, %v246
  %s248 = scalar_lea.vmem %s0, 32
  %v249 = vld [vmem:[%s248] sm:$0x3]
  %v250 = vmul.f32 %v238, %v226
  %v251 = vadd.f32 %v249, %v250
  %v252 = vtanh.pop %v251
  %v253 = vsub.f32 1.0, %v247
  %v254 = vmul.f32 %v253, %v252
  %v255 = vmul.f32 %v247, %v51
  %v256 = vadd.f32 %v254, %v255
  %v257 = vpack.c.bf16 %v256, %v256
  %v259 = vlaneseq
  %v260 = vshrl.u32 %v259, 7
  %v261 = vsub.s32 0, %v260
  %v262 = vrot.slane %v50, %v261
  %v268 = vunpack.c.l.b16 %v46
  %v269 = vunpack.c.l.b16 %v47
  %v270 = vunpack.c.l.b16 %v48
  %v271 = vunpack.c.l.b16 %v49
  %v272 = vpack.c.b16 %v269, %v268
  %v273 = vpack.c.b16 %v271, %v270
  %v277 = vsel %vm71, %v257, 0
  %279 = vmatprep.subr.bf16.mxu0 0
  %280 = vmatpush1.bf16.msra.mxu0 %v272
  %281 = vmatprep.subr.bf16.mxu0 0
  %282 = vmatpush1.bf16.msra.mxu0 %v273
  %283 = vmatprep.subr.bf16.mxu0 0
  %284 = vmatpush1.bf16.msra.mxu0 0
  %285 = vmatprep.subr.bf16.mxu0 0
  %286 = vmatpush1.bf16.msra.mxu0 0
  %287 = vmatprep.subr.bf16.mxu0 0
  %288 = vmatpush1.bf16.msra.mxu0 0
  %289 = vmatprep.subr.bf16.mxu0 0
  %290 = vmatpush1.bf16.msra.mxu0 0
  %291 = vmatprep.subr.bf16.mxu0 0
  %292 = vmatpush1.bf16.msra.mxu0 0
  %293 = vmatprep.subr.bf16.mxu0 0
  %294 = vmatpush1.bf16.msra.mxu0 0
  %295 = vmatprep.subr.bf16.mxu0 0
  %296 = vmatpush1.bf16.msra.mxu0 0
  %297 = vmatprep.subr.bf16.mxu0 0
  %298 = vmatpush1.bf16.msra.mxu0 0
  %299 = vmatprep.subr.bf16.mxu0 0
  %300 = vmatpush1.bf16.msra.mxu0 0
  %301 = vmatprep.subr.bf16.mxu0 0
  %302 = vmatpush1.bf16.msra.mxu0 0
  %303 = vmatprep.subr.bf16.mxu0 0
  %304 = vmatpush1.bf16.msra.mxu0 0
  %305 = vmatprep.subr.bf16.mxu0 0
  %306 = vmatpush1.bf16.msra.mxu0 0
  %307 = vmatprep.subr.bf16.mxu0 0
  %308 = vmatpush1.bf16.msra.mxu0 0
  %309 = vmatprep.subr.bf16.mxu0 0
  %310 = vmatpush1.bf16.msra.mxu0 0
  %311 = vmatprep.mubr.bf16.mxu0 0
  %312 = vmatmul.mubr.bf16.gmra.mrb[0].mxu0 %v277
  %v313 = vpop.f32.mrb[0].mxu0
  %v314 = vadd.f32 %v262, %v313
  %v315 = vpop.f32.mrb[0].mxu0
  %v316 = vpop.f32.mrb[0].mxu0
  %v317 = vpop.f32.mrb[0].mxu0
  %318 = vdwg.mxu0
  %v319 = vtanh.pop %v314
  %vm320 = vcmask 123904
  %321 = vst.msk [vmem:[%s5] sm:$0x3] %vm320, %v319
  %322 = vmatprep.subr.bf16.mxu0 0
  %323 = vmatpush1.bf16.msra.mxu0 %v67
  %324 = vmatprep.subr.bf16.mxu0 0
  %325 = vmatpush1.bf16.msra.mxu0 %v68
  %326 = vmatprep.subr.bf16.mxu0 0
  %327 = vmatpush1.bf16.msra.mxu0 0
  %328 = vmatprep.subr.bf16.mxu0 0
  %329 = vmatpush1.bf16.msra.mxu0 0
  %330 = vmatprep.subr.bf16.mxu0 0
  %331 = vmatpush1.bf16.msra.mxu0 0
  %332 = vmatprep.subr.bf16.mxu0 0
  %333 = vmatpush1.bf16.msra.mxu0 0
  %334 = vmatprep.subr.bf16.mxu0 0
  %335 = vmatpush1.bf16.msra.mxu0 0
  %336 = vmatprep.subr.bf16.mxu0 0
  %337 = vmatpush1.bf16.msra.mxu0 0
  %338 = vmatprep.subr.bf16.mxu0 0
  %339 = vmatpush1.bf16.msra.mxu0 0
  %340 = vmatprep.subr.bf16.mxu0 0
  %341 = vmatpush1.bf16.msra.mxu0 0
  %342 = vmatprep.subr.bf16.mxu0 0
  %343 = vmatpush1.bf16.msra.mxu0 0
  %344 = vmatprep.subr.bf16.mxu0 0
  %345 = vmatpush1.bf16.msra.mxu0 0
  %346 = vmatprep.subr.bf16.mxu0 0
  %347 = vmatpush1.bf16.msra.mxu0 0
  %348 = vmatprep.subr.bf16.mxu0 0
  %349 = vmatpush1.bf16.msra.mxu0 0
  %350 = vmatprep.subr.bf16.mxu0 0
  %351 = vmatpush1.bf16.msra.mxu0 0
  %352 = vmatprep.subr.bf16.mxu0 0
  %353 = vmatpush1.bf16.msra.mxu0 0
  %354 = vmatprep.mubr.bf16.mxu0 0
  %355 = vmatmul.mubr.bf16.gmra.mrb[0].mxu0 %v277
  %v356 = vpop.f32.mrb[0].mxu0
  %v357 = vadd.f32 %v57, %v356
  %v358 = vpop.f32.mrb[0].mxu0
  %v359 = vpop.f32.mrb[0].mxu0
  %v360 = vpop.f32.mrb[0].mxu0
  %361 = vdwg.mxu0
  %362 = vmatprep.subr.bf16.mxu0 0
  %363 = vmatpush1.bf16.msra.mxu0 %v129
  %364 = vmatprep.subr.bf16.mxu0 0
  %365 = vmatpush1.bf16.msra.mxu0 %v130
  %366 = vmatprep.subr.bf16.mxu0 0
  %367 = vmatpush1.bf16.msra.mxu0 0
  %368 = vmatprep.subr.bf16.mxu0 0
  %369 = vmatpush1.bf16.msra.mxu0 0
  %370 = vmatprep.subr.bf16.mxu0 0
  %371 = vmatpush1.bf16.msra.mxu0 0
  %372 = vmatprep.subr.bf16.mxu0 0
  %373 = vmatpush1.bf16.msra.mxu0 0
  %374 = vmatprep.subr.bf16.mxu0 0
  %375 = vmatpush1.bf16.msra.mxu0 0
  %376 = vmatprep.subr.bf16.mxu0 0
  %377 = vmatpush1.bf16.msra.mxu0 0
  %378 = vmatprep.subr.bf16.mxu0 0
  %379 = vmatpush1.bf16.msra.mxu0 0
  %380 = vmatprep.subr.bf16.mxu0 0
  %381 = vmatpush1.bf16.msra.mxu0 0
  %382 = vmatprep.subr.bf16.mxu0 0
  %383 = vmatpush1.bf16.msra.mxu0 0
  %384 = vmatprep.subr.bf16.mxu0 0
  %385 = vmatpush1.bf16.msra.mxu0 0
  %386 = vmatprep.subr.bf16.mxu0 0
  %387 = vmatpush1.bf16.msra.mxu0 0
  %388 = vmatprep.subr.bf16.mxu0 0
  %389 = vmatpush1.bf16.msra.mxu0 0
  %390 = vmatprep.subr.bf16.mxu0 0
  %391 = vmatpush1.bf16.msra.mxu0 0
  %392 = vmatprep.subr.bf16.mxu0 0
  %393 = vmatpush1.bf16.msra.mxu0 0
  %394 = vmatprep.mubr.bf16.mxu0 0
  %395 = vmatmul.mubr.bf16.gmra.mrb[0].mxu0 %v277
  %v396 = vpop.f32.mrb[0].mxu0
  %v397 = vadd.f32 %v119, %v396
  %v398 = vpop.f32.mrb[0].mxu0
  %v399 = vpop.f32.mrb[0].mxu0
  %v400 = vpop.f32.mrb[0].mxu0
  %401 = vdwg.mxu0
  %402 = vmatprep.subr.bf16.mxu0 0
  %403 = vmatpush1.bf16.msra.mxu0 %v187
  %404 = vmatprep.subr.bf16.mxu0 0
  %405 = vmatpush1.bf16.msra.mxu0 %v188
  %406 = vmatprep.subr.bf16.mxu0 0
  %407 = vmatpush1.bf16.msra.mxu0 0
  %408 = vmatprep.subr.bf16.mxu0 0
  %409 = vmatpush1.bf16.msra.mxu0 0
  %410 = vmatprep.subr.bf16.mxu0 0
  %411 = vmatpush1.bf16.msra.mxu0 0
  %412 = vmatprep.subr.bf16.mxu0 0
  %413 = vmatpush1.bf16.msra.mxu0 0
  %414 = vmatprep.subr.bf16.mxu0 0
  %415 = vmatpush1.bf16.msra.mxu0 0
  %416 = vmatprep.subr.bf16.mxu0 0
  %417 = vmatpush1.bf16.msra.mxu0 0
  %418 = vmatprep.subr.bf16.mxu0 0
  %419 = vmatpush1.bf16.msra.mxu0 0
  %420 = vmatprep.subr.bf16.mxu0 0
  %421 = vmatpush1.bf16.msra.mxu0 0
  %422 = vmatprep.subr.bf16.mxu0 0
  %423 = vmatpush1.bf16.msra.mxu0 0
  %424 = vmatprep.subr.bf16.mxu0 0
  %425 = vmatpush1.bf16.msra.mxu0 0
  %426 = vmatprep.subr.bf16.mxu0 0
  %427 = vmatpush1.bf16.msra.mxu0 0
  %428 = vmatprep.subr.bf16.mxu0 0
  %429 = vmatpush1.bf16.msra.mxu0 0
  %430 = vmatprep.subr.bf16.mxu0 0
  %431 = vmatpush1.bf16.msra.mxu0 0
  %432 = vmatprep.subr.bf16.mxu0 0
  %433 = vmatpush1.bf16.msra.mxu0 0
  %434 = vmatprep.mubr.bf16.mxu0 0
  %435 = vmatmul.mubr.bf16.gmra.mrb[0].mxu0 %v277
  %v436 = vpop.f32.mrb[0].mxu0
  %v437 = vadd.f32 %v177, %v436
  %v438 = vpop.f32.mrb[0].mxu0
  %v439 = vpop.f32.mrb[0].mxu0
  %v440 = vpop.f32.mrb[0].mxu0
  %441 = vdwg.mxu0
  %s442 = scalar_lea.vmem %s0, 2
  %v443 = vld [vmem:[%s442] sm:$0x3]
  %v444 = vadd.f32 %v443, %v357
  %v445 = vxor.u32 %v444, 2147483648
  %v446 = vmul.f32 %v445, 1.442695
  %v447 = vpow.pop %v446
  %v448 = vadd.f32 %v447, 1.0
  %v449 = vrcp.pop %v448
  %v450 = vmul.f32 1.0, %v449
  %s451 = scalar_lea.vmem %s0, 18
  %v452 = vld [vmem:[%s451] sm:$0x3]
  %v453 = vadd.f32 %v452, %v397
  %v454 = vxor.u32 %v453, 2147483648
  %v455 = vmul.f32 %v454, 1.442695
  %v456 = vpow.pop %v455
  %v457 = vadd.f32 %v456, 1.0
  %v458 = vrcp.pop %v457
  %v459 = vmul.f32 1.0, %v458
  %s460 = scalar_lea.vmem %s0, 34
  %v461 = vld [vmem:[%s460] sm:$0x3]
  %v462 = vmul.f32 %v450, %v437
  %v463 = vadd.f32 %v461, %v462
  %v464 = vtanh.pop %v463
  %v465 = vsub.f32 1.0, %v459
  %v466 = vmul.f32 %v465, %v464
  %v467 = vmul.f32 %v459, %v256
  %v468 = vadd.f32 %v466, %v467
  %v469 = vpack.c.bf16 %v468, %v468
  %v471 = vsel %vm71, %v469, 0
  %473 = vmatprep.subr.bf16.mxu0 0
  %474 = vmatpush1.bf16.msra.mxu0 %v272
  %475 = vmatprep.subr.bf16.mxu0 0
  %476 = vmatpush1.bf16.msra.mxu0 %v273
  %477 = vmatprep.subr.bf16.mxu0 0
  %478 = vmatpush1.bf16.msra.mxu0 0
  %479 = vmatprep.subr.bf16.mxu0 0
  %480 = vmatpush1.bf16.msra.mxu0 0
  %481 = vmatprep.subr.bf16.mxu0 0
  %482 = vmatpush1.bf16.msra.mxu0 0
  %483 = vmatprep.subr.bf16.mxu0 0
  %484 = vmatpush1.bf16.msra.mxu0 0
  %485 = vmatprep.subr.bf16.mxu0 0
  %486 = vmatpush1.bf16.msra.mxu0 0
  %487 = vmatprep.subr.bf16.mxu0 0
  %488 = vmatpush1.bf16.msra.mxu0 0
  %489 = vmatprep.subr.bf16.mxu0 0
  %490 = vmatpush1.bf16.msra.mxu0 0
  %491 = vmatprep.subr.bf16.mxu0 0
  %492 = vmatpush1.bf16.msra.mxu0 0
  %493 = vmatprep.subr.bf16.mxu0 0
  %494 = vmatpush1.bf16.msra.mxu0 0
  %495 = vmatprep.subr.bf16.mxu0 0
  %496 = vmatpush1.bf16.msra.mxu0 0
  %497 = vmatprep.subr.bf16.mxu0 0
  %498 = vmatpush1.bf16.msra.mxu0 0
  %499 = vmatprep.subr.bf16.mxu0 0
  %500 = vmatpush1.bf16.msra.mxu0 0
  %501 = vmatprep.subr.bf16.mxu0 0
  %502 = vmatpush1.bf16.msra.mxu0 0
  %503 = vmatprep.subr.bf16.mxu0 0
  %504 = vmatpush1.bf16.msra.mxu0 0
  %505 = vmatprep.mubr.bf16.mxu0 0
  %506 = vmatmul.mubr.bf16.gmra.mrb[0].mxu0 %v471
  %v507 = vpop.f32.mrb[0].mxu0
  %v508 = vadd.f32 %v262, %v507
  %v509 = vpop.f32.mrb[0].mxu0
  %v510 = vpop.f32.mrb[0].mxu0
  %v511 = vpop.f32.mrb[0].mxu0
  %512 = vdwg.mxu0
  %v513 = vtanh.pop %v508
  %s514 = scalar_lea.vmem %s5, 2
  %515 = vst.msk [vmem:[%s514] sm:$0x3] %vm320, %v513
  %516 = vmatprep.subr.bf16.mxu0 0
  %517 = vmatpush1.bf16.msra.mxu0 %v67
  %518 = vmatprep.subr.bf16.mxu0 0
  %519 = vmatpush1.bf16.msra.mxu0 %v68
  %520 = vmatprep.subr.bf16.mxu0 0
  %521 = vmatpush1.bf16.msra.mxu0 0
  %522 = vmatprep.subr.bf16.mxu0 0
  %523 = vmatpush1.bf16.msra.mxu0 0
  %524 = vmatprep.subr.bf16.mxu0 0
  %525 = vmatpush1.bf16.msra.mxu0 0
  %526 = vmatprep.subr.bf16.mxu0 0
  %527 = vmatpush1.bf16.msra.mxu0 0
  %528 = vmatprep.subr.bf16.mxu0 0
  %529 = vmatpush1.bf16.msra.mxu0 0
  %530 = vmatprep.subr.bf16.mxu0 0
  %531 = vmatpush1.bf16.msra.mxu0 0
  %532 = vmatprep.subr.bf16.mxu0 0
  %533 = vmatpush1.bf16.msra.mxu0 0
  %534 = vmatprep.subr.bf16.mxu0 0
  %535 = vmatpush1.bf16.msra.mxu0 0
  %536 = vmatprep.subr.bf16.mxu0 0
  %537 = vmatpush1.bf16.msra.mxu0 0
  %538 = vmatprep.subr.bf16.mxu0 0
  %539 = vmatpush1.bf16.msra.mxu0 0
  %540 = vmatprep.subr.bf16.mxu0 0
  %541 = vmatpush1.bf16.msra.mxu0 0
  %542 = vmatprep.subr.bf16.mxu0 0
  %543 = vmatpush1.bf16.msra.mxu0 0
  %544 = vmatprep.subr.bf16.mxu0 0
  %545 = vmatpush1.bf16.msra.mxu0 0
  %546 = vmatprep.subr.bf16.mxu0 0
  %547 = vmatpush1.bf16.msra.mxu0 0
  %548 = vmatprep.mubr.bf16.mxu0 0
  %549 = vmatmul.mubr.bf16.gmra.mrb[0].mxu0 %v471
  %v550 = vpop.f32.mrb[0].mxu0
  %v551 = vadd.f32 %v57, %v550
  %v552 = vpop.f32.mrb[0].mxu0
  %v553 = vpop.f32.mrb[0].mxu0
  %v554 = vpop.f32.mrb[0].mxu0
  %555 = vdwg.mxu0
  %556 = vmatprep.subr.bf16.mxu0 0
  %557 = vmatpush1.bf16.msra.mxu0 %v129
  %558 = vmatprep.subr.bf16.mxu0 0
  %559 = vmatpush1.bf16.msra.mxu0 %v130
  %560 = vmatprep.subr.bf16.mxu0 0
  %561 = vmatpush1.bf16.msra.mxu0 0
  %562 = vmatprep.subr.bf16.mxu0 0
  %563 = vmatpush1.bf16.msra.mxu0 0
  %564 = vmatprep.subr.bf16.mxu0 0
  %565 = vmatpush1.bf16.msra.mxu0 0
  %566 = vmatprep.subr.bf16.mxu0 0
  %567 = vmatpush1.bf16.msra.mxu0 0
  %568 = vmatprep.subr.bf16.mxu0 0
  %569 = vmatpush1.bf16.msra.mxu0 0
  %570 = vmatprep.subr.bf16.mxu0 0
  %571 = vmatpush1.bf16.msra.mxu0 0
  %572 = vmatprep.subr.bf16.mxu0 0
  %573 = vmatpush1.bf16.msra.mxu0 0
  %574 = vmatprep.subr.bf16.mxu0 0
  %575 = vmatpush1.bf16.msra.mxu0 0
  %576 = vmatprep.subr.bf16.mxu0 0
  %577 = vmatpush1.bf16.msra.mxu0 0
  %578 = vmatprep.subr.bf16.mxu0 0
  %579 = vmatpush1.bf16.msra.mxu0 0
  %580 = vmatprep.subr.bf16.mxu0 0
  %581 = vmatpush1.bf16.msra.mxu0 0
  %582 = vmatprep.subr.bf16.mxu0 0
  %583 = vmatpush1.bf16.msra.mxu0 0
  %584 = vmatprep.subr.bf16.mxu0 0
  %585 = vmatpush1.bf16.msra.mxu0 0
  %586 = vmatprep.subr.bf16.mxu0 0
  %587 = vmatpush1.bf16.msra.mxu0 0
  %588 = vmatprep.mubr.bf16.mxu0 0
  %589 = vmatmul.mubr.bf16.gmra.mrb[0].mxu0 %v471
  %v590 = vpop.f32.mrb[0].mxu0
  %v591 = vadd.f32 %v119, %v590
  %v592 = vpop.f32.mrb[0].mxu0
  %v593 = vpop.f32.mrb[0].mxu0
  %v594 = vpop.f32.mrb[0].mxu0
  %595 = vdwg.mxu0
  %596 = vmatprep.subr.bf16.mxu0 0
  %597 = vmatpush1.bf16.msra.mxu0 %v187
  %598 = vmatprep.subr.bf16.mxu0 0
  %599 = vmatpush1.bf16.msra.mxu0 %v188
  %600 = vmatprep.subr.bf16.mxu0 0
  %601 = vmatpush1.bf16.msra.mxu0 0
  %602 = vmatprep.subr.bf16.mxu0 0
  %603 = vmatpush1.bf16.msra.mxu0 0
  %604 = vmatprep.subr.bf16.mxu0 0
  %605 = vmatpush1.bf16.msra.mxu0 0
  %606 = vmatprep.subr.bf16.mxu0 0
  %607 = vmatpush1.bf16.msra.mxu0 0
  %608 = vmatprep.subr.bf16.mxu0 0
  %609 = vmatpush1.bf16.msra.mxu0 0
  %610 = vmatprep.subr.bf16.mxu0 0
  %611 = vmatpush1.bf16.msra.mxu0 0
  %612 = vmatprep.subr.bf16.mxu0 0
  %613 = vmatpush1.bf16.msra.mxu0 0
  %614 = vmatprep.subr.bf16.mxu0 0
  %615 = vmatpush1.bf16.msra.mxu0 0
  %616 = vmatprep.subr.bf16.mxu0 0
  %617 = vmatpush1.bf16.msra.mxu0 0
  %618 = vmatprep.subr.bf16.mxu0 0
  %619 = vmatpush1.bf16.msra.mxu0 0
  %620 = vmatprep.subr.bf16.mxu0 0
  %621 = vmatpush1.bf16.msra.mxu0 0
  %622 = vmatprep.subr.bf16.mxu0 0
  %623 = vmatpush1.bf16.msra.mxu0 0
  %624 = vmatprep.subr.bf16.mxu0 0
  %625 = vmatpush1.bf16.msra.mxu0 0
  %626 = vmatprep.subr.bf16.mxu0 0
  %627 = vmatpush1.bf16.msra.mxu0 0
  %628 = vmatprep.mubr.bf16.mxu0 0
  %629 = vmatmul.mubr.bf16.gmra.mrb[0].mxu0 %v471
  %v630 = vpop.f32.mrb[0].mxu0
  %v631 = vadd.f32 %v177, %v630
  %v632 = vpop.f32.mrb[0].mxu0
  %v633 = vpop.f32.mrb[0].mxu0
  %v634 = vpop.f32.mrb[0].mxu0
  %635 = vdwg.mxu0
  %s636 = scalar_lea.vmem %s0, 4
  %v637 = vld [vmem:[%s636] sm:$0x3]
  %v638 = vadd.f32 %v637, %v551
  %v639 = vxor.u32 %v638, 2147483648
  %v640 = vmul.f32 %v639, 1.442695
  %v641 = vpow.pop %v640
  %v642 = vadd.f32 %v641, 1.0
  %v643 = vrcp.pop %v642
  %v644 = vmul.f32 1.0, %v643
  %s645 = scalar_lea.vmem %s0, 20
  %v646 = vld [vmem:[%s645] sm:$0x3]
  %v647 = vadd.f32 %v646, %v591
  %v648 = vxor.u32 %v647, 2147483648
  %v649 = vmul.f32 %v648, 1.442695
  %v650 = vpow.pop %v649
  %v651 = vadd.f32 %v650, 1.0
  %v652 = vrcp.pop %v651
  %v653 = vmul.f32 1.0, %v652
  %s654 = scalar_lea.vmem %s0, 36
  %v655 = vld [vmem:[%s654] sm:$0x3]
  %v656 = vmul.f32 %v644, %v631
  %v657 = vadd.f32 %v655, %v656
  %v658 = vtanh.pop %v657
  %v659 = vsub.f32 1.0, %v653
  %v660 = vmul.f32 %v659, %v658
  %v661 = vmul.f32 %v653, %v468
  %v662 = vadd.f32 %v660, %v661
  %v663 = vpack.c.bf16 %v662, %v662
  %v665 = vsel %vm71, %v663, 0
  %667 = vmatprep.subr.bf16.mxu0 0
  %668 = vmatpush1.bf16.msra.mxu0 %v272
  %669 = vmatprep.subr.bf16.mxu0 0
  %670 = vmatpush1.bf16.msra.mxu0 %v273
  %671 = vmatprep.subr.bf16.mxu0 0
  %672 = vmatpush1.bf16.msra.mxu0 0
  %673 = vmatprep.subr.bf16.mxu0 0
  %674 = vmatpush1.bf16.msra.mxu0 0
  %675 = vmatprep.subr.bf16.mxu0 0
  %676 = vmatpush1.bf16.msra.mxu0 0
  %677 = vmatprep.subr.bf16.mxu0 0
  %678 = vmatpush1.bf16.msra.mxu0 0
  %679 = vmatprep.subr.bf16.mxu0 0
  %680 = vmatpush1.bf16.msra.mxu0 0
  %681 = vmatprep.subr.bf16.mxu0 0
  %682 = vmatpush1.bf16.msra.mxu0 0
  %683 = vmatprep.subr.bf16.mxu0 0
  %684 = vmatpush1.bf16.msra.mxu0 0
  %685 = vmatprep.subr.bf16.mxu0 0
  %686 = vmatpush1.bf16.msra.mxu0 0
  %687 = vmatprep.subr.bf16.mxu0 0
  %688 = vmatpush1.bf16.msra.mxu0 0
  %689 = vmatprep.subr.bf16.mxu0 0
  %690 = vmatpush1.bf16.msra.mxu0 0
  %691 = vmatprep.subr.bf16.mxu0 0
  %692 = vmatpush1.bf16.msra.mxu0 0
  %693 = vmatprep.subr.bf16.mxu0 0
  %694 = vmatpush1.bf16.msra.mxu0 0
  %695 = vmatprep.subr.bf16.mxu0 0
  %696 = vmatpush1.bf16.msra.mxu0 0
  %697 = vmatprep.subr.bf16.mxu0 0
  %698 = vmatpush1.bf16.msra.mxu0 0
  %699 = vmatprep.mubr.bf16.mxu0 0
  %700 = vmatmul.mubr.bf16.gmra.mrb[0].mxu0 %v665
  %v701 = vpop.f32.mrb[0].mxu0
  %v702 = vadd.f32 %v262, %v701
  %v703 = vpop.f32.mrb[0].mxu0
  %v704 = vpop.f32.mrb[0].mxu0
  %v705 = vpop.f32.mrb[0].mxu0
  %706 = vdwg.mxu0
  %v707 = vtanh.pop %v702
  %s708 = scalar_lea.vmem %s5, 4
  %709 = vst.msk [vmem:[%s708] sm:$0x3] %vm320, %v707
  %710 = vmatprep.subr.bf16.mxu0 0
  %711 = vmatpush1.bf16.msra.mxu0 %v67
  %712 = vmatprep.subr.bf16.mxu0 0
  %713 = vmatpush1.bf16.msra.mxu0 %v68
  %714 = vmatprep.subr.bf16.mxu0 0
  %715 = vmatpush1.bf16.msra.mxu0 0
  %716 = vmatprep.subr.bf16.mxu0 0
  %717 = vmatpush1.bf16.msra.mxu0 0
  %718 = vmatprep.subr.bf16.mxu0 0
  %719 = vmatpush1.bf16.msra.mxu0 0
  %720 = vmatprep.subr.bf16.mxu0 0
  %721 = vmatpush1.bf16.msra.mxu0 0
  %722 = vmatprep.subr.bf16.mxu0 0
  %723 = vmatpush1.bf16.msra.mxu0 0
  %724 = vmatprep.subr.bf16.mxu0 0
  %725 = vmatpush1.bf16.msra.mxu0 0
  %726 = vmatprep.subr.bf16.mxu0 0
  %727 = vmatpush1.bf16.msra.mxu0 0
  %728 = vmatprep.subr.bf16.mxu0 0
  %729 = vmatpush1.bf16.msra.mxu0 0
  %730 = vmatprep.subr.bf16.mxu0 0
  %731 = vmatpush1.bf16.msra.mxu0 0
  %732 = vmatprep.subr.bf16.mxu0 0
  %733 = vmatpush1.bf16.msra.mxu0 0
  %734 = vmatprep.subr.bf16.mxu0 0
  %735 = vmatpush1.bf16.msra.mxu0 0
  %736 = vmatprep.subr.bf16.mxu0 0
  %737 = vmatpush1.bf16.msra.mxu0 0
  %738 = vmatprep.subr.bf16.mxu0 0
  %739 = vmatpush1.bf16.msra.mxu0 0
  %740 = vmatprep.subr.bf16.mxu0 0
  %741 = vmatpush1.bf16.msra.mxu0 0
  %742 = vmatprep.mubr.bf16.mxu0 0
  %743 = vmatmul.mubr.bf16.gmra.mrb[0].mxu0 %v665
  %v744 = vpop.f32.mrb[0].mxu0
  %v745 = vadd.f32 %v57, %v744
  %v746 = vpop.f32.mrb[0].mxu0
  %v747 = vpop.f32.mrb[0].mxu0
  %v748 = vpop.f32.mrb[0].mxu0
  %749 = vdwg.mxu0
  %750 = vmatprep.subr.bf16.mxu0 0
  %751 = vmatpush1.bf16.msra.mxu0 %v129
  %752 = vmatprep.subr.bf16.mxu0 0
  %753 = vmatpush1.bf16.msra.mxu0 %v130
  %754 = vmatprep.subr.bf16.mxu0 0
  %755 = vmatpush1.bf16.msra.mxu0 0
  %756 = vmatprep.subr.bf16.mxu0 0
  %757 = vmatpush1.bf16.msra.mxu0 0
  %758 = vmatprep.subr.bf16.mxu0 0
  %759 = vmatpush1.bf16.msra.mxu0 0
  %760 = vmatprep.subr.bf16.mxu0 0
  %761 = vmatpush1.bf16.msra.mxu0 0
  %762 = vmatprep.subr.bf16.mxu0 0
  %763 = vmatpush1.bf16.msra.mxu0 0
  %764 = vmatprep.subr.bf16.mxu0 0
  %765 = vmatpush1.bf16.msra.mxu0 0
  %766 = vmatprep.subr.bf16.mxu0 0
  %767 = vmatpush1.bf16.msra.mxu0 0
  %768 = vmatprep.subr.bf16.mxu0 0
  %769 = vmatpush1.bf16.msra.mxu0 0
  %770 = vmatprep.subr.bf16.mxu0 0
  %771 = vmatpush1.bf16.msra.mxu0 0
  %772 = vmatprep.subr.bf16.mxu0 0
  %773 = vmatpush1.bf16.msra.mxu0 0
  %774 = vmatprep.subr.bf16.mxu0 0
  %775 = vmatpush1.bf16.msra.mxu0 0
  %776 = vmatprep.subr.bf16.mxu0 0
  %777 = vmatpush1.bf16.msra.mxu0 0
  %778 = vmatprep.subr.bf16.mxu0 0
  %779 = vmatpush1.bf16.msra.mxu0 0
  %780 = vmatprep.subr.bf16.mxu0 0
  %781 = vmatpush1.bf16.msra.mxu0 0
  %782 = vmatprep.mubr.bf16.mxu0 0
  %783 = vmatmul.mubr.bf16.gmra.mrb[0].mxu0 %v665
  %v784 = vpop.f32.mrb[0].mxu0
  %v785 = vadd.f32 %v119, %v784
  %v786 = vpop.f32.mrb[0].mxu0
  %v787 = vpop.f32.mrb[0].mxu0
  %v788 = vpop.f32.mrb[0].mxu0
  %789 = vdwg.mxu0
  %790 = vmatprep.subr.bf16.mxu0 0
  %791 = vmatpush1.bf16.msra.mxu0 %v187
  %792 = vmatprep.subr.bf16.mxu0 0
  %793 = vmatpush1.bf16.msra.mxu0 %v188
  %794 = vmatprep.subr.bf16.mxu0 0
  %795 = vmatpush1.bf16.msra.mxu0 0
  %796 = vmatprep.subr.bf16.mxu0 0
  %797 = vmatpush1.bf16.msra.mxu0 0
  %798 = vmatprep.subr.bf16.mxu0 0
  %799 = vmatpush1.bf16.msra.mxu0 0
  %800 = vmatprep.subr.bf16.mxu0 0
  %801 = vmatpush1.bf16.msra.mxu0 0
  %802 = vmatprep.subr.bf16.mxu0 0
  %803 = vmatpush1.bf16.msra.mxu0 0
  %804 = vmatprep.subr.bf16.mxu0 0
  %805 = vmatpush1.bf16.msra.mxu0 0
  %806 = vmatprep.subr.bf16.mxu0 0
  %807 = vmatpush1.bf16.msra.mxu0 0
  %808 = vmatprep.subr.bf16.mxu0 0
  %809 = vmatpush1.bf16.msra.mxu0 0
  %810 = vmatprep.subr.bf16.mxu0 0
  %811 = vmatpush1.bf16.msra.mxu0 0
  %812 = vmatprep.subr.bf16.mxu0 0
  %813 = vmatpush1.bf16.msra.mxu0 0
  %814 = vmatprep.subr.bf16.mxu0 0
  %815 = vmatpush1.bf16.msra.mxu0 0
  %816 = vmatprep.subr.bf16.mxu0 0
  %817 = vmatpush1.bf16.msra.mxu0 0
  %818 = vmatprep.subr.bf16.mxu0 0
  %819 = vmatpush1.bf16.msra.mxu0 0
  %820 = vmatprep.subr.bf16.mxu0 0
  %821 = vmatpush1.bf16.msra.mxu0 0
  %822 = vmatprep.mubr.bf16.mxu0 0
  %823 = vmatmul.mubr.bf16.gmra.mrb[0].mxu0 %v665
  %v824 = vpop.f32.mrb[0].mxu0
  %v825 = vadd.f32 %v177, %v824
  %v826 = vpop.f32.mrb[0].mxu0
  %v827 = vpop.f32.mrb[0].mxu0
  %v828 = vpop.f32.mrb[0].mxu0
  %829 = vdwg.mxu0
  %s830 = scalar_lea.vmem %s0, 6
  %v831 = vld [vmem:[%s830] sm:$0x3]
  %v832 = vadd.f32 %v831, %v745
  %v833 = vxor.u32 %v832, 2147483648
  %v834 = vmul.f32 %v833, 1.442695
  %v835 = vpow.pop %v834
  %v836 = vadd.f32 %v835, 1.0
  %v837 = vrcp.pop %v836
  %v838 = vmul.f32 1.0, %v837
  %s839 = scalar_lea.vmem %s0, 22
  %v840 = vld [vmem:[%s839] sm:$0x3]
  %v841 = vadd.f32 %v840, %v785
  %v842 = vxor.u32 %v841, 2147483648
  %v843 = vmul.f32 %v842, 1.442695
  %v844 = vpow.pop %v843
  %v845 = vadd.f32 %v844, 1.0
  %v846 = vrcp.pop %v845
  %v847 = vmul.f32 1.0, %v846
  %s848 = scalar_lea.vmem %s0, 38
  %v849 = vld [vmem:[%s848] sm:$0x3]
  %v850 = vmul.f32 %v838, %v825
  %v851 = vadd.f32 %v849, %v850
  %v852 = vtanh.pop %v851
  %v853 = vsub.f32 1.0, %v847
  %v854 = vmul.f32 %v853, %v852
  %v855 = vmul.f32 %v847, %v662
  %v856 = vadd.f32 %v854, %v855
  %v857 = vpack.c.bf16 %v856, %v856
  %v859 = vsel %vm71, %v857, 0
  %861 = vmatprep.subr.bf16.mxu0 0
  %862 = vmatpush1.bf16.msra.mxu0 %v272
  %863 = vmatprep.subr.bf16.mxu0 0
  %864 = vmatpush1.bf16.msra.mxu0 %v273
  %865 = vmatprep.subr.bf16.mxu0 0
  %866 = vmatpush1.bf16.msra.mxu0 0
  %867 = vmatprep.subr.bf16.mxu0 0
  %868 = vmatpush1.bf16.msra.mxu0 0
  %869 = vmatprep.subr.bf16.mxu0 0
  %870 = vmatpush1.bf16.msra.mxu0 0
  %871 = vmatprep.subr.bf16.mxu0 0
  %872 = vmatpush1.bf16.msra.mxu0 0
  %873 = vmatprep.subr.bf16.mxu0 0
  %874 = vmatpush1.bf16.msra.mxu0 0
  %875 = vmatprep.subr.bf16.mxu0 0
  %876 = vmatpush1.bf16.msra.mxu0 0
  %877 = vmatprep.subr.bf16.mxu0 0
  %878 = vmatpush1.bf16.msra.mxu0 0
  %879 = vmatprep.subr.bf16.mxu0 0
  %880 = vmatpush1.bf16.msra.mxu0 0
  %881 = vmatprep.subr.bf16.mxu0 0
  %882 = vmatpush1.bf16.msra.mxu0 0
  %883 = vmatprep.subr.bf16.mxu0 0
  %884 = vmatpush1.bf16.msra.mxu0 0
  %885 = vmatprep.subr.bf16.mxu0 0
  %886 = vmatpush1.bf16.msra.mxu0 0
  %887 = vmatprep.subr.bf16.mxu0 0
  %888 = vmatpush1.bf16.msra.mxu0 0
  %889 = vmatprep.subr.bf16.mxu0 0
  %890 = vmatpush1.bf16.msra.mxu0 0
  %891 = vmatprep.subr.bf16.mxu0 0
  %892 = vmatpush1.bf16.msra.mxu0 0
  %893 = vmatprep.mubr.bf16.mxu0 0
  %894 = vmatmul.mubr.bf16.gmra.mrb[0].mxu0 %v859
  %v895 = vpop.f32.mrb[0].mxu0
  %v896 = vadd.f32 %v262, %v895
  %v897 = vpop.f32.mrb[0].mxu0
  %v898 = vpop.f32.mrb[0].mxu0
  %v899 = vpop.f32.mrb[0].mxu0
  %900 = vdwg.mxu0
  %v901 = vtanh.pop %v896
  %s902 = scalar_lea.vmem %s5, 6
  %903 = vst.msk [vmem:[%s902] sm:$0x3] %vm320, %v901
  %904 = vmatprep.subr.bf16.mxu0 0
  %905 = vmatpush1.bf16.msra.mxu0 %v67
  %906 = vmatprep.subr.bf16.mxu0 0
  %907 = vmatpush1.bf16.msra.mxu0 %v68
  %908 = vmatprep.subr.bf16.mxu0 0
  %909 = vmatpush1.bf16.msra.mxu0 0
  %910 = vmatprep.subr.bf16.mxu0 0
  %911 = vmatpush1.bf16.msra.mxu0 0
  %912 = vmatprep.subr.bf16.mxu0 0
  %913 = vmatpush1.bf16.msra.mxu0 0
  %914 = vmatprep.subr.bf16.mxu0 0
  %915 = vmatpush1.bf16.msra.mxu0 0
  %916 = vmatprep.subr.bf16.mxu0 0
  %917 = vmatpush1.bf16.msra.mxu0 0
  %918 = vmatprep.subr.bf16.mxu0 0
  %919 = vmatpush1.bf16.msra.mxu0 0
  %920 = vmatprep.subr.bf16.mxu0 0
  %921 = vmatpush1.bf16.msra.mxu0 0
  %922 = vmatprep.subr.bf16.mxu0 0
  %923 = vmatpush1.bf16.msra.mxu0 0
  %924 = vmatprep.subr.bf16.mxu0 0
  %925 = vmatpush1.bf16.msra.mxu0 0
  %926 = vmatprep.subr.bf16.mxu0 0
  %927 = vmatpush1.bf16.msra.mxu0 0
  %928 = vmatprep.subr.bf16.mxu0 0
  %929 = vmatpush1.bf16.msra.mxu0 0
  %930 = vmatprep.subr.bf16.mxu0 0
  %931 = vmatpush1.bf16.msra.mxu0 0
  %932 = vmatprep.subr.bf16.mxu0 0
  %933 = vmatpush1.bf16.msra.mxu0 0
  %934 = vmatprep.subr.bf16.mxu0 0
  %935 = vmatpush1.bf16.msra.mxu0 0
  %936 = vmatprep.mubr.bf16.mxu0 0
  %937 = vmatmul.mubr.bf16.gmra.mrb[0].mxu0 %v859
  %v938 = vpop.f32.mrb[0].mxu0
  %v939 = vadd.f32 %v57, %v938
  %v940 = vpop.f32.mrb[0].mxu0
  %v941 = vpop.f32.mrb[0].mxu0
  %v942 = vpop.f32.mrb[0].mxu0
  %943 = vdwg.mxu0
  %944 = vmatprep.subr.bf16.mxu0 0
  %945 = vmatpush1.bf16.msra.mxu0 %v129
  %946 = vmatprep.subr.bf16.mxu0 0
  %947 = vmatpush1.bf16.msra.mxu0 %v130
  %948 = vmatprep.subr.bf16.mxu0 0
  %949 = vmatpush1.bf16.msra.mxu0 0
  %950 = vmatprep.subr.bf16.mxu0 0
  %951 = vmatpush1.bf16.msra.mxu0 0
  %952 = vmatprep.subr.bf16.mxu0 0
  %953 = vmatpush1.bf16.msra.mxu0 0
  %954 = vmatprep.subr.bf16.mxu0 0
  %955 = vmatpush1.bf16.msra.mxu0 0
  %956 = vmatprep.subr.bf16.mxu0 0
  %957 = vmatpush1.bf16.msra.mxu0 0
  %958 = vmatprep.subr.bf16.mxu0 0
  %959 = vmatpush1.bf16.msra.mxu0 0
  %960 = vmatprep.subr.bf16.mxu0 0
  %961 = vmatpush1.bf16.msra.mxu0 0
  %962 = vmatprep.subr.bf16.mxu0 0
  %963 = vmatpush1.bf16.msra.mxu0 0
  %964 = vmatprep.subr.bf16.mxu0 0
  %965 = vmatpush1.bf16.msra.mxu0 0
  %966 = vmatprep.subr.bf16.mxu0 0
  %967 = vmatpush1.bf16.msra.mxu0 0
  %968 = vmatprep.subr.bf16.mxu0 0
  %969 = vmatpush1.bf16.msra.mxu0 0
  %970 = vmatprep.subr.bf16.mxu0 0
  %971 = vmatpush1.bf16.msra.mxu0 0
  %972 = vmatprep.subr.bf16.mxu0 0
  %973 = vmatpush1.bf16.msra.mxu0 0
  %974 = vmatprep.subr.bf16.mxu0 0
  %975 = vmatpush1.bf16.msra.mxu0 0
  %976 = vmatprep.mubr.bf16.mxu0 0
  %977 = vmatmul.mubr.bf16.gmra.mrb[0].mxu0 %v859
  %v978 = vpop.f32.mrb[0].mxu0
  %v979 = vadd.f32 %v119, %v978
  %v980 = vpop.f32.mrb[0].mxu0
  %v981 = vpop.f32.mrb[0].mxu0
  %v982 = vpop.f32.mrb[0].mxu0
  %983 = vdwg.mxu0
  %984 = vmatprep.subr.bf16.mxu0 0
  %985 = vmatpush1.bf16.msra.mxu0 %v187
  %986 = vmatprep.subr.bf16.mxu0 0
  %987 = vmatpush1.bf16.msra.mxu0 %v188
  %988 = vmatprep.subr.bf16.mxu0 0
  %989 = vmatpush1.bf16.msra.mxu0 0
  %990 = vmatprep.subr.bf16.mxu0 0
  %991 = vmatpush1.bf16.msra.mxu0 0
  %992 = vmatprep.subr.bf16.mxu0 0
  %993 = vmatpush1.bf16.msra.mxu0 0
  %994 = vmatprep.subr.bf16.mxu0 0
  %995 = vmatpush1.bf16.msra.mxu0 0
  %996 = vmatprep.subr.bf16.mxu0 0
  %997 = vmatpush1.bf16.msra.mxu0 0
  %998 = vmatprep.subr.bf16.mxu0 0
  %999 = vmatpush1.bf16.msra.mxu0 0
  %1000 = vmatprep.subr.bf16.mxu0 0
  %1001 = vmatpush1.bf16.msra.mxu0 0
  %1002 = vmatprep.subr.bf16.mxu0 0
  %1003 = vmatpush1.bf16.msra.mxu0 0
  %1004 = vmatprep.subr.bf16.mxu0 0
  %1005 = vmatpush1.bf16.msra.mxu0 0
  %1006 = vmatprep.subr.bf16.mxu0 0
  %1007 = vmatpush1.bf16.msra.mxu0 0
  %1008 = vmatprep.subr.bf16.mxu0 0
  %1009 = vmatpush1.bf16.msra.mxu0 0
  %1010 = vmatprep.subr.bf16.mxu0 0
  %1011 = vmatpush1.bf16.msra.mxu0 0
  %1012 = vmatprep.subr.bf16.mxu0 0
  %1013 = vmatpush1.bf16.msra.mxu0 0
  %1014 = vmatprep.subr.bf16.mxu0 0
  %1015 = vmatpush1.bf16.msra.mxu0 0
  %1016 = vmatprep.mubr.bf16.mxu0 0
  %1017 = vmatmul.mubr.bf16.gmra.mrb[0].mxu0 %v859
  %v1018 = vpop.f32.mrb[0].mxu0
  %v1019 = vadd.f32 %v177, %v1018
  %v1020 = vpop.f32.mrb[0].mxu0
  %v1021 = vpop.f32.mrb[0].mxu0
  %v1022 = vpop.f32.mrb[0].mxu0
  %1023 = vdwg.mxu0
  %s1024 = scalar_lea.vmem %s0, 8
  %v1025 = vld [vmem:[%s1024] sm:$0x3]
  %v1026 = vadd.f32 %v1025, %v939
  %v1027 = vxor.u32 %v1026, 2147483648
  %v1028 = vmul.f32 %v1027, 1.442695
  %v1029 = vpow.pop %v1028
  %v1030 = vadd.f32 %v1029, 1.0
  %v1031 = vrcp.pop %v1030
  %v1032 = vmul.f32 1.0, %v1031
  %s1033 = scalar_lea.vmem %s0, 24
  %v1034 = vld [vmem:[%s1033] sm:$0x3]
  %v1035 = vadd.f32 %v1034, %v979
  %v1036 = vxor.u32 %v1035, 2147483648
  %v1037 = vmul.f32 %v1036, 1.442695
  %v1038 = vpow.pop %v1037
  %v1039 = vadd.f32 %v1038, 1.0
  %v1040 = vrcp.pop %v1039
  %v1041 = vmul.f32 1.0, %v1040
  %s1042 = scalar_lea.vmem %s0, 40
  %v1043 = vld [vmem:[%s1042] sm:$0x3]
  %v1044 = vmul.f32 %v1032, %v1019
  %v1045 = vadd.f32 %v1043, %v1044
  %v1046 = vtanh.pop %v1045
  %v1047 = vsub.f32 1.0, %v1041
  %v1048 = vmul.f32 %v1047, %v1046
  %v1049 = vmul.f32 %v1041, %v856
  %v1050 = vadd.f32 %v1048, %v1049
  %v1051 = vpack.c.bf16 %v1050, %v1050
  %v1053 = vsel %vm71, %v1051, 0
  %1055 = vmatprep.subr.bf16.mxu0 0
  %1056 = vmatpush1.bf16.msra.mxu0 %v272
  %1057 = vmatprep.subr.bf16.mxu0 0
  %1058 = vmatpush1.bf16.msra.mxu0 %v273
  %1059 = vmatprep.subr.bf16.mxu0 0
  %1060 = vmatpush1.bf16.msra.mxu0 0
  %1061 = vmatprep.subr.bf16.mxu0 0
  %1062 = vmatpush1.bf16.msra.mxu0 0
  %1063 = vmatprep.subr.bf16.mxu0 0
  %1064 = vmatpush1.bf16.msra.mxu0 0
  %1065 = vmatprep.subr.bf16.mxu0 0
  %1066 = vmatpush1.bf16.msra.mxu0 0
  %1067 = vmatprep.subr.bf16.mxu0 0
  %1068 = vmatpush1.bf16.msra.mxu0 0
  %1069 = vmatprep.subr.bf16.mxu0 0
  %1070 = vmatpush1.bf16.msra.mxu0 0
  %1071 = vmatprep.subr.bf16.mxu0 0
  %1072 = vmatpush1.bf16.msra.mxu0 0
  %1073 = vmatprep.subr.bf16.mxu0 0
  %1074 = vmatpush1.bf16.msra.mxu0 0
  %1075 = vmatprep.subr.bf16.mxu0 0
  %1076 = vmatpush1.bf16.msra.mxu0 0
  %1077 = vmatprep.subr.bf16.mxu0 0
  %1078 = vmatpush1.bf16.msra.mxu0 0
  %1079 = vmatprep.subr.bf16.mxu0 0
  %1080 = vmatpush1.bf16.msra.mxu0 0
  %1081 = vmatprep.subr.bf16.mxu0 0
  %1082 = vmatpush1.bf16.msra.mxu0 0
  %1083 = vmatprep.subr.bf16.mxu0 0
  %1084 = vmatpush1.bf16.msra.mxu0 0
  %1085 = vmatprep.subr.bf16.mxu0 0
  %1086 = vmatpush1.bf16.msra.mxu0 0
  %1087 = vmatprep.mubr.bf16.mxu0 0
  %1088 = vmatmul.mubr.bf16.gmra.mrb[0].mxu0 %v1053
  %v1089 = vpop.f32.mrb[0].mxu0
  %v1090 = vadd.f32 %v262, %v1089
  %v1091 = vpop.f32.mrb[0].mxu0
  %v1092 = vpop.f32.mrb[0].mxu0
  %v1093 = vpop.f32.mrb[0].mxu0
  %1094 = vdwg.mxu0
  %v1095 = vtanh.pop %v1090
  %s1096 = scalar_lea.vmem %s5, 8
  %1097 = vst.msk [vmem:[%s1096] sm:$0x3] %vm320, %v1095
  %1098 = vmatprep.subr.bf16.mxu0 0
  %1099 = vmatpush1.bf16.msra.mxu0 %v67
  %1100 = vmatprep.subr.bf16.mxu0 0
  %1101 = vmatpush1.bf16.msra.mxu0 %v68
  %1102 = vmatprep.subr.bf16.mxu0 0
  %1103 = vmatpush1.bf16.msra.mxu0 0
  %1104 = vmatprep.subr.bf16.mxu0 0
  %1105 = vmatpush1.bf16.msra.mxu0 0
  %1106 = vmatprep.subr.bf16.mxu0 0
  %1107 = vmatpush1.bf16.msra.mxu0 0
  %1108 = vmatprep.subr.bf16.mxu0 0
  %1109 = vmatpush1.bf16.msra.mxu0 0
  %1110 = vmatprep.subr.bf16.mxu0 0
  %1111 = vmatpush1.bf16.msra.mxu0 0
  %1112 = vmatprep.subr.bf16.mxu0 0
  %1113 = vmatpush1.bf16.msra.mxu0 0
  %1114 = vmatprep.subr.bf16.mxu0 0
  %1115 = vmatpush1.bf16.msra.mxu0 0
  %1116 = vmatprep.subr.bf16.mxu0 0
  %1117 = vmatpush1.bf16.msra.mxu0 0
  %1118 = vmatprep.subr.bf16.mxu0 0
  %1119 = vmatpush1.bf16.msra.mxu0 0
  %1120 = vmatprep.subr.bf16.mxu0 0
  %1121 = vmatpush1.bf16.msra.mxu0 0
  %1122 = vmatprep.subr.bf16.mxu0 0
  %1123 = vmatpush1.bf16.msra.mxu0 0
  %1124 = vmatprep.subr.bf16.mxu0 0
  %1125 = vmatpush1.bf16.msra.mxu0 0
  %1126 = vmatprep.subr.bf16.mxu0 0
  %1127 = vmatpush1.bf16.msra.mxu0 0
  %1128 = vmatprep.subr.bf16.mxu0 0
  %1129 = vmatpush1.bf16.msra.mxu0 0
  %1130 = vmatprep.mubr.bf16.mxu0 0
  %1131 = vmatmul.mubr.bf16.gmra.mrb[0].mxu0 %v1053
  %v1132 = vpop.f32.mrb[0].mxu0
  %v1133 = vadd.f32 %v57, %v1132
  %v1134 = vpop.f32.mrb[0].mxu0
  %v1135 = vpop.f32.mrb[0].mxu0
  %v1136 = vpop.f32.mrb[0].mxu0
  %1137 = vdwg.mxu0
  %1138 = vmatprep.subr.bf16.mxu0 0
  %1139 = vmatpush1.bf16.msra.mxu0 %v129
  %1140 = vmatprep.subr.bf16.mxu0 0
  %1141 = vmatpush1.bf16.msra.mxu0 %v130
  %1142 = vmatprep.subr.bf16.mxu0 0
  %1143 = vmatpush1.bf16.msra.mxu0 0
  %1144 = vmatprep.subr.bf16.mxu0 0
  %1145 = vmatpush1.bf16.msra.mxu0 0
  %1146 = vmatprep.subr.bf16.mxu0 0
  %1147 = vmatpush1.bf16.msra.mxu0 0
  %1148 = vmatprep.subr.bf16.mxu0 0
  %1149 = vmatpush1.bf16.msra.mxu0 0
  %1150 = vmatprep.subr.bf16.mxu0 0
  %1151 = vmatpush1.bf16.msra.mxu0 0
  %1152 = vmatprep.subr.bf16.mxu0 0
  %1153 = vmatpush1.bf16.msra.mxu0 0
  %1154 = vmatprep.subr.bf16.mxu0 0
  %1155 = vmatpush1.bf16.msra.mxu0 0
  %1156 = vmatprep.subr.bf16.mxu0 0
  %1157 = vmatpush1.bf16.msra.mxu0 0
  %1158 = vmatprep.subr.bf16.mxu0 0
  %1159 = vmatpush1.bf16.msra.mxu0 0
  %1160 = vmatprep.subr.bf16.mxu0 0
  %1161 = vmatpush1.bf16.msra.mxu0 0
  %1162 = vmatprep.subr.bf16.mxu0 0
  %1163 = vmatpush1.bf16.msra.mxu0 0
  %1164 = vmatprep.subr.bf16.mxu0 0
  %1165 = vmatpush1.bf16.msra.mxu0 0
  %1166 = vmatprep.subr.bf16.mxu0 0
  %1167 = vmatpush1.bf16.msra.mxu0 0
  %1168 = vmatprep.subr.bf16.mxu0 0
  %1169 = vmatpush1.bf16.msra.mxu0 0
  %1170 = vmatprep.mubr.bf16.mxu0 0
  %1171 = vmatmul.mubr.bf16.gmra.mrb[0].mxu0 %v1053
  %v1172 = vpop.f32.mrb[0].mxu0
  %v1173 = vadd.f32 %v119, %v1172
  %v1174 = vpop.f32.mrb[0].mxu0
  %v1175 = vpop.f32.mrb[0].mxu0
  %v1176 = vpop.f32.mrb[0].mxu0
  %1177 = vdwg.mxu0
  %1178 = vmatprep.subr.bf16.mxu0 0
  %1179 = vmatpush1.bf16.msra.mxu0 %v187
  %1180 = vmatprep.subr.bf16.mxu0 0
  %1181 = vmatpush1.bf16.msra.mxu0 %v188
  %1182 = vmatprep.subr.bf16.mxu0 0
  %1183 = vmatpush1.bf16.msra.mxu0 0
  %1184 = vmatprep.subr.bf16.mxu0 0
  %1185 = vmatpush1.bf16.msra.mxu0 0
  %1186 = vmatprep.subr.bf16.mxu0 0
  %1187 = vmatpush1.bf16.msra.mxu0 0
  %1188 = vmatprep.subr.bf16.mxu0 0
  %1189 = vmatpush1.bf16.msra.mxu0 0
  %1190 = vmatprep.subr.bf16.mxu0 0
  %1191 = vmatpush1.bf16.msra.mxu0 0
  %1192 = vmatprep.subr.bf16.mxu0 0
  %1193 = vmatpush1.bf16.msra.mxu0 0
  %1194 = vmatprep.subr.bf16.mxu0 0
  %1195 = vmatpush1.bf16.msra.mxu0 0
  %1196 = vmatprep.subr.bf16.mxu0 0
  %1197 = vmatpush1.bf16.msra.mxu0 0
  %1198 = vmatprep.subr.bf16.mxu0 0
  %1199 = vmatpush1.bf16.msra.mxu0 0
  %1200 = vmatprep.subr.bf16.mxu0 0
  %1201 = vmatpush1.bf16.msra.mxu0 0
  %1202 = vmatprep.subr.bf16.mxu0 0
  %1203 = vmatpush1.bf16.msra.mxu0 0
  %1204 = vmatprep.subr.bf16.mxu0 0
  %1205 = vmatpush1.bf16.msra.mxu0 0
  %1206 = vmatprep.subr.bf16.mxu0 0
  %1207 = vmatpush1.bf16.msra.mxu0 0
  %1208 = vmatprep.subr.bf16.mxu0 0
  %1209 = vmatpush1.bf16.msra.mxu0 0
  %1210 = vmatprep.mubr.bf16.mxu0 0
  %1211 = vmatmul.mubr.bf16.gmra.mrb[0].mxu0 %v1053
  %v1212 = vpop.f32.mrb[0].mxu0
  %v1213 = vadd.f32 %v177, %v1212
  %v1214 = vpop.f32.mrb[0].mxu0
  %v1215 = vpop.f32.mrb[0].mxu0
  %v1216 = vpop.f32.mrb[0].mxu0
  %1217 = vdwg.mxu0
  %s1218 = scalar_lea.vmem %s0, 10
  %v1219 = vld [vmem:[%s1218] sm:$0x3]
  %v1220 = vadd.f32 %v1219, %v1133
  %v1221 = vxor.u32 %v1220, 2147483648
  %v1222 = vmul.f32 %v1221, 1.442695
  %v1223 = vpow.pop %v1222
  %v1224 = vadd.f32 %v1223, 1.0
  %v1225 = vrcp.pop %v1224
  %v1226 = vmul.f32 1.0, %v1225
  %s1227 = scalar_lea.vmem %s0, 26
  %v1228 = vld [vmem:[%s1227] sm:$0x3]
  %v1229 = vadd.f32 %v1228, %v1173
  %v1230 = vxor.u32 %v1229, 2147483648
  %v1231 = vmul.f32 %v1230, 1.442695
  %v1232 = vpow.pop %v1231
  %v1233 = vadd.f32 %v1232, 1.0
  %v1234 = vrcp.pop %v1233
  %v1235 = vmul.f32 1.0, %v1234
  %s1236 = scalar_lea.vmem %s0, 42
  %v1237 = vld [vmem:[%s1236] sm:$0x3]
  %v1238 = vmul.f32 %v1226, %v1213
  %v1239 = vadd.f32 %v1237, %v1238
  %v1240 = vtanh.pop %v1239
  %v1241 = vsub.f32 1.0, %v1235
  %v1242 = vmul.f32 %v1241, %v1240
  %v1243 = vmul.f32 %v1235, %v1050
  %v1244 = vadd.f32 %v1242, %v1243
  %v1245 = vpack.c.bf16 %v1244, %v1244
  %v1247 = vsel %vm71, %v1245, 0
  %1249 = vmatprep.subr.bf16.mxu0 0
  %1250 = vmatpush1.bf16.msra.mxu0 %v272
  %1251 = vmatprep.subr.bf16.mxu0 0
  %1252 = vmatpush1.bf16.msra.mxu0 %v273
  %1253 = vmatprep.subr.bf16.mxu0 0
  %1254 = vmatpush1.bf16.msra.mxu0 0
  %1255 = vmatprep.subr.bf16.mxu0 0
  %1256 = vmatpush1.bf16.msra.mxu0 0
  %1257 = vmatprep.subr.bf16.mxu0 0
  %1258 = vmatpush1.bf16.msra.mxu0 0
  %1259 = vmatprep.subr.bf16.mxu0 0
  %1260 = vmatpush1.bf16.msra.mxu0 0
  %1261 = vmatprep.subr.bf16.mxu0 0
  %1262 = vmatpush1.bf16.msra.mxu0 0
  %1263 = vmatprep.subr.bf16.mxu0 0
  %1264 = vmatpush1.bf16.msra.mxu0 0
  %1265 = vmatprep.subr.bf16.mxu0 0
  %1266 = vmatpush1.bf16.msra.mxu0 0
  %1267 = vmatprep.subr.bf16.mxu0 0
  %1268 = vmatpush1.bf16.msra.mxu0 0
  %1269 = vmatprep.subr.bf16.mxu0 0
  %1270 = vmatpush1.bf16.msra.mxu0 0
  %1271 = vmatprep.subr.bf16.mxu0 0
  %1272 = vmatpush1.bf16.msra.mxu0 0
  %1273 = vmatprep.subr.bf16.mxu0 0
  %1274 = vmatpush1.bf16.msra.mxu0 0
  %1275 = vmatprep.subr.bf16.mxu0 0
  %1276 = vmatpush1.bf16.msra.mxu0 0
  %1277 = vmatprep.subr.bf16.mxu0 0
  %1278 = vmatpush1.bf16.msra.mxu0 0
  %1279 = vmatprep.subr.bf16.mxu0 0
  %1280 = vmatpush1.bf16.msra.mxu0 0
  %1281 = vmatprep.mubr.bf16.mxu0 0
  %1282 = vmatmul.mubr.bf16.gmra.mrb[0].mxu0 %v1247
  %v1283 = vpop.f32.mrb[0].mxu0
  %v1284 = vadd.f32 %v262, %v1283
  %v1285 = vpop.f32.mrb[0].mxu0
  %v1286 = vpop.f32.mrb[0].mxu0
  %v1287 = vpop.f32.mrb[0].mxu0
  %1288 = vdwg.mxu0
  %v1289 = vtanh.pop %v1284
  %s1290 = scalar_lea.vmem %s5, 10
  %1291 = vst.msk [vmem:[%s1290] sm:$0x3] %vm320, %v1289
  %1292 = vmatprep.subr.bf16.mxu0 0
  %1293 = vmatpush1.bf16.msra.mxu0 %v67
  %1294 = vmatprep.subr.bf16.mxu0 0
  %1295 = vmatpush1.bf16.msra.mxu0 %v68
  %1296 = vmatprep.subr.bf16.mxu0 0
  %1297 = vmatpush1.bf16.msra.mxu0 0
  %1298 = vmatprep.subr.bf16.mxu0 0
  %1299 = vmatpush1.bf16.msra.mxu0 0
  %1300 = vmatprep.subr.bf16.mxu0 0
  %1301 = vmatpush1.bf16.msra.mxu0 0
  %1302 = vmatprep.subr.bf16.mxu0 0
  %1303 = vmatpush1.bf16.msra.mxu0 0
  %1304 = vmatprep.subr.bf16.mxu0 0
  %1305 = vmatpush1.bf16.msra.mxu0 0
  %1306 = vmatprep.subr.bf16.mxu0 0
  %1307 = vmatpush1.bf16.msra.mxu0 0
  %1308 = vmatprep.subr.bf16.mxu0 0
  %1309 = vmatpush1.bf16.msra.mxu0 0
  %1310 = vmatprep.subr.bf16.mxu0 0
  %1311 = vmatpush1.bf16.msra.mxu0 0
  %1312 = vmatprep.subr.bf16.mxu0 0
  %1313 = vmatpush1.bf16.msra.mxu0 0
  %1314 = vmatprep.subr.bf16.mxu0 0
  %1315 = vmatpush1.bf16.msra.mxu0 0
  %1316 = vmatprep.subr.bf16.mxu0 0
  %1317 = vmatpush1.bf16.msra.mxu0 0
  %1318 = vmatprep.subr.bf16.mxu0 0
  %1319 = vmatpush1.bf16.msra.mxu0 0
  %1320 = vmatprep.subr.bf16.mxu0 0
  %1321 = vmatpush1.bf16.msra.mxu0 0
  %1322 = vmatprep.subr.bf16.mxu0 0
  %1323 = vmatpush1.bf16.msra.mxu0 0
  %1324 = vmatprep.mubr.bf16.mxu0 0
  %1325 = vmatmul.mubr.bf16.gmra.mrb[0].mxu0 %v1247
  %v1326 = vpop.f32.mrb[0].mxu0
  %v1327 = vadd.f32 %v57, %v1326
  %v1328 = vpop.f32.mrb[0].mxu0
  %v1329 = vpop.f32.mrb[0].mxu0
  %v1330 = vpop.f32.mrb[0].mxu0
  %1331 = vdwg.mxu0
  %1332 = vmatprep.subr.bf16.mxu0 0
  %1333 = vmatpush1.bf16.msra.mxu0 %v129
  %1334 = vmatprep.subr.bf16.mxu0 0
  %1335 = vmatpush1.bf16.msra.mxu0 %v130
  %1336 = vmatprep.subr.bf16.mxu0 0
  %1337 = vmatpush1.bf16.msra.mxu0 0
  %1338 = vmatprep.subr.bf16.mxu0 0
  %1339 = vmatpush1.bf16.msra.mxu0 0
  %1340 = vmatprep.subr.bf16.mxu0 0
  %1341 = vmatpush1.bf16.msra.mxu0 0
  %1342 = vmatprep.subr.bf16.mxu0 0
  %1343 = vmatpush1.bf16.msra.mxu0 0
  %1344 = vmatprep.subr.bf16.mxu0 0
  %1345 = vmatpush1.bf16.msra.mxu0 0
  %1346 = vmatprep.subr.bf16.mxu0 0
  %1347 = vmatpush1.bf16.msra.mxu0 0
  %1348 = vmatprep.subr.bf16.mxu0 0
  %1349 = vmatpush1.bf16.msra.mxu0 0
  %1350 = vmatprep.subr.bf16.mxu0 0
  %1351 = vmatpush1.bf16.msra.mxu0 0
  %1352 = vmatprep.subr.bf16.mxu0 0
  %1353 = vmatpush1.bf16.msra.mxu0 0
  %1354 = vmatprep.subr.bf16.mxu0 0
  %1355 = vmatpush1.bf16.msra.mxu0 0
  %1356 = vmatprep.subr.bf16.mxu0 0
  %1357 = vmatpush1.bf16.msra.mxu0 0
  %1358 = vmatprep.subr.bf16.mxu0 0
  %1359 = vmatpush1.bf16.msra.mxu0 0
  %1360 = vmatprep.subr.bf16.mxu0 0
  %1361 = vmatpush1.bf16.msra.mxu0 0
  %1362 = vmatprep.subr.bf16.mxu0 0
  %1363 = vmatpush1.bf16.msra.mxu0 0
  %1364 = vmatprep.mubr.bf16.mxu0 0
  %1365 = vmatmul.mubr.bf16.gmra.mrb[0].mxu0 %v1247
  %v1366 = vpop.f32.mrb[0].mxu0
  %v1367 = vadd.f32 %v119, %v1366
  %v1368 = vpop.f32.mrb[0].mxu0
  %v1369 = vpop.f32.mrb[0].mxu0
  %v1370 = vpop.f32.mrb[0].mxu0
  %1371 = vdwg.mxu0
  %1372 = vmatprep.subr.bf16.mxu0 0
  %1373 = vmatpush1.bf16.msra.mxu0 %v187
  %1374 = vmatprep.subr.bf16.mxu0 0
  %1375 = vmatpush1.bf16.msra.mxu0 %v188
  %1376 = vmatprep.subr.bf16.mxu0 0
  %1377 = vmatpush1.bf16.msra.mxu0 0
  %1378 = vmatprep.subr.bf16.mxu0 0
  %1379 = vmatpush1.bf16.msra.mxu0 0
  %1380 = vmatprep.subr.bf16.mxu0 0
  %1381 = vmatpush1.bf16.msra.mxu0 0
  %1382 = vmatprep.subr.bf16.mxu0 0
  %1383 = vmatpush1.bf16.msra.mxu0 0
  %1384 = vmatprep.subr.bf16.mxu0 0
  %1385 = vmatpush1.bf16.msra.mxu0 0
  %1386 = vmatprep.subr.bf16.mxu0 0
  %1387 = vmatpush1.bf16.msra.mxu0 0
  %1388 = vmatprep.subr.bf16.mxu0 0
  %1389 = vmatpush1.bf16.msra.mxu0 0
  %1390 = vmatprep.subr.bf16.mxu0 0
  %1391 = vmatpush1.bf16.msra.mxu0 0
  %1392 = vmatprep.subr.bf16.mxu0 0
  %1393 = vmatpush1.bf16.msra.mxu0 0
  %1394 = vmatprep.subr.bf16.mxu0 0
  %1395 = vmatpush1.bf16.msra.mxu0 0
  %1396 = vmatprep.subr.bf16.mxu0 0
  %1397 = vmatpush1.bf16.msra.mxu0 0
  %1398 = vmatprep.subr.bf16.mxu0 0
  %1399 = vmatpush1.bf16.msra.mxu0 0
  %1400 = vmatprep.subr.bf16.mxu0 0
  %1401 = vmatpush1.bf16.msra.mxu0 0
  %1402 = vmatprep.subr.bf16.mxu0 0
  %1403 = vmatpush1.bf16.msra.mxu0 0
  %1404 = vmatprep.mubr.bf16.mxu0 0
  %1405 = vmatmul.mubr.bf16.gmra.mrb[0].mxu0 %v1247
  %v1406 = vpop.f32.mrb[0].mxu0
  %v1407 = vadd.f32 %v177, %v1406
  %v1408 = vpop.f32.mrb[0].mxu0
  %v1409 = vpop.f32.mrb[0].mxu0
  %v1410 = vpop.f32.mrb[0].mxu0
  %1411 = vdwg.mxu0
  %s1412 = scalar_lea.vmem %s0, 12
  %v1413 = vld [vmem:[%s1412] sm:$0x3]
  %v1414 = vadd.f32 %v1413, %v1327
  %v1415 = vxor.u32 %v1414, 2147483648
  %v1416 = vmul.f32 %v1415, 1.442695
  %v1417 = vpow.pop %v1416
  %v1418 = vadd.f32 %v1417, 1.0
  %v1419 = vrcp.pop %v1418
  %v1420 = vmul.f32 1.0, %v1419
  %s1421 = scalar_lea.vmem %s0, 28
  %v1422 = vld [vmem:[%s1421] sm:$0x3]
  %v1423 = vadd.f32 %v1422, %v1367
  %v1424 = vxor.u32 %v1423, 2147483648
  %v1425 = vmul.f32 %v1424, 1.442695
  %v1426 = vpow.pop %v1425
  %v1427 = vadd.f32 %v1426, 1.0
  %v1428 = vrcp.pop %v1427
  %v1429 = vmul.f32 1.0, %v1428
  %s1430 = scalar_lea.vmem %s0, 44
  %v1431 = vld [vmem:[%s1430] sm:$0x3]
  %v1432 = vmul.f32 %v1420, %v1407
  %v1433 = vadd.f32 %v1431, %v1432
  %v1434 = vtanh.pop %v1433
  %v1435 = vsub.f32 1.0, %v1429
  %v1436 = vmul.f32 %v1435, %v1434
  %v1437 = vmul.f32 %v1429, %v1244
  %v1438 = vadd.f32 %v1436, %v1437
  %v1439 = vpack.c.bf16 %v1438, %v1438
  %v1441 = vsel %vm71, %v1439, 0
  %1443 = vmatprep.subr.bf16.mxu0 0
  %1444 = vmatpush1.bf16.msra.mxu0 %v272
  %1445 = vmatprep.subr.bf16.mxu0 0
  %1446 = vmatpush1.bf16.msra.mxu0 %v273
  %1447 = vmatprep.subr.bf16.mxu0 0
  %1448 = vmatpush1.bf16.msra.mxu0 0
  %1449 = vmatprep.subr.bf16.mxu0 0
  %1450 = vmatpush1.bf16.msra.mxu0 0
  %1451 = vmatprep.subr.bf16.mxu0 0
  %1452 = vmatpush1.bf16.msra.mxu0 0
  %1453 = vmatprep.subr.bf16.mxu0 0
  %1454 = vmatpush1.bf16.msra.mxu0 0
  %1455 = vmatprep.subr.bf16.mxu0 0
  %1456 = vmatpush1.bf16.msra.mxu0 0
  %1457 = vmatprep.subr.bf16.mxu0 0
  %1458 = vmatpush1.bf16.msra.mxu0 0
  %1459 = vmatprep.subr.bf16.mxu0 0
  %1460 = vmatpush1.bf16.msra.mxu0 0
  %1461 = vmatprep.subr.bf16.mxu0 0
  %1462 = vmatpush1.bf16.msra.mxu0 0
  %1463 = vmatprep.subr.bf16.mxu0 0
  %1464 = vmatpush1.bf16.msra.mxu0 0
  %1465 = vmatprep.subr.bf16.mxu0 0
  %1466 = vmatpush1.bf16.msra.mxu0 0
  %1467 = vmatprep.subr.bf16.mxu0 0
  %1468 = vmatpush1.bf16.msra.mxu0 0
  %1469 = vmatprep.subr.bf16.mxu0 0
  %1470 = vmatpush1.bf16.msra.mxu0 0
  %1471 = vmatprep.subr.bf16.mxu0 0
  %1472 = vmatpush1.bf16.msra.mxu0 0
  %1473 = vmatprep.subr.bf16.mxu0 0
  %1474 = vmatpush1.bf16.msra.mxu0 0
  %1475 = vmatprep.mubr.bf16.mxu0 0
  %1476 = vmatmul.mubr.bf16.gmra.mrb[0].mxu0 %v1441
  %v1477 = vpop.f32.mrb[0].mxu0
  %v1478 = vadd.f32 %v262, %v1477
  %v1479 = vpop.f32.mrb[0].mxu0
  %v1480 = vpop.f32.mrb[0].mxu0
  %v1481 = vpop.f32.mrb[0].mxu0
  %1482 = vdwg.mxu0
  %v1483 = vtanh.pop %v1478
  %s1484 = scalar_lea.vmem %s5, 12
  %1485 = vst.msk [vmem:[%s1484] sm:$0x3] %vm320, %v1483
  %1486 = vmatprep.subr.bf16.mxu0 0
  %1487 = vmatpush1.bf16.msra.mxu0 %v67
  %1488 = vmatprep.subr.bf16.mxu0 0
  %1489 = vmatpush1.bf16.msra.mxu0 %v68
  %1490 = vmatprep.subr.bf16.mxu0 0
  %1491 = vmatpush1.bf16.msra.mxu0 0
  %1492 = vmatprep.subr.bf16.mxu0 0
  %1493 = vmatpush1.bf16.msra.mxu0 0
  %1494 = vmatprep.subr.bf16.mxu0 0
  %1495 = vmatpush1.bf16.msra.mxu0 0
  %1496 = vmatprep.subr.bf16.mxu0 0
  %1497 = vmatpush1.bf16.msra.mxu0 0
  %1498 = vmatprep.subr.bf16.mxu0 0
  %1499 = vmatpush1.bf16.msra.mxu0 0
  %1500 = vmatprep.subr.bf16.mxu0 0
  %1501 = vmatpush1.bf16.msra.mxu0 0
  %1502 = vmatprep.subr.bf16.mxu0 0
  %1503 = vmatpush1.bf16.msra.mxu0 0
  %1504 = vmatprep.subr.bf16.mxu0 0
  %1505 = vmatpush1.bf16.msra.mxu0 0
  %1506 = vmatprep.subr.bf16.mxu0 0
  %1507 = vmatpush1.bf16.msra.mxu0 0
  %1508 = vmatprep.subr.bf16.mxu0 0
  %1509 = vmatpush1.bf16.msra.mxu0 0
  %1510 = vmatprep.subr.bf16.mxu0 0
  %1511 = vmatpush1.bf16.msra.mxu0 0
  %1512 = vmatprep.subr.bf16.mxu0 0
  %1513 = vmatpush1.bf16.msra.mxu0 0
  %1514 = vmatprep.subr.bf16.mxu0 0
  %1515 = vmatpush1.bf16.msra.mxu0 0
  %1516 = vmatprep.subr.bf16.mxu0 0
  %1517 = vmatpush1.bf16.msra.mxu0 0
  %1518 = vmatprep.mubr.bf16.mxu0 0
  %1519 = vmatmul.mubr.bf16.gmra.mrb[0].mxu0 %v1441
  %v1520 = vpop.f32.mrb[0].mxu0
  %v1521 = vadd.f32 %v57, %v1520
  %v1522 = vpop.f32.mrb[0].mxu0
  %v1523 = vpop.f32.mrb[0].mxu0
  %v1524 = vpop.f32.mrb[0].mxu0
  %1525 = vdwg.mxu0
  %1526 = vmatprep.subr.bf16.mxu0 0
  %1527 = vmatpush1.bf16.msra.mxu0 %v129
  %1528 = vmatprep.subr.bf16.mxu0 0
  %1529 = vmatpush1.bf16.msra.mxu0 %v130
  %1530 = vmatprep.subr.bf16.mxu0 0
  %1531 = vmatpush1.bf16.msra.mxu0 0
  %1532 = vmatprep.subr.bf16.mxu0 0
  %1533 = vmatpush1.bf16.msra.mxu0 0
  %1534 = vmatprep.subr.bf16.mxu0 0
  %1535 = vmatpush1.bf16.msra.mxu0 0
  %1536 = vmatprep.subr.bf16.mxu0 0
  %1537 = vmatpush1.bf16.msra.mxu0 0
  %1538 = vmatprep.subr.bf16.mxu0 0
  %1539 = vmatpush1.bf16.msra.mxu0 0
  %1540 = vmatprep.subr.bf16.mxu0 0
  %1541 = vmatpush1.bf16.msra.mxu0 0
  %1542 = vmatprep.subr.bf16.mxu0 0
  %1543 = vmatpush1.bf16.msra.mxu0 0
  %1544 = vmatprep.subr.bf16.mxu0 0
  %1545 = vmatpush1.bf16.msra.mxu0 0
  %1546 = vmatprep.subr.bf16.mxu0 0
  %1547 = vmatpush1.bf16.msra.mxu0 0
  %1548 = vmatprep.subr.bf16.mxu0 0
  %1549 = vmatpush1.bf16.msra.mxu0 0
  %1550 = vmatprep.subr.bf16.mxu0 0
  %1551 = vmatpush1.bf16.msra.mxu0 0
  %1552 = vmatprep.subr.bf16.mxu0 0
  %1553 = vmatpush1.bf16.msra.mxu0 0
  %1554 = vmatprep.subr.bf16.mxu0 0
  %1555 = vmatpush1.bf16.msra.mxu0 0
  %1556 = vmatprep.subr.bf16.mxu0 0
  %1557 = vmatpush1.bf16.msra.mxu0 0
  %1558 = vmatprep.mubr.bf16.mxu0 0
  %1559 = vmatmul.mubr.bf16.gmra.mrb[0].mxu0 %v1441
  %v1560 = vpop.f32.mrb[0].mxu0
  %v1561 = vadd.f32 %v119, %v1560
  %v1562 = vpop.f32.mrb[0].mxu0
  %v1563 = vpop.f32.mrb[0].mxu0
  %v1564 = vpop.f32.mrb[0].mxu0
  %1565 = vdwg.mxu0
  %1566 = vmatprep.subr.bf16.mxu0 0
  %1567 = vmatpush1.bf16.msra.mxu0 %v187
  %1568 = vmatprep.subr.bf16.mxu0 0
  %1569 = vmatpush1.bf16.msra.mxu0 %v188
  %1570 = vmatprep.subr.bf16.mxu0 0
  %1571 = vmatpush1.bf16.msra.mxu0 0
  %1572 = vmatprep.subr.bf16.mxu0 0
  %1573 = vmatpush1.bf16.msra.mxu0 0
  %1574 = vmatprep.subr.bf16.mxu0 0
  %1575 = vmatpush1.bf16.msra.mxu0 0
  %1576 = vmatprep.subr.bf16.mxu0 0
  %1577 = vmatpush1.bf16.msra.mxu0 0
  %1578 = vmatprep.subr.bf16.mxu0 0
  %1579 = vmatpush1.bf16.msra.mxu0 0
  %1580 = vmatprep.subr.bf16.mxu0 0
  %1581 = vmatpush1.bf16.msra.mxu0 0
  %1582 = vmatprep.subr.bf16.mxu0 0
  %1583 = vmatpush1.bf16.msra.mxu0 0
  %1584 = vmatprep.subr.bf16.mxu0 0
  %1585 = vmatpush1.bf16.msra.mxu0 0
  %1586 = vmatprep.subr.bf16.mxu0 0
  %1587 = vmatpush1.bf16.msra.mxu0 0
  %1588 = vmatprep.subr.bf16.mxu0 0
  %1589 = vmatpush1.bf16.msra.mxu0 0
  %1590 = vmatprep.subr.bf16.mxu0 0
  %1591 = vmatpush1.bf16.msra.mxu0 0
  %1592 = vmatprep.subr.bf16.mxu0 0
  %1593 = vmatpush1.bf16.msra.mxu0 0
  %1594 = vmatprep.subr.bf16.mxu0 0
  %1595 = vmatpush1.bf16.msra.mxu0 0
  %1596 = vmatprep.subr.bf16.mxu0 0
  %1597 = vmatpush1.bf16.msra.mxu0 0
  %1598 = vmatprep.mubr.bf16.mxu0 0
  %1599 = vmatmul.mubr.bf16.gmra.mrb[0].mxu0 %v1441
  %v1600 = vpop.f32.mrb[0].mxu0
  %v1601 = vadd.f32 %v177, %v1600
  %v1602 = vpop.f32.mrb[0].mxu0
  %v1603 = vpop.f32.mrb[0].mxu0
  %v1604 = vpop.f32.mrb[0].mxu0
  %1605 = vdwg.mxu0
  %s1606 = scalar_lea.vmem %s0, 14
  %v1607 = vld [vmem:[%s1606] sm:$0x3]
  %v1608 = vadd.f32 %v1607, %v1521
  %v1609 = vxor.u32 %v1608, 2147483648
  %v1610 = vmul.f32 %v1609, 1.442695
  %v1611 = vpow.pop %v1610
  %v1612 = vadd.f32 %v1611, 1.0
  %v1613 = vrcp.pop %v1612
  %v1614 = vmul.f32 1.0, %v1613
  %s1615 = scalar_lea.vmem %s0, 30
  %v1616 = vld [vmem:[%s1615] sm:$0x3]
  %v1617 = vadd.f32 %v1616, %v1561
  %v1618 = vxor.u32 %v1617, 2147483648
  %v1619 = vmul.f32 %v1618, 1.442695
  %v1620 = vpow.pop %v1619
  %v1621 = vadd.f32 %v1620, 1.0
  %v1622 = vrcp.pop %v1621
  %v1623 = vmul.f32 1.0, %v1622
  %s1624 = scalar_lea.vmem %s0, 46
  %v1625 = vld [vmem:[%s1624] sm:$0x3]
  %v1626 = vmul.f32 %v1614, %v1601
  %v1627 = vadd.f32 %v1625, %v1626
  %v1628 = vtanh.pop %v1627
  %v1629 = vsub.f32 1.0, %v1623
  %v1630 = vmul.f32 %v1629, %v1628
  %v1631 = vmul.f32 %v1623, %v1438
  %v1632 = vadd.f32 %v1630, %v1631
  %v1633 = vpack.c.bf16 %v1632, %v1632
  %v1635 = vsel %vm71, %v1633, 0
  %1637 = vmatprep.subr.bf16.mxu0 0
  %1638 = vmatpush1.bf16.msra.mxu0 %v272
  %1639 = vmatprep.subr.bf16.mxu0 0
  %1640 = vmatpush1.bf16.msra.mxu0 %v273
  %1641 = vmatprep.subr.bf16.mxu0 0
  %1642 = vmatpush1.bf16.msra.mxu0 0
  %1643 = vmatprep.subr.bf16.mxu0 0
  %1644 = vmatpush1.bf16.msra.mxu0 0
  %1645 = vmatprep.subr.bf16.mxu0 0
  %1646 = vmatpush1.bf16.msra.mxu0 0
  %1647 = vmatprep.subr.bf16.mxu0 0
  %1648 = vmatpush1.bf16.msra.mxu0 0
  %1649 = vmatprep.subr.bf16.mxu0 0
  %1650 = vmatpush1.bf16.msra.mxu0 0
  %1651 = vmatprep.subr.bf16.mxu0 0
  %1652 = vmatpush1.bf16.msra.mxu0 0
  %1653 = vmatprep.subr.bf16.mxu0 0
  %1654 = vmatpush1.bf16.msra.mxu0 0
  %1655 = vmatprep.subr.bf16.mxu0 0
  %1656 = vmatpush1.bf16.msra.mxu0 0
  %1657 = vmatprep.subr.bf16.mxu0 0
  %1658 = vmatpush1.bf16.msra.mxu0 0
  %1659 = vmatprep.subr.bf16.mxu0 0
  %1660 = vmatpush1.bf16.msra.mxu0 0
  %1661 = vmatprep.subr.bf16.mxu0 0
  %1662 = vmatpush1.bf16.msra.mxu0 0
  %1663 = vmatprep.subr.bf16.mxu0 0
  %1664 = vmatpush1.bf16.msra.mxu0 0
  %1665 = vmatprep.subr.bf16.mxu0 0
  %1666 = vmatpush1.bf16.msra.mxu0 0
  %1667 = vmatprep.subr.bf16.mxu0 0
  %1668 = vmatpush1.bf16.msra.mxu0 0
  %1669 = vmatprep.mubr.bf16.mxu0 0
  %1670 = vmatmul.mubr.bf16.gmra.mrb[0].mxu0 %v1635
  %v1671 = vpop.f32.mrb[0].mxu0
  %v1672 = vadd.f32 %v262, %v1671
  %v1673 = vpop.f32.mrb[0].mxu0
  %v1674 = vpop.f32.mrb[0].mxu0
  %v1675 = vpop.f32.mrb[0].mxu0
  %1676 = vdwg.mxu0
  %v1677 = vtanh.pop %v1672
  %s1678 = scalar_lea.vmem %s5, 14
  %1679 = vst.msk [vmem:[%s1678] sm:$0x3] %vm320, %v1677
  %vm1680 = vcmask 254976
  %1681 = vst.msk [vmem:[#allocation2] sm:$0x3] %vm1680, %v1632
  // Predicated region
  $region26: #{decoder_forward.4} parent=0 // pred_check
    _
  $region27: #{decoder_forward.4} parent=0 // pred_check_branch
    %1683 = sbr.rel (0) target = $region29
  $region28: #{decoder_forward.4} parent=0 // pred_region
    _
  $region29: #{decoder_forward.4} parent=0 // pred_fallthru
    _
  // Predicated region
  $region30: #{decoder_forward.4} parent=0 // pred_check
    _
  $region31: #{decoder_forward.4} parent=0 // pred_check_branch
    %1685 = sbr.rel (0) target = $region33
  $region32: #{decoder_forward.4} parent=0 // pred_region
    _
  $region33: #{decoder_forward.4} parent=0 // pred_fallthru
    _

</llo_original>
